<compile_context>
chip_gen: v6e
topology: v6e:2x2x1
jax: 0.10.0
libtpu: 0.0.40
codegen_flags: <defaults>
</compile_context>

<pallas_src>
import functools

import jax
import jax.numpy as jnp
import numpy as np
from jax.experimental import pallas as pl
from jax.experimental.pallas import tpu as pltpu

LANE = 128
SUBLANE = 8


def _round_up(x, m):
    return (x + m - 1) // m * m


# ------------------------------ fused kernel ------------------------------- #

def _fused_gin_kernel(a_ref, p_ref, h0_ref, w_ref, v_ref, o_ref, pooled_ref,
                      *, num_gin):
    """Entire GIN_AvgPooling forward pass in one kernel invocation.

    Shapes (all zero-padded, f32, DP = 128):
      a_ref     : [NP, NP]            A_hat = A + (1+eps)*I   (zero padded rows/cols)
      p_ref     : [GP, NP]            average-pooling matrix  (zero padded rows/cols)
      h0_ref    : [NP, DP]            input node features     (zero padded rows/cols)
      w_ref     : [(3L+1)*DP, DP]     row-blocks: w1_folded[0..L-1] | w2_folded[0..L-1]
                                      | wp[0..L] (prediction heads, lane-concat ready)
      v_ref     : [16, DP]            row 2l = b1[l], row 2l+1 = b2[l],
                                      row 2L = sum of prediction biases, rest zero
      o_ref     : [GP, DP]            score_over_layer
      pooled_ref: [GP, (L+1)*DP]      VMEM scratch holding all pooled reps (lane-concat)
    """
    dp = w_ref.shape[-1]
    a_hat = a_ref[...]
    pool = p_ref[...]

    # hidden_rep[0]: raw input features; h stays resident in VMEM/vregs.
    h = h0_ref[...]
    pooled_ref[:, 0:dp] = jnp.dot(pool, h, preferred_element_type=jnp.float32)

    for l in range(num_gin):                          # statically unrolled (4 layers)
        # GINConv (sum aggregation, eps=0): agg = (A + I) @ h
        agg = jnp.dot(a_hat, h, preferred_element_type=jnp.float32)
        # MLP: linear1 (BN scale folded) -> +bias -> ReLU -> linear2 (outer BN scale
        # folded) -> +bias -> ReLU
        w1 = w_ref[l * dp:(l + 1) * dp, :]
        w2 = w_ref[(num_gin + l) * dp:(num_gin + l + 1) * dp, :]
        b1 = v_ref[2 * l:2 * l + 1, :]
        b2 = v_ref[2 * l + 1:2 * l + 2, :]
        z = jnp.maximum(jnp.dot(agg, w1, preferred_element_type=jnp.float32) + b1, 0.0)
        h = jnp.maximum(jnp.dot(z, w2, preferred_element_type=jnp.float32) + b2, 0.0)
        # AvgPooling for hidden_rep[l+1]; dropout(0.5) == identity in eval mode.
        pooled_ref[:, (l + 1) * dp:(l + 2) * dp] = jnp.dot(
            pool, h, preferred_element_type=jnp.float32)

    # Fused prediction heads: one [GP,(L+1)*DP] x [(L+1)*DP,DP] matmul + summed bias.
    wp_cat = w_ref[2 * num_gin * dp:, :]
    bias_sum = v_ref[2 * num_gin:2 * num_gin + 1, :]
    o_ref[...] = (jnp.dot(pooled_ref[...], wp_cat,
                          preferred_element_type=jnp.float32) + bias_sum)


def _full_spec(shape):
    # whole-array block (grid has a single step)
    return pl.BlockSpec(shape, lambda i: (0,) * len(shape))


# ----------------------------- parameter setup ----------------------------- #

def _fold_bn(gamma, beta, mean, var, eps=1e-5):
    s = gamma / jnp.sqrt(var + eps)
    b = beta - mean * s
    return s.reshape(1, -1).astype(jnp.float32), b.reshape(1, -1).astype(jnp.float32)


def init_params(key, input_dim, hidden_dim, output_dim):
    num_layers = 5
    keys = iter(jax.random.split(key, 128))

    def nrm(shape, scale=0.1):
        return (scale * jax.random.normal(next(keys), shape)).astype(jnp.float32)

    def bn_params(dim):
        gamma = 1.0 + nrm((dim,))
        beta = nrm((dim,))
        mean = nrm((dim,))
        var = 1.0 + jnp.abs(nrm((dim,)))
        return _fold_bn(gamma, beta, mean, var)

    gin_layers = []
    for layer in range(num_layers - 1):
        din = input_dim if layer == 0 else hidden_dim
        w1 = nrm((din, hidden_dim))          # MLP.linears[0] (bias=False), transposed
        s1, b1 = bn_params(hidden_dim)       # MLP.batch_norm (eval, folded)
        w2 = nrm((hidden_dim, hidden_dim))   # MLP.linears[1] (bias=False), transposed
        s2, b2 = bn_params(hidden_dim)       # GIN_AvgPooling.batch_norms[layer]
        gin_layers.append((w1, s1, b1, w2, s2, b2))

    preds = []
    for layer in range(num_layers):
        din = input_dim if layer == 0 else hidden_dim
        w = nrm((din, output_dim))           # linear_prediction[layer].weight, transposed
        b = nrm((1, output_dim))             # linear_prediction[layer].bias
        preds.append((w, b))

    return {"gin_layers": gin_layers, "pred": preds}


def pack_params(params):
    """Fold BN scales into weights and pack everything into 2 lane-dense slabs."""
    gin = params["gin_layers"]
    preds = params["pred"]
    input_dim = gin[0][0].shape[0]
    hidden_dim = gin[0][0].shape[1]
    output_dim = preds[0][0].shape[1]
    dp = _round_up(max(input_dim, hidden_dim, output_dim), LANE)

    L = len(gin)
    # Matrix slab: w1_folded blocks | w2_folded blocks | prediction-head blocks.
    w_slab = jnp.zeros(((3 * L + 1) * dp, dp), jnp.float32)
    # Vector slab: interleaved (b1, b2) rows per layer + summed prediction bias row.
    v_slab = jnp.zeros((_round_up(2 * L + 1, SUBLANE), dp), jnp.float32)

    for l, (w1, s1, b1, w2, s2, b2) in enumerate(gin):
        w1f = (w1 * s1).astype(jnp.float32)      # fold MLP BN scale into columns
        w2f = (w2 * s2).astype(jnp.float32)      # fold outer BN scale into columns
        r1 = l * dp
        r2 = (L + l) * dp
        w_slab = w_slab.at[r1:r1 + w1f.shape[0], :w1f.shape[1]].set(w1f)
        w_slab = w_slab.at[r2:r2 + w2f.shape[0], :w2f.shape[1]].set(w2f)
        v_slab = v_slab.at[2 * l, :b1.shape[1]].set(b1[0])
        v_slab = v_slab.at[2 * l + 1, :b2.shape[1]].set(b2[0])

    bias_sum = jnp.zeros((dp,), jnp.float32)
    for i, (w, b) in enumerate(preds):
        r = (2 * L + i) * dp
        w_slab = w_slab.at[r:r + w.shape[0], :w.shape[1]].set(w)
        bias_sum = bias_sum.at[:b.shape[1]].add(b[0])
    v_slab = v_slab.at[2 * L, :].set(bias_sum)

    return {"w": w_slab, "v": v_slab, "num_gin": L,
            "out_dim": output_dim, "dp": dp}


# ------------------------------ forward pass ------------------------------- #

def gin_avgpooling_forward(a_hat, pool_mat, h, packed):
    w_slab, v_slab = packed["w"], packed["v"]
    L = packed["num_gin"]
    out_dim = packed["out_dim"]
    dp = packed["dp"]

    N = a_hat.shape[0]
    G = pool_mat.shape[0]
    d_in = h.shape[1]
    NP = _round_up(N, LANE)      # lane-dense A_hat / P last dim -> unmasked loads
    GP = _round_up(G, SUBLANE)

    # Zero-pad inputs (single jnp.pad each): pad nodes/graphs contribute nothing
    # because the padded rows/cols of A_hat and P are zero.
    a_p = jnp.pad(a_hat.astype(jnp.float32), ((0, NP - N), (0, NP - N)))
    p_p = jnp.pad(pool_mat.astype(jnp.float32), ((0, GP - G), (0, NP - N)))
    h_p = jnp.pad(h.astype(jnp.float32), ((0, NP - N), (0, dp - d_in)))

    kernel = functools.partial(_fused_gin_kernel, num_gin=L)
    args = (a_p, p_p, h_p, w_slab, v_slab)

    # TODO(synk): for per-batch invocation, add a leading batch axis to a/p/h/out and
    # run grid=(B,) with constant index_maps on the weight slabs (VMEM-resident weights).
    out_p = pl.pallas_call(
        kernel,
        out_shape=jax.ShapeDtypeStruct((GP, dp), jnp.float32),
        grid=(1,),
        in_specs=[_full_spec(x.shape) for x in args],
        out_specs=_full_spec((GP, dp)),
        scratch_shapes=[pltpu.VMEM((GP, (L + 1) * dp), jnp.float32)],
        compiler_params=pltpu.CompilerParams(dimension_semantics=("arbitrary",)),
    )(*args)

    # Keep the padded [GP, dp] slab downstream where possible; slice only at the edge.
    return out_p[:G, :out_dim]


def gin_avgpooling_reference(a_hat, pool_mat, h, params):
    """Pure-JAX reference with identical semantics (unpadded, unfused BN)."""
    hidden_rep = [h]
    for (w1, s1, b1, w2, s2, b2) in params["gin_layers"]:
        agg = a_hat @ h
        z = jnp.maximum((agg @ w1) * s1 + b1, 0.0)
        z = z @ w2
        h = jnp.maximum(z * s2 + b2, 0.0)
        hidden_rep.append(h)
    out_dim = params["pred"][0][0].shape[1]
    score = jnp.zeros((pool_mat.shape[0], out_dim), jnp.float32)
    for hr, (w, b) in zip(hidden_rep, params["pred"]):
        score = score + (pool_mat @ hr) @ w + b
    return score


# ---------------------------------- main ----------------------------------- #

if __name__ == "__main__":
    key = jax.random.PRNGKey(0)
    k_graph, k_feat, k_params = jax.random.split(key, 3)

    # Two graphs of 8 nodes each -> N=16 nodes total.
    N, G = 16, 2
    input_dim, hidden_dim, output_dim = 8, 32, 4

    # Block-diagonal random symmetric adjacency (no cross-graph edges).
    a = (jax.random.uniform(k_graph, (N, N)) > 0.6).astype(jnp.float32)
    a = jnp.triu(a, 1)
    a = a + a.T
    block_mask = jnp.zeros((N, N), jnp.float32)
    block_mask = block_mask.at[:8, :8].set(1.0).at[8:, 8:].set(1.0)
    a = a * block_mask
    a_hat = a + jnp.eye(N, dtype=jnp.float32)          # (1 + eps) * I with eps = 0

    # Average-pooling matrix P [G, N].
    pool_mat = jnp.zeros((G, N), jnp.float32)
    pool_mat = pool_mat.at[0, :8].set(1.0 / 8.0).at[1, 8:].set(1.0 / 8.0)

    h = jax.random.normal(k_feat, (N, input_dim), dtype=jnp.float32)
    params = init_params(k_params, input_dim, hidden_dim, output_dim)
    packed = pack_params(params)

    out = gin_avgpooling_forward(a_hat, pool_mat, h, packed)
    out = jax.block_until_ready(out)

    ref = gin_avgpooling_reference(a_hat, pool_mat, h, params)
    np.testing.assert_allclose(np.asarray(out), np.asarray(ref), rtol=1e-4, atol=1e-4)

    print("KERNEL_OK")
</pallas_src>

<mosaic_0001>
module attributes {stable_mosaic.version = 11 : i64} {
  func.func @_fused_gin_kernel(%arg0: i32, %arg1: memref<128x128xf32, #tpu.memory_space<vmem>>, %arg2: memref<8x128xf32, #tpu.memory_space<vmem>>, %arg3: memref<128x128xf32, #tpu.memory_space<vmem>>, %arg4: memref<1664x128xf32, #tpu.memory_space<vmem>>, %arg5: memref<16x128xf32, #tpu.memory_space<vmem>>, %arg6: memref<8x128xf32, #tpu.memory_space<vmem>>, %arg7: memref<8x640xf32, #tpu.memory_space<vmem>>) attributes {dimension_semantics = [#tpu.dimension_semantics<arbitrary>], iteration_bounds = array<i64: 1>, scalar_prefetch = 0 : i64, scratch_operands = 1 : i64, tpu.core_type = #tpu.core_type<tc>, window_params = [{pipeline_mode = #tpu.pipeline_mode<synchronous>, transform_indices = @transform_0, window_bounds = array<i64: 128, 128>}, {pipeline_mode = #tpu.pipeline_mode<synchronous>, transform_indices = @transform_1, window_bounds = array<i64: 8, 128>}, {pipeline_mode = #tpu.pipeline_mode<synchronous>, transform_indices = @transform_2, window_bounds = array<i64: 128, 128>}, {pipeline_mode = #tpu.pipeline_mode<synchronous>, transform_indices = @transform_3, window_bounds = array<i64: 1664, 128>}, {pipeline_mode = #tpu.pipeline_mode<synchronous>, transform_indices = @transform_4, window_bounds = array<i64: 16, 128>}, {pipeline_mode = #tpu.pipeline_mode<synchronous>, transform_indices = @transform_5, window_bounds = array<i64: 8, 128>}]} {
    %c0 = arith.constant 0 : index
    %c0_0 = arith.constant 0 : index
    %0 = vector.load %arg1[%c0, %c0_0] : memref<128x128xf32, #tpu.memory_space<vmem>>, vector<128x128xf32>
    %c0_1 = arith.constant 0 : index
    %c0_2 = arith.constant 0 : index
    %1 = vector.load %arg2[%c0_1, %c0_2] : memref<8x128xf32, #tpu.memory_space<vmem>>, vector<8x128xf32>
    %c0_3 = arith.constant 0 : index
    %c0_4 = arith.constant 0 : index
    %2 = vector.load %arg3[%c0_3, %c0_4] : memref<128x128xf32, #tpu.memory_space<vmem>>, vector<128x128xf32>
    %cst = arith.constant dense<0.000000e+00> : vector<8x128xf32>
    %3 = tpu.matmul %1, %2, %cst {dimension_numbers = #tpu.dot_dimension_numbers<[1], [0], [0], [1], [0, 0, 1, 1], [], []>} : vector<8x128xf32>, vector<128x128xf32>, vector<8x128xf32> -> vector<8x128xf32>
    %c0_5 = arith.constant 0 : index
    %c0_6 = arith.constant 0 : index
    %4 = vector.load %arg7[%c0_5, %c0_6] : memref<8x640xf32, #tpu.memory_space<vmem>>, vector<8x128xf32>
    tpu.vector_store %arg7[%c0_5, %c0_6], %3 {strides = array<i32>} : memref<8x640xf32, #tpu.memory_space<vmem>>, vector<8x128xf32>,
    %cst_7 = arith.constant dense<0.000000e+00> : vector<128x128xf32>
    %5 = tpu.matmul %0, %2, %cst_7 {dimension_numbers = #tpu.dot_dimension_numbers<[1], [0], [0], [1], [0, 0, 1, 1], [], []>} : vector<128x128xf32>, vector<128x128xf32>, vector<128x128xf32> -> vector<128x128xf32>
    %c0_8 = arith.constant 0 : index
    %c0_9 = arith.constant 0 : index
    %6 = vector.load %arg4[%c0_8, %c0_9] : memref<1664x128xf32, #tpu.memory_space<vmem>>, vector<128x128xf32>
    %c512 = arith.constant 512 : index
    %c0_10 = arith.constant 0 : index
    %7 = vector.load %arg4[%c512, %c0_10] : memref<1664x128xf32, #tpu.memory_space<vmem>>, vector<128x128xf32>
    %c0_11 = arith.constant 0 : index
    %c0_12 = arith.constant 0 : index
    %8 = vector.load %arg5[%c0_11, %c0_12] : memref<16x128xf32, #tpu.memory_space<vmem>>, vector<1x128xf32>
    %c1 = arith.constant 1 : index
    %c0_13 = arith.constant 0 : index
    %9 = vector.load %arg5[%c1, %c0_13] : memref<16x128xf32, #tpu.memory_space<vmem>>, vector<1x128xf32>
    %cst_14 = arith.constant dense<0.000000e+00> : vector<128x128xf32>
    %10 = tpu.matmul %5, %6, %cst_14 {dimension_numbers = #tpu.dot_dimension_numbers<[1], [0], [0], [1], [0, 0, 1, 1], [], []>} : vector<128x128xf32>, vector<128x128xf32>, vector<128x128xf32> -> vector<128x128xf32>
    %11 = vector.broadcast %8 : vector<1x128xf32> to vector<128x128xf32>
    %12 = arith.addf %10, %11 : vector<128x128xf32>
    %cst_15 = arith.constant 0.000000e+00 : f32
    %13 = vector.broadcast %cst_15 : f32 to vector<128x128xf32>
    %14 = arith.maximumf %12, %13 : vector<128x128xf32>
    %cst_16 = arith.constant dense<0.000000e+00> : vector<128x128xf32>
    %15 = tpu.matmul %14, %7, %cst_16 {dimension_numbers = #tpu.dot_dimension_numbers<[1], [0], [0], [1], [0, 0, 1, 1], [], []>} : vector<128x128xf32>, vector<128x128xf32>, vector<128x128xf32> -> vector<128x128xf32>
    %16 = vector.broadcast %9 : vector<1x128xf32> to vector<128x128xf32>
    %17 = arith.addf %15, %16 : vector<128x128xf32>
    %cst_17 = arith.constant 0.000000e+00 : f32
    %18 = vector.broadcast %cst_17 : f32 to vector<128x128xf32>
    %19 = arith.maximumf %17, %18 : vector<128x128xf32>
    %cst_18 = arith.constant dense<0.000000e+00> : vector<8x128xf32>
    %20 = tpu.matmul %1, %19, %cst_18 {dimension_numbers = #tpu.dot_dimension_numbers<[1], [0], [0], [1], [0, 0, 1, 1], [], []>} : vector<8x128xf32>, vector<128x128xf32>, vector<8x128xf32> -> vector<8x128xf32>
    %c0_19 = arith.constant 0 : index
    %c128 = arith.constant 128 : index
    %21 = vector.load %arg7[%c0_19, %c128] : memref<8x640xf32, #tpu.memory_space<vmem>>, vector<8x128xf32>
    tpu.vector_store %arg7[%c0_19, %c128], %20 {strides = array<i32>} : memref<8x640xf32, #tpu.memory_space<vmem>>, vector<8x128xf32>,
    %cst_20 = arith.constant dense<0.000000e+00> : vector<128x128xf32>
    %22 = tpu.matmul %0, %19, %cst_20 {dimension_numbers = #tpu.dot_dimension_numbers<[1], [0], [0], [1], [0, 0, 1, 1], [], []>} : vector<128x128xf32>, vector<128x128xf32>, vector<128x128xf32> -> vector<128x128xf32>
    %c128_21 = arith.constant 128 : index
    %c0_22 = arith.constant 0 : index
    %23 = vector.load %arg4[%c128_21, %c0_22] : memref<1664x128xf32, #tpu.memory_space<vmem>>, vector<128x128xf32>
    %c640 = arith.constant 640 : index
    %c0_23 = arith.constant 0 : index
    %24 = vector.load %arg4[%c640, %c0_23] : memref<1664x128xf32, #tpu.memory_space<vmem>>, vector<128x128xf32>
    %c2 = arith.constant 2 : index
    %c0_24 = arith.constant 0 : index
    %25 = vector.load %arg5[%c2, %c0_24] : memref<16x128xf32, #tpu.memory_space<vmem>>, vector<1x128xf32>
    %c3 = arith.constant 3 : index
    %c0_25 = arith.constant 0 : index
    %26 = vector.load %arg5[%c3, %c0_25] : memref<16x128xf32, #tpu.memory_space<vmem>>, vector<1x128xf32>
    %cst_26 = arith.constant dense<0.000000e+00> : vector<128x128xf32>
    %27 = tpu.matmul %22, %23, %cst_26 {dimension_numbers = #tpu.dot_dimension_numbers<[1], [0], [0], [1], [0, 0, 1, 1], [], []>} : vector<128x128xf32>, vector<128x128xf32>, vector<128x128xf32> -> vector<128x128xf32>
    %28 = vector.broadcast %25 : vector<1x128xf32> to vector<128x128xf32>
    %29 = arith.addf %27, %28 : vector<128x128xf32>
    %cst_27 = arith.constant 0.000000e+00 : f32
    %30 = vector.broadcast %cst_27 : f32 to vector<128x128xf32>
    %31 = arith.maximumf %29, %30 : vector<128x128xf32>
    %cst_28 = arith.constant dense<0.000000e+00> : vector<128x128xf32>
    %32 = tpu.matmul %31, %24, %cst_28 {dimension_numbers = #tpu.dot_dimension_numbers<[1], [0], [0], [1], [0, 0, 1, 1], [], []>} : vector<128x128xf32>, vector<128x128xf32>, vector<128x128xf32> -> vector<128x128xf32>
    %33 = vector.broadcast %26 : vector<1x128xf32> to vector<128x128xf32>
    %34 = arith.addf %32, %33 : vector<128x128xf32>
    %cst_29 = arith.constant 0.000000e+00 : f32
    %35 = vector.broadcast %cst_29 : f32 to vector<128x128xf32>
    %36 = arith.maximumf %34, %35 : vector<128x128xf32>
    %cst_30 = arith.constant dense<0.000000e+00> : vector<8x128xf32>
    %37 = tpu.matmul %1, %36, %cst_30 {dimension_numbers = #tpu.dot_dimension_numbers<[1], [0], [0], [1], [0, 0, 1, 1], [], []>} : vector<8x128xf32>, vector<128x128xf32>, vector<8x128xf32> -> vector<8x128xf32>
    %c0_31 = arith.constant 0 : index
    %c256 = arith.constant 256 : index
    %38 = vector.load %arg7[%c0_31, %c256] : memref<8x640xf32, #tpu.memory_space<vmem>>, vector<8x128xf32>
    tpu.vector_store %arg7[%c0_31, %c256], %37 {strides = array<i32>} : memref<8x640xf32, #tpu.memory_space<vmem>>, vector<8x128xf32>,
    %cst_32 = arith.constant dense<0.000000e+00> : vector<128x128xf32>
    %39 = tpu.matmul %0, %36, %cst_32 {dimension_numbers = #tpu.dot_dimension_numbers<[1], [0], [0], [1], [0, 0, 1, 1], [], []>} : vector<128x128xf32>, vector<128x128xf32>, vector<128x128xf32> -> vector<128x128xf32>
    %c256_33 = arith.constant 256 : index
    %c0_34 = arith.constant 0 : index
    %40 = vector.load %arg4[%c256_33, %c0_34] : memref<1664x128xf32, #tpu.memory_space<vmem>>, vector<128x128xf32>
    %c768 = arith.constant 768 : index
    %c0_35 = arith.constant 0 : index
    %41 = vector.load %arg4[%c768, %c0_35] : memref<1664x128xf32, #tpu.memory_space<vmem>>, vector<128x128xf32>
    %c4 = arith.constant 4 : index
    %c0_36 = arith.constant 0 : index
    %42 = vector.load %arg5[%c4, %c0_36] : memref<16x128xf32, #tpu.memory_space<vmem>>, vector<1x128xf32>
    %c5 = arith.constant 5 : index
    %c0_37 = arith.constant 0 : index
    %43 = vector.load %arg5[%c5, %c0_37] : memref<16x128xf32, #tpu.memory_space<vmem>>, vector<1x128xf32>
    %cst_38 = arith.constant dense<0.000000e+00> : vector<128x128xf32>
    %44 = tpu.matmul %39, %40, %cst_38 {dimension_numbers = #tpu.dot_dimension_numbers<[1], [0], [0], [1], [0, 0, 1, 1], [], []>} : vector<128x128xf32>, vector<128x128xf32>, vector<128x128xf32> -> vector<128x128xf32>
    %45 = vector.broadcast %42 : vector<1x128xf32> to vector<128x128xf32>
    %46 = arith.addf %44, %45 : vector<128x128xf32>
    %cst_39 = arith.constant 0.000000e+00 : f32
    %47 = vector.broadcast %cst_39 : f32 to vector<128x128xf32>
    %48 = arith.maximumf %46, %47 : vector<128x128xf32>
    %cst_40 = arith.constant dense<0.000000e+00> : vector<128x128xf32>
    %49 = tpu.matmul %48, %41, %cst_40 {dimension_numbers = #tpu.dot_dimension_numbers<[1], [0], [0], [1], [0, 0, 1, 1], [], []>} : vector<128x128xf32>, vector<128x128xf32>, vector<128x128xf32> -> vector<128x128xf32>
    %50 = vector.broadcast %43 : vector<1x128xf32> to vector<128x128xf32>
    %51 = arith.addf %49, %50 : vector<128x128xf32>
    %cst_41 = arith.constant 0.000000e+00 : f32
    %52 = vector.broadcast %cst_41 : f32 to vector<128x128xf32>
    %53 = arith.maximumf %51, %52 : vector<128x128xf32>
    %cst_42 = arith.constant dense<0.000000e+00> : vector<8x128xf32>
    %54 = tpu.matmul %1, %53, %cst_42 {dimension_numbers = #tpu.dot_dimension_numbers<[1], [0], [0], [1], [0, 0, 1, 1], [], []>} : vector<8x128xf32>, vector<128x128xf32>, vector<8x128xf32> -> vector<8x128xf32>
    %c0_43 = arith.constant 0 : index
    %c384 = arith.constant 384 : index
    %55 = vector.load %arg7[%c0_43, %c384] : memref<8x640xf32, #tpu.memory_space<vmem>>, vector<8x128xf32>
    tpu.vector_store %arg7[%c0_43, %c384], %54 {strides = array<i32>} : memref<8x640xf32, #tpu.memory_space<vmem>>, vector<8x128xf32>,
    %cst_44 = arith.constant dense<0.000000e+00> : vector<128x128xf32>
    %56 = tpu.matmul %0, %53, %cst_44 {dimension_numbers = #tpu.dot_dimension_numbers<[1], [0], [0], [1], [0, 0, 1, 1], [], []>} : vector<128x128xf32>, vector<128x128xf32>, vector<128x128xf32> -> vector<128x128xf32>
    %c384_45 = arith.constant 384 : index
    %c0_46 = arith.constant 0 : index
    %57 = vector.load %arg4[%c384_45, %c0_46] : memref<1664x128xf32, #tpu.memory_space<vmem>>, vector<128x128xf32>
    %c896 = arith.constant 896 : index
    %c0_47 = arith.constant 0 : index
    %58 = vector.load %arg4[%c896, %c0_47] : memref<1664x128xf32, #tpu.memory_space<vmem>>, vector<128x128xf32>
    %c6 = arith.constant 6 : index
    %c0_48 = arith.constant 0 : index
    %59 = vector.load %arg5[%c6, %c0_48] : memref<16x128xf32, #tpu.memory_space<vmem>>, vector<1x128xf32>
    %c7 = arith.constant 7 : index
    %c0_49 = arith.constant 0 : index
    %60 = vector.load %arg5[%c7, %c0_49] : memref<16x128xf32, #tpu.memory_space<vmem>>, vector<1x128xf32>
    %cst_50 = arith.constant dense<0.000000e+00> : vector<128x128xf32>
    %61 = tpu.matmul %56, %57, %cst_50 {dimension_numbers = #tpu.dot_dimension_numbers<[1], [0], [0], [1], [0, 0, 1, 1], [], []>} : vector<128x128xf32>, vector<128x128xf32>, vector<128x128xf32> -> vector<128x128xf32>
    %62 = vector.broadcast %59 : vector<1x128xf32> to vector<128x128xf32>
    %63 = arith.addf %61, %62 : vector<128x128xf32>
    %cst_51 = arith.constant 0.000000e+00 : f32
    %64 = vector.broadcast %cst_51 : f32 to vector<128x128xf32>
    %65 = arith.maximumf %63, %64 : vector<128x128xf32>
    %cst_52 = arith.constant dense<0.000000e+00> : vector<128x128xf32>
    %66 = tpu.matmul %65, %58, %cst_52 {dimension_numbers = #tpu.dot_dimension_numbers<[1], [0], [0], [1], [0, 0, 1, 1], [], []>} : vector<128x128xf32>, vector<128x128xf32>, vector<128x128xf32> -> vector<128x128xf32>
    %67 = vector.broadcast %60 : vector<1x128xf32> to vector<128x128xf32>
    %68 = arith.addf %66, %67 : vector<128x128xf32>
    %cst_53 = arith.constant 0.000000e+00 : f32
    %69 = vector.broadcast %cst_53 : f32 to vector<128x128xf32>
    %70 = arith.maximumf %68, %69 : vector<128x128xf32>
    %cst_54 = arith.constant dense<0.000000e+00> : vector<8x128xf32>
    %71 = tpu.matmul %1, %70, %cst_54 {dimension_numbers = #tpu.dot_dimension_numbers<[1], [0], [0], [1], [0, 0, 1, 1], [], []>} : vector<8x128xf32>, vector<128x128xf32>, vector<8x128xf32> -> vector<8x128xf32>
    %c0_55 = arith.constant 0 : index
    %c512_56 = arith.constant 512 : index
    %72 = vector.load %arg7[%c0_55, %c512_56] : memref<8x640xf32, #tpu.memory_space<vmem>>, vector<8x128xf32>
    tpu.vector_store %arg7[%c0_55, %c512_56], %71 {strides = array<i32>} : memref<8x640xf32, #tpu.memory_space<vmem>>, vector<8x128xf32>,
    %c1024 = arith.constant 1024 : index
    %c0_57 = arith.constant 0 : index
    %73 = vector.load %arg4[%c1024, %c0_57] : memref<1664x128xf32, #tpu.memory_space<vmem>>, vector<640x128xf32>
    %c8 = arith.constant 8 : index
    %c0_58 = arith.constant 0 : index
    %74 = vector.load %arg5[%c8, %c0_58] : memref<16x128xf32, #tpu.memory_space<vmem>>, vector<1x128xf32>
    %c0_59 = arith.constant 0 : index
    %c0_60 = arith.constant 0 : index
    %75 = vector.load %arg7[%c0_59, %c0_60] : memref<8x640xf32, #tpu.memory_space<vmem>>, vector<8x640xf32>
    %cst_61 = arith.constant dense<0.000000e+00> : vector<8x128xf32>
    %76 = tpu.matmul %75, %73, %cst_61 {dimension_numbers = #tpu.dot_dimension_numbers<[1], [0], [0], [1], [0, 0, 1, 1], [], []>} : vector<8x640xf32>, vector<640x128xf32>, vector<8x128xf32> -> vector<8x128xf32>
    %77 = vector.broadcast %74 : vector<1x128xf32> to vector<8x128xf32>
    %78 = arith.addf %76, %77 : vector<8x128xf32>
    %c0_62 = arith.constant 0 : index
    %c0_63 = arith.constant 0 : index
    %79 = vector.load %arg6[%c0_62, %c0_63] : memref<8x128xf32, #tpu.memory_space<vmem>>, vector<8x128xf32>
    tpu.vector_store %arg6[%c0_62, %c0_63], %78 {strides = array<i32>} : memref<8x128xf32, #tpu.memory_space<vmem>>, vector<8x128xf32>,
    return
  }
  func.func @transform_0(%arg0: i32) -> (i32, i32) {
    %c0_i32 = arith.constant 0 : i32
    %c0_i32_0 = arith.constant 0 : i32
    %c0_i32_1 = arith.constant 0 : i32
    return %c0_i32, %c0_i32_0 : i32, i32
  }
  func.func @transform_1(%arg0: i32) -> (i32, i32) {
    %c0_i32 = arith.constant 0 : i32
    %c0_i32_0 = arith.constant 0 : i32
    %c0_i32_1 = arith.constant 0 : i32
    return %c0_i32, %c0_i32_0 : i32, i32
  }
  func.func @transform_2(%arg0: i32) -> (i32, i32) {
    %c0_i32 = arith.constant 0 : i32
    %c0_i32_0 = arith.constant 0 : i32
    %c0_i32_1 = arith.constant 0 : i32
    return %c0_i32, %c0_i32_0 : i32, i32
  }
  func.func @transform_3(%arg0: i32) -> (i32, i32) {
    %c0_i32 = arith.constant 0 : i32
    %c0_i32_0 = arith.constant 0 : i32
    %c0_i32_1 = arith.constant 0 : i32
    return %c0_i32, %c0_i32_0 : i32, i32
  }
  func.func @transform_4(%arg0: i32) -> (i32, i32) {
    %c0_i32 = arith.constant 0 : i32
    %c0_i32_0 = arith.constant 0 : i32
    %c0_i32_1 = arith.constant 0 : i32
    return %c0_i32, %c0_i32_0 : i32, i32
  }
  func.func @transform_5(%arg0: i32) -> (i32, i32) {
    %c0_i32 = arith.constant 0 : i32
    %c0_i32_0 = arith.constant 0 : i32
    %c0_i32_1 = arith.constant 0 : i32
    return %c0_i32, %c0_i32_0 : i32, i32
  }
}

</mosaic_0001>

<llo_original>
// kernel: tpu_custom_call.1
$region0: #{tpu_custom_call.1}
  #allocation0 [shape = 'u32[]', space=smem, size = 0x4, offset = 0x4, fixed_abs, tag = 'smem constant byte address 0x4 - core index']
  #allocation1 [shape = 'u32[144,128]{1,0:T(1,128)}', space=vmem, size = 0x12000, scoped, tag = 'internal scratch']
  #allocation2 [shape = 'f32[8,640]{1,0:T(8,128)}', space=vmem, size = 0x5000, scoped, tag = 'scratch operand']
  %s0 = inlined_call_operand.hbm [shape: f32[128,128], index: 0, kind: input, shape index: {}]
  %s1 = inlined_call_operand.hbm [shape: f32[8,128], index: 1, kind: input, shape index: {}]
  %s2 = inlined_call_operand.hbm [shape: f32[128,128], index: 2, kind: input, shape index: {}]
  %s3 = inlined_call_operand.hbm [shape: f32[1664,128], index: 3, kind: input, shape index: {}]
  %s4 = inlined_call_operand.hbm [shape: f32[16,128], index: 4, kind: input, shape index: {}]
  %s5 = inlined_call_operand.hbm [shape: f32[8,128], index: 5, kind: output, shape index: {}]
  %s6 = sld [smem:[#allocation0]]
  $region50: #{tpu_custom_call.1} parent=0
    _
  %s8 = ssub.s32 1, %s6
  %s9 = scalar_select 0, %s8, %s6
  $region1: #{tpu_custom_call.1} parent=0
    #allocation3 [shape = 'u8[65536]{0}', space=vmem, size = 0x10000, scoped, tag = 'input window, operand 0, single buffered']
    #allocation4 [shape = 's32[1]{0}', space=sflag, size = 0x4, scoped, tag = 'scoped memory for tpu_custom_call.1']
    #allocation5 [shape = 's32[1]{0}', space=sflag, size = 0x4, scoped, tag = 'scoped memory for tpu_custom_call.1']
    #allocation6 [shape = 'u8[4096]{0}', space=vmem, size = 0x1000, scoped, tag = 'input window, operand 1, single buffered']
    #allocation7 [shape = 's32[1]{0}', space=sflag, size = 0x4, scoped, tag = 'scoped memory for tpu_custom_call.1']
    #allocation8 [shape = 'u8[65536]{0}', space=vmem, size = 0x10000, scoped, tag = 'input window, operand 2, single buffered']
    #allocation9 [shape = 'u8[851968]{0}', space=vmem, size = 0xd0000, scoped, tag = 'input window, operand 3, single buffered']
    #allocation10 [shape = 's32[1]{0}', space=sflag, size = 0x4, scoped, tag = 'scoped memory for tpu_custom_call.1']
    #allocation11 [shape = 'u8[8192]{0}', space=vmem, size = 0x2000, scoped, tag = 'input window, operand 4, single buffered']
    #allocation12 [shape = 'u8[4096]{0}', space=vmem, size = 0x1000, scoped, tag = 'output window, operand 0, single buffered']
    %10 = vsyncpa [#allocation4], 0
    %11 = vsyncpa [#allocation7], 0
    %12 = vsyncpa [#allocation10], 0
    %13 = vsyncpa [#allocation5], 0
    // Predicated region
    $region2: #{tpu_custom_call.1} parent=1 // pred_check
      _
    $region3: #{tpu_custom_call.1} parent=1 // pred_check_branch
      %15 = sbr.rel (0) target = $region5
    $region4: #{tpu_custom_call.1} parent=1 // pred_region
      %s17 = ssub.s32 2048, 2048
      %18 = vsyncadd [#allocation4], %s17
      %s19 = sshll.u32 [#allocation3], 4
      %s20 = int_to_ptr.vmem [resolvable:$true] %s19
      %25 = dma.hbm_to_vmem [thread:$0]  %s0, 2048, %s20, [#allocation4], 128, 128, 8
    $region5: #{tpu_custom_call.1} parent=1 // pred_fallthru
      _
    // Predicated region
    $region6: #{tpu_custom_call.1} parent=1 // pred_check
      _
    $region7: #{tpu_custom_call.1} parent=1 // pred_check_branch
      %27 = sbr.rel (0) target = $region9
    $region8: #{tpu_custom_call.1} parent=1 // pred_region
      %s29 = ssub.s32 128, 128
      %30 = vsyncadd [#allocation7], %s29
      %s32 = sshll.u32 [#allocation6], 4
      %s33 = int_to_ptr.vmem [resolvable:$true] %s32
      %35 = dma.hbm_to_vmem [thread:$0]  %s1, 128, %s33, [#allocation7]
    $region9: #{tpu_custom_call.1} parent=1 // pred_fallthru
      _
    // Predicated region
    $region10: #{tpu_custom_call.1} parent=1 // pred_check
      _
    $region11: #{tpu_custom_call.1} parent=1 // pred_check_branch
      %37 = sbr.rel (0) target = $region13
    $region12: #{tpu_custom_call.1} parent=1 // pred_region
      %s39 = ssub.s32 2048, 2048
      %40 = vsyncadd [#allocation7], %s39
      %s41 = sshll.u32 [#allocation8], 4
      %s42 = int_to_ptr.vmem [resolvable:$true] %s41
      %47 = dma.hbm_to_vmem [thread:$0]  %s2, 2048, %s42, [#allocation7], 128, 128, 8
    $region13: #{tpu_custom_call.1} parent=1 // pred_fallthru
      _
    // Predicated region
    $region14: #{tpu_custom_call.1} parent=1 // pred_check
      _
    $region15: #{tpu_custom_call.1} parent=1 // pred_check_branch
      %49 = sbr.rel (0) target = $region17
    $region16: #{tpu_custom_call.1} parent=1 // pred_region
      %s51 = ssub.s32 26624, 26624
      %52 = vsyncadd [#allocation10], %s51
      %s53 = sshll.u32 [#allocation9], 4
      %s54 = int_to_ptr.vmem [resolvable:$true] %s53
      %59 = dma.hbm_to_vmem [thread:$0]  %s3, 26624, %s54, [#allocation10], 128, 128, 8
    $region17: #{tpu_custom_call.1} parent=1 // pred_fallthru
      _
    // Predicated region
    $region18: #{tpu_custom_call.1} parent=1 // pred_check
      _
    $region19: #{tpu_custom_call.1} parent=1 // pred_check_branch
      %61 = sbr.rel (0) target = $region21
    $region20: #{tpu_custom_call.1} parent=1 // pred_region
      %s63 = ssub.s32 256, 256
      %64 = vsyncadd [#allocation10], %s63
      %s65 = sshll.u32 [#allocation11], 4
      %s66 = int_to_ptr.vmem [resolvable:$true] %s65
      %71 = dma.hbm_to_vmem [thread:$0]  %s4, 256, %s66, [#allocation10], 128, 128, 8
    $region21: #{tpu_custom_call.1} parent=1 // pred_fallthru
      _
    // Predicated region
    $region22: #{tpu_custom_call.1} parent=1 // pred_check
      _
    $region23: #{tpu_custom_call.1} parent=1 // pred_check_branch
      %73 = sbr.rel (0) target = $region25
    $region24: #{tpu_custom_call.1} parent=1 // pred_region
      %74 = dma.done [#allocation4], 2048
    $region25: #{tpu_custom_call.1} parent=1 // pred_fallthru
      _
    // Predicated region
    $region26: #{tpu_custom_call.1} parent=1 // pred_check
      _
    $region27: #{tpu_custom_call.1} parent=1 // pred_check_branch
      %76 = sbr.rel (0) target = $region29
    $region28: #{tpu_custom_call.1} parent=1 // pred_region
      %77 = dma.done [#allocation7], 128
    $region29: #{tpu_custom_call.1} parent=1 // pred_fallthru
      _
    // Predicated region
    $region30: #{tpu_custom_call.1} parent=1 // pred_check
      _
    $region31: #{tpu_custom_call.1} parent=1 // pred_check_branch
      %79 = sbr.rel (0) target = $region33
    $region32: #{tpu_custom_call.1} parent=1 // pred_region
      %80 = dma.done [#allocation7], 2048
    $region33: #{tpu_custom_call.1} parent=1 // pred_fallthru
      _
    // Predicated region
    $region34: #{tpu_custom_call.1} parent=1 // pred_check
      _
    $region35: #{tpu_custom_call.1} parent=1 // pred_check_branch
      %82 = sbr.rel (0) target = $region37
    $region36: #{tpu_custom_call.1} parent=1 // pred_region
      %83 = dma.done [#allocation10], 26624
    $region37: #{tpu_custom_call.1} parent=1 // pred_fallthru
      _
    // Predicated region
    $region38: #{tpu_custom_call.1} parent=1 // pred_check
      _
    $region39: #{tpu_custom_call.1} parent=1 // pred_check_branch
      %85 = sbr.rel (0) target = $region41
    $region40: #{tpu_custom_call.1} parent=1 // pred_region
      %86 = dma.done [#allocation10], 256
    $region41: #{tpu_custom_call.1} parent=1 // pred_fallthru
      _
    %v87 = vld [vmem:[#allocation3] sm:$0xff]
    %v88 = vld [vmem:[#allocation3 + $0x8] sm:$0xff]
    %v89 = vld [vmem:[#allocation3 + $0x10] sm:$0xff]
    %v90 = vld [vmem:[#allocation3 + $0x18] sm:$0xff]
    %v91 = vld [vmem:[#allocation3 + $0x20] sm:$0xff]
    %v92 = vld [vmem:[#allocation3 + $0x28] sm:$0xff]
    %v93 = vld [vmem:[#allocation3 + $0x30] sm:$0xff]
    %v94 = vld [vmem:[#allocation3 + $0x38] sm:$0xff]
    %v95 = vld [vmem:[#allocation3 + $0x40] sm:$0xff]
    %v96 = vld [vmem:[#allocation3 + $0x48] sm:$0xff]
    %v97 = vld [vmem:[#allocation3 + $0x50] sm:$0xff]
    %v98 = vld [vmem:[#allocation3 + $0x58] sm:$0xff]
    %v99 = vld [vmem:[#allocation3 + $0x60] sm:$0xff]
    %v100 = vld [vmem:[#allocation3 + $0x68] sm:$0xff]
    %v101 = vld [vmem:[#allocation3 + $0x70] sm:$0xff]
    %v102 = vld [vmem:[#allocation3 + $0x78] sm:$0xff]
    %v103 = vld [vmem:[#allocation6] sm:$0xff]
    %v104 = vld [vmem:[#allocation8] sm:$0xff]
    %v105 = vld [vmem:[#allocation8 + $0x8] sm:$0xff]
    %v106 = vld [vmem:[#allocation8 + $0x10] sm:$0xff]
    %v107 = vld [vmem:[#allocation8 + $0x18] sm:$0xff]
    %v108 = vld [vmem:[#allocation8 + $0x20] sm:$0xff]
    %v109 = vld [vmem:[#allocation8 + $0x28] sm:$0xff]
    %v110 = vld [vmem:[#allocation8 + $0x30] sm:$0xff]
    %v111 = vld [vmem:[#allocation8 + $0x38] sm:$0xff]
    %v112 = vld [vmem:[#allocation8 + $0x40] sm:$0xff]
    %v113 = vld [vmem:[#allocation8 + $0x48] sm:$0xff]
    %v114 = vld [vmem:[#allocation8 + $0x50] sm:$0xff]
    %v115 = vld [vmem:[#allocation8 + $0x58] sm:$0xff]
    %v116 = vld [vmem:[#allocation8 + $0x60] sm:$0xff]
    %v117 = vld [vmem:[#allocation8 + $0x68] sm:$0xff]
    %v118 = vld [vmem:[#allocation8 + $0x70] sm:$0xff]
    %v119 = vld [vmem:[#allocation8 + $0x78] sm:$0xff]
    %120 = vmatprep.subr.mxu0 0.0
    %121 = vmatpush1.msra.mxu0 %v119
    %122 = vmatprep.subr.mxu0 0.0
    %123 = vmatpush1.msra.mxu0 %v118
    %124 = vmatprep.subr.mxu0 0.0
    %125 = vmatpush1.msra.mxu0 %v117
    %126 = vmatprep.subr.mxu0 0.0
    %127 = vmatpush1.msra.mxu0 %v116
    %128 = vmatprep.subr.mxu0 0.0
    %129 = vmatpush1.msra.mxu0 %v115
    %130 = vmatprep.subr.mxu0 0.0
    %131 = vmatpush1.msra.mxu0 %v114
    %132 = vmatprep.subr.mxu0 0.0
    %133 = vmatpush1.msra.mxu0 %v113
    %134 = vmatprep.subr.mxu0 0.0
    %135 = vmatpush1.msra.mxu0 %v112
    %136 = vmatprep.subr.mxu0 0.0
    %137 = vmatpush1.msra.mxu0 %v111
    %138 = vmatprep.subr.mxu0 0.0
    %139 = vmatpush1.msra.mxu0 %v110
    %140 = vmatprep.subr.mxu0 0.0
    %141 = vmatpush1.msra.mxu0 %v109
    %142 = vmatprep.subr.mxu0 0.0
    %143 = vmatpush1.msra.mxu0 %v108
    %144 = vmatprep.subr.mxu0 0.0
    %145 = vmatpush1.msra.mxu0 %v107
    %146 = vmatprep.subr.mxu0 0.0
    %147 = vmatpush1.msra.mxu0 %v106
    %148 = vmatprep.subr.mxu0 0.0
    %149 = vmatpush1.msra.mxu0 %v105
    %150 = vmatprep.subr.mxu0 0.0
    %151 = vmatpush1.msra.mxu0 %v104
    %152 = vmatprep.subr.mxu0 0.0
    %153 = vmatpush2.msra.mxu0 0.0
    %154 = vmatprep.subr.mxu0 0.0
    %155 = vmatpush2.msra.mxu0 0.0
    %156 = vmatprep.subr.mxu0 0.0
    %157 = vmatpush2.msra.mxu0 0.0
    %158 = vmatprep.subr.mxu0 0.0
    %159 = vmatpush2.msra.mxu0 0.0
    %160 = vmatprep.subr.mxu0 0.0
    %161 = vmatpush2.msra.mxu0 0.0
    %162 = vmatprep.subr.mxu0 0.0
    %163 = vmatpush2.msra.mxu0 0.0
    %164 = vmatprep.subr.mxu0 0.0
    %165 = vmatpush2.msra.mxu0 0.0
    %166 = vmatprep.subr.mxu0 0.0
    %167 = vmatpush2.msra.mxu0 0.0
    %168 = vmatprep.subr.mxu0 0.0
    %169 = vmatpush2.msra.mxu0 0.0
    %170 = vmatprep.subr.mxu0 0.0
    %171 = vmatpush2.msra.mxu0 0.0
    %172 = vmatprep.subr.mxu0 0.0
    %173 = vmatpush2.msra.mxu0 0.0
    %174 = vmatprep.subr.mxu0 0.0
    %175 = vmatpush2.msra.mxu0 0.0
    %176 = vmatprep.subr.mxu0 0.0
    %177 = vmatpush2.msra.mxu0 0.0
    %178 = vmatprep.subr.mxu0 0.0
    %179 = vmatpush2.msra.mxu0 0.0
    %180 = vmatprep.subr.mxu0 0.0
    %181 = vmatpush2.msra.mxu0 0.0
    %182 = vmatprep.subr.mxu0 0.0
    %183 = vmatpush2.msra.mxu0 0.0
    %184 = vmatprep.mubr.f32.mxu0 0.0
    %185 = vmatmul.mubr.f32.gmra.mxu0 %v103
    %v186 = vpop.f32.mrf.mxu0
    %v187 = vadd.f32 0.0, %v186
    %v188 = vpop.f32.mrf.mxu0
    %189 = vdwg.mxu0
    %190 = vst [vmem:[#allocation2] sm:$0xff] %v187
    %191 = vmatprep.subr.mxu0 0.0
    %192 = vmatpush1.msra.mxu0 %v119
    %193 = vmatprep.subr.mxu0 0.0
    %194 = vmatpush1.msra.mxu0 %v118
    %195 = vmatprep.subr.mxu0 0.0
    %196 = vmatpush1.msra.mxu0 %v117
    %197 = vmatprep.subr.mxu0 0.0
    %198 = vmatpush1.msra.mxu0 %v116
    %199 = vmatprep.subr.mxu0 0.0
    %200 = vmatpush1.msra.mxu0 %v115
    %201 = vmatprep.subr.mxu0 0.0
    %202 = vmatpush1.msra.mxu0 %v114
    %203 = vmatprep.subr.mxu0 0.0
    %204 = vmatpush1.msra.mxu0 %v113
    %205 = vmatprep.subr.mxu0 0.0
    %206 = vmatpush1.msra.mxu0 %v112
    %207 = vmatprep.subr.mxu0 0.0
    %208 = vmatpush1.msra.mxu0 %v111
    %209 = vmatprep.subr.mxu0 0.0
    %210 = vmatpush1.msra.mxu0 %v110
    %211 = vmatprep.subr.mxu0 0.0
    %212 = vmatpush1.msra.mxu0 %v109
    %213 = vmatprep.subr.mxu0 0.0
    %214 = vmatpush1.msra.mxu0 %v108
    %215 = vmatprep.subr.mxu0 0.0
    %216 = vmatpush1.msra.mxu0 %v107
    %217 = vmatprep.subr.mxu0 0.0
    %218 = vmatpush1.msra.mxu0 %v106
    %219 = vmatprep.subr.mxu0 0.0
    %220 = vmatpush1.msra.mxu0 %v105
    %221 = vmatprep.subr.mxu0 0.0
    %222 = vmatpush1.msra.mxu0 %v104
    %223 = vmatprep.subr.mxu0 0.0
    %224 = vmatpush2.msra.mxu0 0.0
    %225 = vmatprep.subr.mxu0 0.0
    %226 = vmatpush2.msra.mxu0 0.0
    %227 = vmatprep.subr.mxu0 0.0
    %228 = vmatpush2.msra.mxu0 0.0
    %229 = vmatprep.subr.mxu0 0.0
    %230 = vmatpush2.msra.mxu0 0.0
    %231 = vmatprep.subr.mxu0 0.0
    %232 = vmatpush2.msra.mxu0 0.0
    %233 = vmatprep.subr.mxu0 0.0
    %234 = vmatpush2.msra.mxu0 0.0
    %235 = vmatprep.subr.mxu0 0.0
    %236 = vmatpush2.msra.mxu0 0.0
    %237 = vmatprep.subr.mxu0 0.0
    %238 = vmatpush2.msra.mxu0 0.0
    %239 = vmatprep.subr.mxu0 0.0
    %240 = vmatpush2.msra.mxu0 0.0
    %241 = vmatprep.subr.mxu0 0.0
    %242 = vmatpush2.msra.mxu0 0.0
    %243 = vmatprep.subr.mxu0 0.0
    %244 = vmatpush2.msra.mxu0 0.0
    %245 = vmatprep.subr.mxu0 0.0
    %246 = vmatpush2.msra.mxu0 0.0
    %247 = vmatprep.subr.mxu0 0.0
    %248 = vmatpush2.msra.mxu0 0.0
    %249 = vmatprep.subr.mxu0 0.0
    %250 = vmatpush2.msra.mxu0 0.0
    %251 = vmatprep.subr.mxu0 0.0
    %252 = vmatpush2.msra.mxu0 0.0
    %253 = vmatprep.subr.mxu0 0.0
    %254 = vmatpush2.msra.mxu0 0.0
    %255 = vmatprep.mubr.f32.mxu0 0.0
    %256 = vmatmul.mubr.f32.gmra.mxu0 %v87
    %v257 = vpop.f32.mrf.mxu0
    %v258 = vadd.f32 0.0, %v257
    %v259 = vpop.f32.mrf.mxu0
    %260 = vmatprep.mubr.f32.mxu0 0.0
    %261 = vmatmul.mubr.f32.gmra.mxu0 %v88
    %v262 = vpop.f32.mrf.mxu0
    %v263 = vadd.f32 0.0, %v262
    %v264 = vpop.f32.mrf.mxu0
    %265 = vmatprep.mubr.f32.mxu0 0.0
    %266 = vmatmul.mubr.f32.gmra.mxu0 %v89
    %v267 = vpop.f32.mrf.mxu0
    %v268 = vadd.f32 0.0, %v267
    %v269 = vpop.f32.mrf.mxu0
    %270 = vmatprep.mubr.f32.mxu0 0.0
    %271 = vmatmul.mubr.f32.gmra.mxu0 %v90
    %v272 = vpop.f32.mrf.mxu0
    %v273 = vadd.f32 0.0, %v272
    %v274 = vpop.f32.mrf.mxu0
    %275 = vmatprep.mubr.f32.mxu0 0.0
    %276 = vmatmul.mubr.f32.gmra.mxu0 %v91
    %v277 = vpop.f32.mrf.mxu0
    %v278 = vadd.f32 0.0, %v277
    %v279 = vpop.f32.mrf.mxu0
    %280 = vmatprep.mubr.f32.mxu0 0.0
    %281 = vmatmul.mubr.f32.gmra.mxu0 %v92
    %v282 = vpop.f32.mrf.mxu0
    %v283 = vadd.f32 0.0, %v282
    %v284 = vpop.f32.mrf.mxu0
    %285 = vmatprep.mubr.f32.mxu0 0.0
    %286 = vmatmul.mubr.f32.gmra.mxu0 %v93
    %v287 = vpop.f32.mrf.mxu0
    %v288 = vadd.f32 0.0, %v287
    %v289 = vpop.f32.mrf.mxu0
    %290 = vmatprep.mubr.f32.mxu0 0.0
    %291 = vmatmul.mubr.f32.gmra.mxu0 %v94
    %v292 = vpop.f32.mrf.mxu0
    %v293 = vadd.f32 0.0, %v292
    %v294 = vpop.f32.mrf.mxu0
    %295 = vmatprep.mubr.f32.mxu0 0.0
    %296 = vmatmul.mubr.f32.gmra.mxu0 %v95
    %v297 = vpop.f32.mrf.mxu0
    %v298 = vadd.f32 0.0, %v297
    %v299 = vpop.f32.mrf.mxu0
    %300 = vmatprep.mubr.f32.mxu0 0.0
    %301 = vmatmul.mubr.f32.gmra.mxu0 %v96
    %v302 = vpop.f32.mrf.mxu0
    %v303 = vadd.f32 0.0, %v302
    %v304 = vpop.f32.mrf.mxu0
    %305 = vmatprep.mubr.f32.mxu0 0.0
    %306 = vmatmul.mubr.f32.gmra.mxu0 %v97
    %v307 = vpop.f32.mrf.mxu0
    %v308 = vadd.f32 0.0, %v307
    %v309 = vpop.f32.mrf.mxu0
    %310 = vmatprep.mubr.f32.mxu0 0.0
    %311 = vmatmul.mubr.f32.gmra.mxu0 %v98
    %v312 = vpop.f32.mrf.mxu0
    %v313 = vadd.f32 0.0, %v312
    %v314 = vpop.f32.mrf.mxu0
    %315 = vmatprep.mubr.f32.mxu0 0.0
    %316 = vmatmul.mubr.f32.gmra.mxu0 %v99
    %v317 = vpop.f32.mrf.mxu0
    %v318 = vadd.f32 0.0, %v317
    %v319 = vpop.f32.mrf.mxu0
    %320 = vmatprep.mubr.f32.mxu0 0.0
    %321 = vmatmul.mubr.f32.gmra.mxu0 %v100
    %v322 = vpop.f32.mrf.mxu0
    %v323 = vadd.f32 0.0, %v322
    %v324 = vpop.f32.mrf.mxu0
    %325 = vmatprep.mubr.f32.mxu0 0.0
    %326 = vmatmul.mubr.f32.gmra.mxu0 %v101
    %v327 = vpop.f32.mrf.mxu0
    %v328 = vadd.f32 0.0, %v327
    %v329 = vpop.f32.mrf.mxu0
    %330 = vmatprep.mubr.f32.mxu0 0.0
    %331 = vmatmul.mubr.f32.gmra.mxu0 %v102
    %v332 = vpop.f32.mrf.mxu0
    %v333 = vadd.f32 0.0, %v332
    %v334 = vpop.f32.mrf.mxu0
    %335 = vdwg.mxu0
    %v336 = vld [vmem:[#allocation9] sm:$0xff]
    %v337 = vld [vmem:[#allocation9 + $0x8] sm:$0xff]
    %v338 = vld [vmem:[#allocation9 + $0x10] sm:$0xff]
    %v339 = vld [vmem:[#allocation9 + $0x18] sm:$0xff]
    %v340 = vld [vmem:[#allocation9 + $0x20] sm:$0xff]
    %v341 = vld [vmem:[#allocation9 + $0x28] sm:$0xff]
    %v342 = vld [vmem:[#allocation9 + $0x30] sm:$0xff]
    %v343 = vld [vmem:[#allocation9 + $0x38] sm:$0xff]
    %v344 = vld [vmem:[#allocation9 + $0x40] sm:$0xff]
    %v345 = vld [vmem:[#allocation9 + $0x48] sm:$0xff]
    %v346 = vld [vmem:[#allocation9 + $0x50] sm:$0xff]
    %v347 = vld [vmem:[#allocation9 + $0x58] sm:$0xff]
    %v348 = vld [vmem:[#allocation9 + $0x60] sm:$0xff]
    %v349 = vld [vmem:[#allocation9 + $0x68] sm:$0xff]
    %v350 = vld [vmem:[#allocation9 + $0x70] sm:$0xff]
    %v351 = vld [vmem:[#allocation9 + $0x78] sm:$0xff]
    %v352 = vld [vmem:[#allocation9 + $0x200] sm:$0xff]
    %v353 = vld [vmem:[#allocation9 + $0x208] sm:$0xff]
    %v354 = vld [vmem:[#allocation9 + $0x210] sm:$0xff]
    %v355 = vld [vmem:[#allocation9 + $0x218] sm:$0xff]
    %v356 = vld [vmem:[#allocation9 + $0x220] sm:$0xff]
    %v357 = vld [vmem:[#allocation9 + $0x228] sm:$0xff]
    %v358 = vld [vmem:[#allocation9 + $0x230] sm:$0xff]
    %v359 = vld [vmem:[#allocation9 + $0x238] sm:$0xff]
    %v360 = vld [vmem:[#allocation9 + $0x240] sm:$0xff]
    %v361 = vld [vmem:[#allocation9 + $0x248] sm:$0xff]
    %v362 = vld [vmem:[#allocation9 + $0x250] sm:$0xff]
    %v363 = vld [vmem:[#allocation9 + $0x258] sm:$0xff]
    %v364 = vld [vmem:[#allocation9 + $0x260] sm:$0xff]
    %v365 = vld [vmem:[#allocation9 + $0x268] sm:$0xff]
    %v366 = vld [vmem:[#allocation9 + $0x270] sm:$0xff]
    %v367 = vld [vmem:[#allocation9 + $0x278] sm:$0xff]
    %v368 = vld [vmem:[#allocation11] sm:$0x1]
    %v369 = vld [vmem:[#allocation11 + $0x1] sm:$0x1]
    %v370 = vlaneseq
    %v371 = vshrl.u32 %v370, 7
    %v372 = vsub.s32 0, %v371
    %v373 = vrot.slane %v368, %v372
    %374 = vmatprep.subr.mxu0 0.0
    %375 = vmatpush1.msra.mxu0 %v351
    %376 = vmatprep.subr.mxu0 0.0
    %377 = vmatpush1.msra.mxu0 %v350
    %378 = vmatprep.subr.mxu0 0.0
    %379 = vmatpush1.msra.mxu0 %v349
    %380 = vmatprep.subr.mxu0 0.0
    %381 = vmatpush1.msra.mxu0 %v348
    %382 = vmatprep.subr.mxu0 0.0
    %383 = vmatpush1.msra.mxu0 %v347
    %384 = vmatprep.subr.mxu0 0.0
    %385 = vmatpush1.msra.mxu0 %v346
    %386 = vmatprep.subr.mxu0 0.0
    %387 = vmatpush1.msra.mxu0 %v345
    %388 = vmatprep.subr.mxu0 0.0
    %389 = vmatpush1.msra.mxu0 %v344
    %390 = vmatprep.subr.mxu0 0.0
    %391 = vmatpush1.msra.mxu0 %v343
    %392 = vmatprep.subr.mxu0 0.0
    %393 = vmatpush1.msra.mxu0 %v342
    %394 = vmatprep.subr.mxu0 0.0
    %395 = vmatpush1.msra.mxu0 %v341
    %396 = vmatprep.subr.mxu0 0.0
    %397 = vmatpush1.msra.mxu0 %v340
    %398 = vmatprep.subr.mxu0 0.0
    %399 = vmatpush1.msra.mxu0 %v339
    %400 = vmatprep.subr.mxu0 0.0
    %401 = vmatpush1.msra.mxu0 %v338
    %402 = vmatprep.subr.mxu0 0.0
    %403 = vmatpush1.msra.mxu0 %v337
    %404 = vmatprep.subr.mxu0 0.0
    %405 = vmatpush1.msra.mxu0 %v336
    %406 = vmatprep.subr.mxu0 0.0
    %407 = vmatpush2.msra.mxu0 0.0
    %408 = vmatprep.subr.mxu0 0.0
    %409 = vmatpush2.msra.mxu0 0.0
    %410 = vmatprep.subr.mxu0 0.0
    %411 = vmatpush2.msra.mxu0 0.0
    %412 = vmatprep.subr.mxu0 0.0
    %413 = vmatpush2.msra.mxu0 0.0
    %414 = vmatprep.subr.mxu0 0.0
    %415 = vmatpush2.msra.mxu0 0.0
    %416 = vmatprep.subr.mxu0 0.0
    %417 = vmatpush2.msra.mxu0 0.0
    %418 = vmatprep.subr.mxu0 0.0
    %419 = vmatpush2.msra.mxu0 0.0
    %420 = vmatprep.subr.mxu0 0.0
    %421 = vmatpush2.msra.mxu0 0.0
    %422 = vmatprep.subr.mxu0 0.0
    %423 = vmatpush2.msra.mxu0 0.0
    %424 = vmatprep.subr.mxu0 0.0
    %425 = vmatpush2.msra.mxu0 0.0
    %426 = vmatprep.subr.mxu0 0.0
    %427 = vmatpush2.msra.mxu0 0.0
    %428 = vmatprep.subr.mxu0 0.0
    %429 = vmatpush2.msra.mxu0 0.0
    %430 = vmatprep.subr.mxu0 0.0
    %431 = vmatpush2.msra.mxu0 0.0
    %432 = vmatprep.subr.mxu0 0.0
    %433 = vmatpush2.msra.mxu0 0.0
    %434 = vmatprep.subr.mxu0 0.0
    %435 = vmatpush2.msra.mxu0 0.0
    %436 = vmatprep.subr.mxu0 0.0
    %437 = vmatpush2.msra.mxu0 0.0
    %438 = vmatprep.mubr.f32.mxu0 0.0
    %439 = vmatmul.mubr.f32.gmra.mxu0 %v258
    %v440 = vpop.f32.mrf.mxu0
    %v441 = vadd.f32 %v373, %v440
    %v442 = vpop.f32.mrf.mxu0
    %443 = vmatprep.mubr.f32.mxu0 0.0
    %444 = vmatmul.mubr.f32.gmra.mxu0 %v263
    %v445 = vpop.f32.mrf.mxu0
    %v446 = vadd.f32 %v373, %v445
    %v447 = vpop.f32.mrf.mxu0
    %448 = vmatprep.mubr.f32.mxu0 0.0
    %449 = vmatmul.mubr.f32.gmra.mxu0 %v268
    %v450 = vpop.f32.mrf.mxu0
    %v451 = vadd.f32 %v373, %v450
    %v452 = vpop.f32.mrf.mxu0
    %453 = vmatprep.mubr.f32.mxu0 0.0
    %454 = vmatmul.mubr.f32.gmra.mxu0 %v273
    %v455 = vpop.f32.mrf.mxu0
    %v456 = vadd.f32 %v373, %v455
    %v457 = vpop.f32.mrf.mxu0
    %458 = vmatprep.mubr.f32.mxu0 0.0
    %459 = vmatmul.mubr.f32.gmra.mxu0 %v278
    %v460 = vpop.f32.mrf.mxu0
    %v461 = vadd.f32 %v373, %v460
    %v462 = vpop.f32.mrf.mxu0
    %463 = vmatprep.mubr.f32.mxu0 0.0
    %464 = vmatmul.mubr.f32.gmra.mxu0 %v283
    %v465 = vpop.f32.mrf.mxu0
    %v466 = vadd.f32 %v373, %v465
    %v467 = vpop.f32.mrf.mxu0
    %468 = vmatprep.mubr.f32.mxu0 0.0
    %469 = vmatmul.mubr.f32.gmra.mxu0 %v288
    %v470 = vpop.f32.mrf.mxu0
    %v471 = vadd.f32 %v373, %v470
    %v472 = vpop.f32.mrf.mxu0
    %473 = vmatprep.mubr.f32.mxu0 0.0
    %474 = vmatmul.mubr.f32.gmra.mxu0 %v293
    %v475 = vpop.f32.mrf.mxu0
    %v476 = vadd.f32 %v373, %v475
    %v477 = vpop.f32.mrf.mxu0
    %478 = vmatprep.mubr.f32.mxu0 0.0
    %479 = vmatmul.mubr.f32.gmra.mxu0 %v298
    %v480 = vpop.f32.mrf.mxu0
    %v481 = vadd.f32 %v373, %v480
    %v482 = vpop.f32.mrf.mxu0
    %483 = vmatprep.mubr.f32.mxu0 0.0
    %484 = vmatmul.mubr.f32.gmra.mxu0 %v303
    %v485 = vpop.f32.mrf.mxu0
    %v486 = vadd.f32 %v373, %v485
    %v487 = vpop.f32.mrf.mxu0
    %488 = vmatprep.mubr.f32.mxu0 0.0
    %489 = vmatmul.mubr.f32.gmra.mxu0 %v308
    %v490 = vpop.f32.mrf.mxu0
    %v491 = vadd.f32 %v373, %v490
    %v492 = vpop.f32.mrf.mxu0
    %493 = vmatprep.mubr.f32.mxu0 0.0
    %494 = vmatmul.mubr.f32.gmra.mxu0 %v313
    %v495 = vpop.f32.mrf.mxu0
    %v496 = vadd.f32 %v373, %v495
    %v497 = vpop.f32.mrf.mxu0
    %498 = vmatprep.mubr.f32.mxu0 0.0
    %499 = vmatmul.mubr.f32.gmra.mxu0 %v318
    %v500 = vpop.f32.mrf.mxu0
    %v501 = vadd.f32 %v373, %v500
    %v502 = vpop.f32.mrf.mxu0
    %503 = vmatprep.mubr.f32.mxu0 0.0
    %504 = vmatmul.mubr.f32.gmra.mxu0 %v323
    %v505 = vpop.f32.mrf.mxu0
    %v506 = vadd.f32 %v373, %v505
    %v507 = vpop.f32.mrf.mxu0
    %508 = vmatprep.mubr.f32.mxu0 0.0
    %509 = vmatmul.mubr.f32.gmra.mxu0 %v328
    %v510 = vpop.f32.mrf.mxu0
    %v511 = vadd.f32 %v373, %v510
    %v512 = vpop.f32.mrf.mxu0
    %513 = vmatprep.mubr.f32.mxu0 0.0
    %514 = vmatmul.mubr.f32.gmra.mxu0 %v333
    %v515 = vpop.f32.mrf.mxu0
    %v516 = vadd.f32 %v373, %v515
    %v517 = vpop.f32.mrf.mxu0
    %518 = vdwg.mxu0
    %v519 = vmax.f32 %v441, 0.0
    %v520 = vmax.f32 %v446, 0.0
    %v521 = vmax.f32 %v451, 0.0
    %v522 = vmax.f32 %v456, 0.0
    %v523 = vmax.f32 %v461, 0.0
    %v524 = vmax.f32 %v466, 0.0
    %v525 = vmax.f32 %v471, 0.0
    %v526 = vmax.f32 %v476, 0.0
    %v527 = vmax.f32 %v481, 0.0
    %v528 = vmax.f32 %v486, 0.0
    %v529 = vmax.f32 %v491, 0.0
    %v530 = vmax.f32 %v496, 0.0
    %v531 = vmax.f32 %v501, 0.0
    %v532 = vmax.f32 %v506, 0.0
    %v533 = vmax.f32 %v511, 0.0
    %v534 = vmax.f32 %v516, 0.0
    %v535 = vlaneseq
    %v536 = vshrl.u32 %v535, 7
    %v537 = vsub.s32 0, %v536
    %v538 = vrot.slane %v369, %v537
    %539 = vmatprep.subr.mxu0 0.0
    %540 = vmatpush1.msra.mxu0 %v367
    %541 = vmatprep.subr.mxu0 0.0
    %542 = vmatpush1.msra.mxu0 %v366
    %543 = vmatprep.subr.mxu0 0.0
    %544 = vmatpush1.msra.mxu0 %v365
    %545 = vmatprep.subr.mxu0 0.0
    %546 = vmatpush1.msra.mxu0 %v364
    %547 = vmatprep.subr.mxu0 0.0
    %548 = vmatpush1.msra.mxu0 %v363
    %549 = vmatprep.subr.mxu0 0.0
    %550 = vmatpush1.msra.mxu0 %v362
    %551 = vmatprep.subr.mxu0 0.0
    %552 = vmatpush1.msra.mxu0 %v361
    %553 = vmatprep.subr.mxu0 0.0
    %554 = vmatpush1.msra.mxu0 %v360
    %555 = vmatprep.subr.mxu0 0.0
    %556 = vmatpush1.msra.mxu0 %v359
    %557 = vmatprep.subr.mxu0 0.0
    %558 = vmatpush1.msra.mxu0 %v358
    %559 = vmatprep.subr.mxu0 0.0
    %560 = vmatpush1.msra.mxu0 %v357
    %561 = vmatprep.subr.mxu0 0.0
    %562 = vmatpush1.msra.mxu0 %v356
    %563 = vmatprep.subr.mxu0 0.0
    %564 = vmatpush1.msra.mxu0 %v355
    %565 = vmatprep.subr.mxu0 0.0
    %566 = vmatpush1.msra.mxu0 %v354
    %567 = vmatprep.subr.mxu0 0.0
    %568 = vmatpush1.msra.mxu0 %v353
    %569 = vmatprep.subr.mxu0 0.0
    %570 = vmatpush1.msra.mxu0 %v352
    %571 = vmatprep.subr.mxu0 0.0
    %572 = vmatpush2.msra.mxu0 0.0
    %573 = vmatprep.subr.mxu0 0.0
    %574 = vmatpush2.msra.mxu0 0.0
    %575 = vmatprep.subr.mxu0 0.0
    %576 = vmatpush2.msra.mxu0 0.0
    %577 = vmatprep.subr.mxu0 0.0
    %578 = vmatpush2.msra.mxu0 0.0
    %579 = vmatprep.subr.mxu0 0.0
    %580 = vmatpush2.msra.mxu0 0.0
    %581 = vmatprep.subr.mxu0 0.0
    %582 = vmatpush2.msra.mxu0 0.0
    %583 = vmatprep.subr.mxu0 0.0
    %584 = vmatpush2.msra.mxu0 0.0
    %585 = vmatprep.subr.mxu0 0.0
    %586 = vmatpush2.msra.mxu0 0.0
    %587 = vmatprep.subr.mxu0 0.0
    %588 = vmatpush2.msra.mxu0 0.0
    %589 = vmatprep.subr.mxu0 0.0
    %590 = vmatpush2.msra.mxu0 0.0
    %591 = vmatprep.subr.mxu0 0.0
    %592 = vmatpush2.msra.mxu0 0.0
    %593 = vmatprep.subr.mxu0 0.0
    %594 = vmatpush2.msra.mxu0 0.0
    %595 = vmatprep.subr.mxu0 0.0
    %596 = vmatpush2.msra.mxu0 0.0
    %597 = vmatprep.subr.mxu0 0.0
    %598 = vmatpush2.msra.mxu0 0.0
    %599 = vmatprep.subr.mxu0 0.0
    %600 = vmatpush2.msra.mxu0 0.0
    %601 = vmatprep.subr.mxu0 0.0
    %602 = vmatpush2.msra.mxu0 0.0
    %603 = vmatprep.mubr.f32.mxu0 0.0
    %604 = vmatmul.mubr.f32.gmra.mxu0 %v519
    %v605 = vpop.f32.mrf.mxu0
    %v606 = vadd.f32 %v538, %v605
    %v607 = vpop.f32.mrf.mxu0
    %608 = vmatprep.mubr.f32.mxu0 0.0
    %609 = vmatmul.mubr.f32.gmra.mxu0 %v520
    %v610 = vpop.f32.mrf.mxu0
    %v611 = vadd.f32 %v538, %v610
    %v612 = vpop.f32.mrf.mxu0
    %613 = vmatprep.mubr.f32.mxu0 0.0
    %614 = vmatmul.mubr.f32.gmra.mxu0 %v521
    %v615 = vpop.f32.mrf.mxu0
    %v616 = vadd.f32 %v538, %v615
    %v617 = vpop.f32.mrf.mxu0
    %618 = vmatprep.mubr.f32.mxu0 0.0
    %619 = vmatmul.mubr.f32.gmra.mxu0 %v522
    %v620 = vpop.f32.mrf.mxu0
    %v621 = vadd.f32 %v538, %v620
    %v622 = vpop.f32.mrf.mxu0
    %623 = vmatprep.mubr.f32.mxu0 0.0
    %624 = vmatmul.mubr.f32.gmra.mxu0 %v523
    %v625 = vpop.f32.mrf.mxu0
    %v626 = vadd.f32 %v538, %v625
    %v627 = vpop.f32.mrf.mxu0
    %628 = vmatprep.mubr.f32.mxu0 0.0
    %629 = vmatmul.mubr.f32.gmra.mxu0 %v524
    %v630 = vpop.f32.mrf.mxu0
    %v631 = vadd.f32 %v538, %v630
    %v632 = vpop.f32.mrf.mxu0
    %633 = vmatprep.mubr.f32.mxu0 0.0
    %634 = vmatmul.mubr.f32.gmra.mxu0 %v525
    %v635 = vpop.f32.mrf.mxu0
    %v636 = vadd.f32 %v538, %v635
    %v637 = vpop.f32.mrf.mxu0
    %638 = vmatprep.mubr.f32.mxu0 0.0
    %639 = vmatmul.mubr.f32.gmra.mxu0 %v526
    %v640 = vpop.f32.mrf.mxu0
    %v641 = vadd.f32 %v538, %v640
    %v642 = vpop.f32.mrf.mxu0
    %643 = vmatprep.mubr.f32.mxu0 0.0
    %644 = vmatmul.mubr.f32.gmra.mxu0 %v527
    %v645 = vpop.f32.mrf.mxu0
    %v646 = vadd.f32 %v538, %v645
    %v647 = vpop.f32.mrf.mxu0
    %648 = vmatprep.mubr.f32.mxu0 0.0
    %649 = vmatmul.mubr.f32.gmra.mxu0 %v528
    %v650 = vpop.f32.mrf.mxu0
    %v651 = vadd.f32 %v538, %v650
    %v652 = vpop.f32.mrf.mxu0
    %653 = vmatprep.mubr.f32.mxu0 0.0
    %654 = vmatmul.mubr.f32.gmra.mxu0 %v529
    %v655 = vpop.f32.mrf.mxu0
    %v656 = vadd.f32 %v538, %v655
    %v657 = vpop.f32.mrf.mxu0
    %658 = vmatprep.mubr.f32.mxu0 0.0
    %659 = vmatmul.mubr.f32.gmra.mxu0 %v530
    %v660 = vpop.f32.mrf.mxu0
    %v661 = vadd.f32 %v538, %v660
    %v662 = vpop.f32.mrf.mxu0
    %663 = vmatprep.mubr.f32.mxu0 0.0
    %664 = vmatmul.mubr.f32.gmra.mxu0 %v531
    %v665 = vpop.f32.mrf.mxu0
    %v666 = vadd.f32 %v538, %v665
    %v667 = vpop.f32.mrf.mxu0
    %668 = vmatprep.mubr.f32.mxu0 0.0
    %669 = vmatmul.mubr.f32.gmra.mxu0 %v532
    %v670 = vpop.f32.mrf.mxu0
    %v671 = vadd.f32 %v538, %v670
    %v672 = vpop.f32.mrf.mxu0
    %673 = vmatprep.mubr.f32.mxu0 0.0
    %674 = vmatmul.mubr.f32.gmra.mxu0 %v533
    %v675 = vpop.f32.mrf.mxu0
    %v676 = vadd.f32 %v538, %v675
    %v677 = vpop.f32.mrf.mxu0
    %678 = vmatprep.mubr.f32.mxu0 0.0
    %679 = vmatmul.mubr.f32.gmra.mxu0 %v534
    %v680 = vpop.f32.mrf.mxu0
    %v681 = vadd.f32 %v538, %v680
    %v682 = vpop.f32.mrf.mxu0
    %683 = vdwg.mxu0
    %v684 = vmax.f32 %v606, 0.0
    %v685 = vmax.f32 %v611, 0.0
    %v686 = vmax.f32 %v616, 0.0
    %v687 = vmax.f32 %v621, 0.0
    %v688 = vmax.f32 %v626, 0.0
    %v689 = vmax.f32 %v631, 0.0
    %v690 = vmax.f32 %v636, 0.0
    %v691 = vmax.f32 %v641, 0.0
    %v692 = vmax.f32 %v646, 0.0
    %v693 = vmax.f32 %v651, 0.0
    %v694 = vmax.f32 %v656, 0.0
    %v695 = vmax.f32 %v661, 0.0
    %v696 = vmax.f32 %v666, 0.0
    %v697 = vmax.f32 %v671, 0.0
    %v698 = vmax.f32 %v676, 0.0
    %v699 = vmax.f32 %v681, 0.0
    %700 = vmatprep.subr.mxu0 0.0
    %701 = vmatpush1.msra.mxu0 %v699
    %702 = vmatprep.subr.mxu0 0.0
    %703 = vmatpush1.msra.mxu0 %v698
    %704 = vmatprep.subr.mxu0 0.0
    %705 = vmatpush1.msra.mxu0 %v697
    %706 = vmatprep.subr.mxu0 0.0
    %707 = vmatpush1.msra.mxu0 %v696
    %708 = vmatprep.subr.mxu0 0.0
    %709 = vmatpush1.msra.mxu0 %v695
    %710 = vmatprep.subr.mxu0 0.0
    %711 = vmatpush1.msra.mxu0 %v694
    %712 = vmatprep.subr.mxu0 0.0
    %713 = vmatpush1.msra.mxu0 %v693
    %714 = vmatprep.subr.mxu0 0.0
    %715 = vmatpush1.msra.mxu0 %v692
    %716 = vmatprep.subr.mxu0 0.0
    %717 = vmatpush1.msra.mxu0 %v691
    %718 = vmatprep.subr.mxu0 0.0
    %719 = vmatpush1.msra.mxu0 %v690
    %720 = vmatprep.subr.mxu0 0.0
    %721 = vmatpush1.msra.mxu0 %v689
    %722 = vmatprep.subr.mxu0 0.0
    %723 = vmatpush1.msra.mxu0 %v688
    %724 = vmatprep.subr.mxu0 0.0
    %725 = vmatpush1.msra.mxu0 %v687
    %726 = vmatprep.subr.mxu0 0.0
    %727 = vmatpush1.msra.mxu0 %v686
    %728 = vmatprep.subr.mxu0 0.0
    %729 = vmatpush1.msra.mxu0 %v685
    %730 = vmatprep.subr.mxu0 0.0
    %731 = vmatpush1.msra.mxu0 %v684
    %732 = vmatprep.subr.mxu0 0.0
    %733 = vmatpush2.msra.mxu0 0.0
    %734 = vmatprep.subr.mxu0 0.0
    %735 = vmatpush2.msra.mxu0 0.0
    %736 = vmatprep.subr.mxu0 0.0
    %737 = vmatpush2.msra.mxu0 0.0
    %738 = vmatprep.subr.mxu0 0.0
    %739 = vmatpush2.msra.mxu0 0.0
    %740 = vmatprep.subr.mxu0 0.0
    %741 = vmatpush2.msra.mxu0 0.0
    %742 = vmatprep.subr.mxu0 0.0
    %743 = vmatpush2.msra.mxu0 0.0
    %744 = vmatprep.subr.mxu0 0.0
    %745 = vmatpush2.msra.mxu0 0.0
    %746 = vmatprep.subr.mxu0 0.0
    %747 = vmatpush2.msra.mxu0 0.0
    %748 = vmatprep.subr.mxu0 0.0
    %749 = vmatpush2.msra.mxu0 0.0
    %750 = vmatprep.subr.mxu0 0.0
    %751 = vmatpush2.msra.mxu0 0.0
    %752 = vmatprep.subr.mxu0 0.0
    %753 = vmatpush2.msra.mxu0 0.0
    %754 = vmatprep.subr.mxu0 0.0
    %755 = vmatpush2.msra.mxu0 0.0
    %756 = vmatprep.subr.mxu0 0.0
    %757 = vmatpush2.msra.mxu0 0.0
    %758 = vmatprep.subr.mxu0 0.0
    %759 = vmatpush2.msra.mxu0 0.0
    %760 = vmatprep.subr.mxu0 0.0
    %761 = vmatpush2.msra.mxu0 0.0
    %762 = vmatprep.subr.mxu0 0.0
    %763 = vmatpush2.msra.mxu0 0.0
    %764 = vmatprep.mubr.f32.mxu0 0.0
    %765 = vmatmul.mubr.f32.gmra.mxu0 %v103
    %v766 = vpop.f32.mrf.mxu0
    %v767 = vadd.f32 0.0, %v766
    %v768 = vpop.f32.mrf.mxu0
    %769 = vdwg.mxu0
    %770 = vst [vmem:[#allocation2 + $0x8] sm:$0xff] %v767
    %771 = vmatprep.subr.mxu0 0.0
    %772 = vmatpush1.msra.mxu0 %v699
    %773 = vmatprep.subr.mxu0 0.0
    %774 = vmatpush1.msra.mxu0 %v698
    %775 = vmatprep.subr.mxu0 0.0
    %776 = vmatpush1.msra.mxu0 %v697
    %777 = vmatprep.subr.mxu0 0.0
    %778 = vmatpush1.msra.mxu0 %v696
    %779 = vmatprep.subr.mxu0 0.0
    %780 = vmatpush1.msra.mxu0 %v695
    %781 = vmatprep.subr.mxu0 0.0
    %782 = vmatpush1.msra.mxu0 %v694
    %783 = vmatprep.subr.mxu0 0.0
    %784 = vmatpush1.msra.mxu0 %v693
    %785 = vmatprep.subr.mxu0 0.0
    %786 = vmatpush1.msra.mxu0 %v692
    %787 = vmatprep.subr.mxu0 0.0
    %788 = vmatpush1.msra.mxu0 %v691
    %789 = vmatprep.subr.mxu0 0.0
    %790 = vmatpush1.msra.mxu0 %v690
    %791 = vmatprep.subr.mxu0 0.0
    %792 = vmatpush1.msra.mxu0 %v689
    %793 = vmatprep.subr.mxu0 0.0
    %794 = vmatpush1.msra.mxu0 %v688
    %795 = vmatprep.subr.mxu0 0.0
    %796 = vmatpush1.msra.mxu0 %v687
    %797 = vmatprep.subr.mxu0 0.0
    %798 = vmatpush1.msra.mxu0 %v686
    %799 = vmatprep.subr.mxu0 0.0
    %800 = vmatpush1.msra.mxu0 %v685
    %801 = vmatprep.subr.mxu0 0.0
    %802 = vmatpush1.msra.mxu0 %v684
    %803 = vmatprep.subr.mxu0 0.0
    %804 = vmatpush2.msra.mxu0 0.0
    %805 = vmatprep.subr.mxu0 0.0
    %806 = vmatpush2.msra.mxu0 0.0
    %807 = vmatprep.subr.mxu0 0.0
    %808 = vmatpush2.msra.mxu0 0.0
    %809 = vmatprep.subr.mxu0 0.0
    %810 = vmatpush2.msra.mxu0 0.0
    %811 = vmatprep.subr.mxu0 0.0
    %812 = vmatpush2.msra.mxu0 0.0
    %813 = vmatprep.subr.mxu0 0.0
    %814 = vmatpush2.msra.mxu0 0.0
    %815 = vmatprep.subr.mxu0 0.0
    %816 = vmatpush2.msra.mxu0 0.0
    %817 = vmatprep.subr.mxu0 0.0
    %818 = vmatpush2.msra.mxu0 0.0
    %819 = vmatprep.subr.mxu0 0.0
    %820 = vmatpush2.msra.mxu0 0.0
    %821 = vmatprep.subr.mxu0 0.0
    %822 = vmatpush2.msra.mxu0 0.0
    %823 = vmatprep.subr.mxu0 0.0
    %824 = vmatpush2.msra.mxu0 0.0
    %825 = vmatprep.subr.mxu0 0.0
    %826 = vmatpush2.msra.mxu0 0.0
    %827 = vmatprep.subr.mxu0 0.0
    %828 = vmatpush2.msra.mxu0 0.0
    %829 = vmatprep.subr.mxu0 0.0
    %830 = vmatpush2.msra.mxu0 0.0
    %831 = vmatprep.subr.mxu0 0.0
    %832 = vmatpush2.msra.mxu0 0.0
    %833 = vmatprep.subr.mxu0 0.0
    %834 = vmatpush2.msra.mxu0 0.0
    %835 = vmatprep.mubr.f32.mxu0 0.0
    %836 = vmatmul.mubr.f32.gmra.mxu0 %v87
    %v837 = vpop.f32.mrf.mxu0
    %v838 = vadd.f32 0.0, %v837
    %v839 = vpop.f32.mrf.mxu0
    %840 = vmatprep.mubr.f32.mxu0 0.0
    %841 = vmatmul.mubr.f32.gmra.mxu0 %v88
    %v842 = vpop.f32.mrf.mxu0
    %v843 = vadd.f32 0.0, %v842
    %v844 = vpop.f32.mrf.mxu0
    %845 = vmatprep.mubr.f32.mxu0 0.0
    %846 = vmatmul.mubr.f32.gmra.mxu0 %v89
    %v847 = vpop.f32.mrf.mxu0
    %v848 = vadd.f32 0.0, %v847
    %v849 = vpop.f32.mrf.mxu0
    %850 = vmatprep.mubr.f32.mxu0 0.0
    %851 = vmatmul.mubr.f32.gmra.mxu0 %v90
    %v852 = vpop.f32.mrf.mxu0
    %v853 = vadd.f32 0.0, %v852
    %v854 = vpop.f32.mrf.mxu0
    %855 = vmatprep.mubr.f32.mxu0 0.0
    %856 = vmatmul.mubr.f32.gmra.mxu0 %v91
    %v857 = vpop.f32.mrf.mxu0
    %v858 = vadd.f32 0.0, %v857
    %v859 = vpop.f32.mrf.mxu0
    %860 = vmatprep.mubr.f32.mxu0 0.0
    %861 = vmatmul.mubr.f32.gmra.mxu0 %v92
    %v862 = vpop.f32.mrf.mxu0
    %v863 = vadd.f32 0.0, %v862
    %v864 = vpop.f32.mrf.mxu0
    %865 = vmatprep.mubr.f32.mxu0 0.0
    %866 = vmatmul.mubr.f32.gmra.mxu0 %v93
    %v867 = vpop.f32.mrf.mxu0
    %v868 = vadd.f32 0.0, %v867
    %v869 = vpop.f32.mrf.mxu0
    %870 = vmatprep.mubr.f32.mxu0 0.0
    %871 = vmatmul.mubr.f32.gmra.mxu0 %v94
    %v872 = vpop.f32.mrf.mxu0
    %v873 = vadd.f32 0.0, %v872
    %v874 = vpop.f32.mrf.mxu0
    %875 = vmatprep.mubr.f32.mxu0 0.0
    %876 = vmatmul.mubr.f32.gmra.mxu0 %v95
    %v877 = vpop.f32.mrf.mxu0
    %v878 = vadd.f32 0.0, %v877
    %v879 = vpop.f32.mrf.mxu0
    %880 = vmatprep.mubr.f32.mxu0 0.0
    %881 = vmatmul.mubr.f32.gmra.mxu0 %v96
    %v882 = vpop.f32.mrf.mxu0
    %v883 = vadd.f32 0.0, %v882
    %v884 = vpop.f32.mrf.mxu0
    %885 = vmatprep.mubr.f32.mxu0 0.0
    %886 = vmatmul.mubr.f32.gmra.mxu0 %v97
    %v887 = vpop.f32.mrf.mxu0
    %v888 = vadd.f32 0.0, %v887
    %v889 = vpop.f32.mrf.mxu0
    %890 = vmatprep.mubr.f32.mxu0 0.0
    %891 = vmatmul.mubr.f32.gmra.mxu0 %v98
    %v892 = vpop.f32.mrf.mxu0
    %v893 = vadd.f32 0.0, %v892
    %v894 = vpop.f32.mrf.mxu0
    %895 = vmatprep.mubr.f32.mxu0 0.0
    %896 = vmatmul.mubr.f32.gmra.mxu0 %v99
    %v897 = vpop.f32.mrf.mxu0
    %v898 = vadd.f32 0.0, %v897
    %v899 = vpop.f32.mrf.mxu0
    %900 = vmatprep.mubr.f32.mxu0 0.0
    %901 = vmatmul.mubr.f32.gmra.mxu0 %v100
    %v902 = vpop.f32.mrf.mxu0
    %v903 = vadd.f32 0.0, %v902
    %v904 = vpop.f32.mrf.mxu0
    %905 = vmatprep.mubr.f32.mxu0 0.0
    %906 = vmatmul.mubr.f32.gmra.mxu0 %v101
    %v907 = vpop.f32.mrf.mxu0
    %v908 = vadd.f32 0.0, %v907
    %v909 = vpop.f32.mrf.mxu0
    %910 = vmatprep.mubr.f32.mxu0 0.0
    %911 = vmatmul.mubr.f32.gmra.mxu0 %v102
    %v912 = vpop.f32.mrf.mxu0
    %v913 = vadd.f32 0.0, %v912
    %v914 = vpop.f32.mrf.mxu0
    %915 = vdwg.mxu0
    %v916 = vld [vmem:[#allocation9 + $0x80] sm:$0xff]
    %v917 = vld [vmem:[#allocation9 + $0x88] sm:$0xff]
    %v918 = vld [vmem:[#allocation9 + $0x90] sm:$0xff]
    %v919 = vld [vmem:[#allocation9 + $0x98] sm:$0xff]
    %v920 = vld [vmem:[#allocation9 + $0xa0] sm:$0xff]
    %v921 = vld [vmem:[#allocation9 + $0xa8] sm:$0xff]
    %v922 = vld [vmem:[#allocation9 + $0xb0] sm:$0xff]
    %v923 = vld [vmem:[#allocation9 + $0xb8] sm:$0xff]
    %v924 = vld [vmem:[#allocation9 + $0xc0] sm:$0xff]
    %v925 = vld [vmem:[#allocation9 + $0xc8] sm:$0xff]
    %v926 = vld [vmem:[#allocation9 + $0xd0] sm:$0xff]
    %v927 = vld [vmem:[#allocation9 + $0xd8] sm:$0xff]
    %v928 = vld [vmem:[#allocation9 + $0xe0] sm:$0xff]
    %v929 = vld [vmem:[#allocation9 + $0xe8] sm:$0xff]
    %v930 = vld [vmem:[#allocation9 + $0xf0] sm:$0xff]
    %v931 = vld [vmem:[#allocation9 + $0xf8] sm:$0xff]
    %v932 = vld [vmem:[#allocation9 + $0x280] sm:$0xff]
    %v933 = vld [vmem:[#allocation9 + $0x288] sm:$0xff]
    %v934 = vld [vmem:[#allocation9 + $0x290] sm:$0xff]
    %v935 = vld [vmem:[#allocation9 + $0x298] sm:$0xff]
    %v936 = vld [vmem:[#allocation9 + $0x2a0] sm:$0xff]
    %v937 = vld [vmem:[#allocation9 + $0x2a8] sm:$0xff]
    %v938 = vld [vmem:[#allocation9 + $0x2b0] sm:$0xff]
    %v939 = vld [vmem:[#allocation9 + $0x2b8] sm:$0xff]
    %v940 = vld [vmem:[#allocation9 + $0x2c0] sm:$0xff]
    %v941 = vld [vmem:[#allocation9 + $0x2c8] sm:$0xff]
    %v942 = vld [vmem:[#allocation9 + $0x2d0] sm:$0xff]
    %v943 = vld [vmem:[#allocation9 + $0x2d8] sm:$0xff]
    %v944 = vld [vmem:[#allocation9 + $0x2e0] sm:$0xff]
    %v945 = vld [vmem:[#allocation9 + $0x2e8] sm:$0xff]
    %v946 = vld [vmem:[#allocation9 + $0x2f0] sm:$0xff]
    %v947 = vld [vmem:[#allocation9 + $0x2f8] sm:$0xff]
    %v948 = vld [vmem:[#allocation11 + $0x2] sm:$0x1]
    %v949 = vld [vmem:[#allocation11 + $0x3] sm:$0x1]
    %v950 = vlaneseq
    %v951 = vshrl.u32 %v950, 7
    %v952 = vsub.s32 0, %v951
    %v953 = vrot.slane %v948, %v952
    %954 = vmatprep.subr.mxu0 0.0
    %955 = vmatpush1.msra.mxu0 %v931
    %956 = vmatprep.subr.mxu0 0.0
    %957 = vmatpush1.msra.mxu0 %v930
    %958 = vmatprep.subr.mxu0 0.0
    %959 = vmatpush1.msra.mxu0 %v929
    %960 = vmatprep.subr.mxu0 0.0
    %961 = vmatpush1.msra.mxu0 %v928
    %962 = vmatprep.subr.mxu0 0.0
    %963 = vmatpush1.msra.mxu0 %v927
    %964 = vmatprep.subr.mxu0 0.0
    %965 = vmatpush1.msra.mxu0 %v926
    %966 = vmatprep.subr.mxu0 0.0
    %967 = vmatpush1.msra.mxu0 %v925
    %968 = vmatprep.subr.mxu0 0.0
    %969 = vmatpush1.msra.mxu0 %v924
    %970 = vmatprep.subr.mxu0 0.0
    %971 = vmatpush1.msra.mxu0 %v923
    %972 = vmatprep.subr.mxu0 0.0
    %973 = vmatpush1.msra.mxu0 %v922
    %974 = vmatprep.subr.mxu0 0.0
    %975 = vmatpush1.msra.mxu0 %v921
    %976 = vmatprep.subr.mxu0 0.0
    %977 = vmatpush1.msra.mxu0 %v920
    %978 = vmatprep.subr.mxu0 0.0
    %979 = vmatpush1.msra.mxu0 %v919
    %980 = vmatprep.subr.mxu0 0.0
    %981 = vmatpush1.msra.mxu0 %v918
    %982 = vmatprep.subr.mxu0 0.0
    %983 = vmatpush1.msra.mxu0 %v917
    %984 = vmatprep.subr.mxu0 0.0
    %985 = vmatpush1.msra.mxu0 %v916
    %986 = vmatprep.subr.mxu0 0.0
    %987 = vmatpush2.msra.mxu0 0.0
    %988 = vmatprep.subr.mxu0 0.0
    %989 = vmatpush2.msra.mxu0 0.0
    %990 = vmatprep.subr.mxu0 0.0
    %991 = vmatpush2.msra.mxu0 0.0
    %992 = vmatprep.subr.mxu0 0.0
    %993 = vmatpush2.msra.mxu0 0.0
    %994 = vmatprep.subr.mxu0 0.0
    %995 = vmatpush2.msra.mxu0 0.0
    %996 = vmatprep.subr.mxu0 0.0
    %997 = vmatpush2.msra.mxu0 0.0
    %998 = vmatprep.subr.mxu0 0.0
    %999 = vmatpush2.msra.mxu0 0.0
    %1000 = vmatprep.subr.mxu0 0.0
    %1001 = vmatpush2.msra.mxu0 0.0
    %1002 = vmatprep.subr.mxu0 0.0
    %1003 = vmatpush2.msra.mxu0 0.0
    %1004 = vmatprep.subr.mxu0 0.0
    %1005 = vmatpush2.msra.mxu0 0.0
    %1006 = vmatprep.subr.mxu0 0.0
    %1007 = vmatpush2.msra.mxu0 0.0
    %1008 = vmatprep.subr.mxu0 0.0
    %1009 = vmatpush2.msra.mxu0 0.0
    %1010 = vmatprep.subr.mxu0 0.0
    %1011 = vmatpush2.msra.mxu0 0.0
    %1012 = vmatprep.subr.mxu0 0.0
    %1013 = vmatpush2.msra.mxu0 0.0
    %1014 = vmatprep.subr.mxu0 0.0
    %1015 = vmatpush2.msra.mxu0 0.0
    %1016 = vmatprep.subr.mxu0 0.0
    %1017 = vmatpush2.msra.mxu0 0.0
    %1018 = vmatprep.mubr.f32.mxu0 0.0
    %1019 = vmatmul.mubr.f32.gmra.mxu0 %v838
    %v1020 = vpop.f32.mrf.mxu0
    %v1021 = vadd.f32 %v953, %v1020
    %v1022 = vpop.f32.mrf.mxu0
    %1023 = vmatprep.mubr.f32.mxu0 0.0
    %1024 = vmatmul.mubr.f32.gmra.mxu0 %v843
    %v1025 = vpop.f32.mrf.mxu0
    %v1026 = vadd.f32 %v953, %v1025
    %v1027 = vpop.f32.mrf.mxu0
    %1028 = vmatprep.mubr.f32.mxu0 0.0
    %1029 = vmatmul.mubr.f32.gmra.mxu0 %v848
    %v1030 = vpop.f32.mrf.mxu0
    %v1031 = vadd.f32 %v953, %v1030
    %v1032 = vpop.f32.mrf.mxu0
    %1033 = vmatprep.mubr.f32.mxu0 0.0
    %1034 = vmatmul.mubr.f32.gmra.mxu0 %v853
    %v1035 = vpop.f32.mrf.mxu0
    %v1036 = vadd.f32 %v953, %v1035
    %v1037 = vpop.f32.mrf.mxu0
    %1038 = vmatprep.mubr.f32.mxu0 0.0
    %1039 = vmatmul.mubr.f32.gmra.mxu0 %v858
    %v1040 = vpop.f32.mrf.mxu0
    %v1041 = vadd.f32 %v953, %v1040
    %v1042 = vpop.f32.mrf.mxu0
    %1043 = vmatprep.mubr.f32.mxu0 0.0
    %1044 = vmatmul.mubr.f32.gmra.mxu0 %v863
    %v1045 = vpop.f32.mrf.mxu0
    %v1046 = vadd.f32 %v953, %v1045
    %v1047 = vpop.f32.mrf.mxu0
    %1048 = vmatprep.mubr.f32.mxu0 0.0
    %1049 = vmatmul.mubr.f32.gmra.mxu0 %v868
    %v1050 = vpop.f32.mrf.mxu0
    %v1051 = vadd.f32 %v953, %v1050
    %v1052 = vpop.f32.mrf.mxu0
    %1053 = vmatprep.mubr.f32.mxu0 0.0
    %1054 = vmatmul.mubr.f32.gmra.mxu0 %v873
    %v1055 = vpop.f32.mrf.mxu0
    %v1056 = vadd.f32 %v953, %v1055
    %v1057 = vpop.f32.mrf.mxu0
    %1058 = vmatprep.mubr.f32.mxu0 0.0
    %1059 = vmatmul.mubr.f32.gmra.mxu0 %v878
    %v1060 = vpop.f32.mrf.mxu0
    %v1061 = vadd.f32 %v953, %v1060
    %v1062 = vpop.f32.mrf.mxu0
    %1063 = vmatprep.mubr.f32.mxu0 0.0
    %1064 = vmatmul.mubr.f32.gmra.mxu0 %v883
    %v1065 = vpop.f32.mrf.mxu0
    %v1066 = vadd.f32 %v953, %v1065
    %v1067 = vpop.f32.mrf.mxu0
    %1068 = vmatprep.mubr.f32.mxu0 0.0
    %1069 = vmatmul.mubr.f32.gmra.mxu0 %v888
    %v1070 = vpop.f32.mrf.mxu0
    %v1071 = vadd.f32 %v953, %v1070
    %v1072 = vpop.f32.mrf.mxu0
    %1073 = vmatprep.mubr.f32.mxu0 0.0
    %1074 = vmatmul.mubr.f32.gmra.mxu0 %v893
    %v1075 = vpop.f32.mrf.mxu0
    %v1076 = vadd.f32 %v953, %v1075
    %v1077 = vpop.f32.mrf.mxu0
    %1078 = vmatprep.mubr.f32.mxu0 0.0
    %1079 = vmatmul.mubr.f32.gmra.mxu0 %v898
    %v1080 = vpop.f32.mrf.mxu0
    %v1081 = vadd.f32 %v953, %v1080
    %v1082 = vpop.f32.mrf.mxu0
    %1083 = vmatprep.mubr.f32.mxu0 0.0
    %1084 = vmatmul.mubr.f32.gmra.mxu0 %v903
    %v1085 = vpop.f32.mrf.mxu0
    %v1086 = vadd.f32 %v953, %v1085
    %v1087 = vpop.f32.mrf.mxu0
    %1088 = vmatprep.mubr.f32.mxu0 0.0
    %1089 = vmatmul.mubr.f32.gmra.mxu0 %v908
    %v1090 = vpop.f32.mrf.mxu0
    %v1091 = vadd.f32 %v953, %v1090
    %v1092 = vpop.f32.mrf.mxu0
    %1093 = vmatprep.mubr.f32.mxu0 0.0
    %1094 = vmatmul.mubr.f32.gmra.mxu0 %v913
    %v1095 = vpop.f32.mrf.mxu0
    %v1096 = vadd.f32 %v953, %v1095
    %v1097 = vpop.f32.mrf.mxu0
    %1098 = vdwg.mxu0
    %v1099 = vmax.f32 %v1021, 0.0
    %v1100 = vmax.f32 %v1026, 0.0
    %v1101 = vmax.f32 %v1031, 0.0
    %v1102 = vmax.f32 %v1036, 0.0
    %v1103 = vmax.f32 %v1041, 0.0
    %v1104 = vmax.f32 %v1046, 0.0
    %v1105 = vmax.f32 %v1051, 0.0
    %v1106 = vmax.f32 %v1056, 0.0
    %v1107 = vmax.f32 %v1061, 0.0
    %v1108 = vmax.f32 %v1066, 0.0
    %v1109 = vmax.f32 %v1071, 0.0
    %v1110 = vmax.f32 %v1076, 0.0
    %v1111 = vmax.f32 %v1081, 0.0
    %v1112 = vmax.f32 %v1086, 0.0
    %v1113 = vmax.f32 %v1091, 0.0
    %v1114 = vmax.f32 %v1096, 0.0
    %v1115 = vlaneseq
    %v1116 = vshrl.u32 %v1115, 7
    %v1117 = vsub.s32 0, %v1116
    %v1118 = vrot.slane %v949, %v1117
    %1119 = vmatprep.subr.mxu0 0.0
    %1120 = vmatpush1.msra.mxu0 %v947
    %1121 = vmatprep.subr.mxu0 0.0
    %1122 = vmatpush1.msra.mxu0 %v946
    %1123 = vmatprep.subr.mxu0 0.0
    %1124 = vmatpush1.msra.mxu0 %v945
    %1125 = vmatprep.subr.mxu0 0.0
    %1126 = vmatpush1.msra.mxu0 %v944
    %1127 = vmatprep.subr.mxu0 0.0
    %1128 = vmatpush1.msra.mxu0 %v943
    %1129 = vmatprep.subr.mxu0 0.0
    %1130 = vmatpush1.msra.mxu0 %v942
    %1131 = vmatprep.subr.mxu0 0.0
    %1132 = vmatpush1.msra.mxu0 %v941
    %1133 = vmatprep.subr.mxu0 0.0
    %1134 = vmatpush1.msra.mxu0 %v940
    %1135 = vmatprep.subr.mxu0 0.0
    %1136 = vmatpush1.msra.mxu0 %v939
    %1137 = vmatprep.subr.mxu0 0.0
    %1138 = vmatpush1.msra.mxu0 %v938
    %1139 = vmatprep.subr.mxu0 0.0
    %1140 = vmatpush1.msra.mxu0 %v937
    %1141 = vmatprep.subr.mxu0 0.0
    %1142 = vmatpush1.msra.mxu0 %v936
    %1143 = vmatprep.subr.mxu0 0.0
    %1144 = vmatpush1.msra.mxu0 %v935
    %1145 = vmatprep.subr.mxu0 0.0
    %1146 = vmatpush1.msra.mxu0 %v934
    %1147 = vmatprep.subr.mxu0 0.0
    %1148 = vmatpush1.msra.mxu0 %v933
    %1149 = vmatprep.subr.mxu0 0.0
    %1150 = vmatpush1.msra.mxu0 %v932
    %1151 = vmatprep.subr.mxu0 0.0
    %1152 = vmatpush2.msra.mxu0 0.0
    %1153 = vmatprep.subr.mxu0 0.0
    %1154 = vmatpush2.msra.mxu0 0.0
    %1155 = vmatprep.subr.mxu0 0.0
    %1156 = vmatpush2.msra.mxu0 0.0
    %1157 = vmatprep.subr.mxu0 0.0
    %1158 = vmatpush2.msra.mxu0 0.0
    %1159 = vmatprep.subr.mxu0 0.0
    %1160 = vmatpush2.msra.mxu0 0.0
    %1161 = vmatprep.subr.mxu0 0.0
    %1162 = vmatpush2.msra.mxu0 0.0
    %1163 = vmatprep.subr.mxu0 0.0
    %1164 = vmatpush2.msra.mxu0 0.0
    %1165 = vmatprep.subr.mxu0 0.0
    %1166 = vmatpush2.msra.mxu0 0.0
    %1167 = vmatprep.subr.mxu0 0.0
    %1168 = vmatpush2.msra.mxu0 0.0
    %1169 = vmatprep.subr.mxu0 0.0
    %1170 = vmatpush2.msra.mxu0 0.0
    %1171 = vmatprep.subr.mxu0 0.0
    %1172 = vmatpush2.msra.mxu0 0.0
    %1173 = vmatprep.subr.mxu0 0.0
    %1174 = vmatpush2.msra.mxu0 0.0
    %1175 = vmatprep.subr.mxu0 0.0
    %1176 = vmatpush2.msra.mxu0 0.0
    %1177 = vmatprep.subr.mxu0 0.0
    %1178 = vmatpush2.msra.mxu0 0.0
    %1179 = vmatprep.subr.mxu0 0.0
    %1180 = vmatpush2.msra.mxu0 0.0
    %1181 = vmatprep.subr.mxu0 0.0
    %1182 = vmatpush2.msra.mxu0 0.0
    %1183 = vmatprep.mubr.f32.mxu0 0.0
    %1184 = vmatmul.mubr.f32.gmra.mxu0 %v1099
    %v1185 = vpop.f32.mrf.mxu0
    %v1186 = vadd.f32 %v1118, %v1185
    %v1187 = vpop.f32.mrf.mxu0
    %1188 = vmatprep.mubr.f32.mxu0 0.0
    %1189 = vmatmul.mubr.f32.gmra.mxu0 %v1100
    %v1190 = vpop.f32.mrf.mxu0
    %v1191 = vadd.f32 %v1118, %v1190
    %v1192 = vpop.f32.mrf.mxu0
    %1193 = vmatprep.mubr.f32.mxu0 0.0
    %1194 = vmatmul.mubr.f32.gmra.mxu0 %v1101
    %v1195 = vpop.f32.mrf.mxu0
    %v1196 = vadd.f32 %v1118, %v1195
    %v1197 = vpop.f32.mrf.mxu0
    %1198 = vmatprep.mubr.f32.mxu0 0.0
    %1199 = vmatmul.mubr.f32.gmra.mxu0 %v1102
    %v1200 = vpop.f32.mrf.mxu0
    %v1201 = vadd.f32 %v1118, %v1200
    %v1202 = vpop.f32.mrf.mxu0
    %1203 = vmatprep.mubr.f32.mxu0 0.0
    %1204 = vmatmul.mubr.f32.gmra.mxu0 %v1103
    %v1205 = vpop.f32.mrf.mxu0
    %v1206 = vadd.f32 %v1118, %v1205
    %v1207 = vpop.f32.mrf.mxu0
    %1208 = vmatprep.mubr.f32.mxu0 0.0
    %1209 = vmatmul.mubr.f32.gmra.mxu0 %v1104
    %v1210 = vpop.f32.mrf.mxu0
    %v1211 = vadd.f32 %v1118, %v1210
    %v1212 = vpop.f32.mrf.mxu0
    %1213 = vmatprep.mubr.f32.mxu0 0.0
    %1214 = vmatmul.mubr.f32.gmra.mxu0 %v1105
    %v1215 = vpop.f32.mrf.mxu0
    %v1216 = vadd.f32 %v1118, %v1215
    %v1217 = vpop.f32.mrf.mxu0
    %1218 = vmatprep.mubr.f32.mxu0 0.0
    %1219 = vmatmul.mubr.f32.gmra.mxu0 %v1106
    %v1220 = vpop.f32.mrf.mxu0
    %v1221 = vadd.f32 %v1118, %v1220
    %v1222 = vpop.f32.mrf.mxu0
    %1223 = vmatprep.mubr.f32.mxu0 0.0
    %1224 = vmatmul.mubr.f32.gmra.mxu0 %v1107
    %v1225 = vpop.f32.mrf.mxu0
    %v1226 = vadd.f32 %v1118, %v1225
    %v1227 = vpop.f32.mrf.mxu0
    %1228 = vmatprep.mubr.f32.mxu0 0.0
    %1229 = vmatmul.mubr.f32.gmra.mxu0 %v1108
    %v1230 = vpop.f32.mrf.mxu0
    %v1231 = vadd.f32 %v1118, %v1230
    %v1232 = vpop.f32.mrf.mxu0
    %1233 = vmatprep.mubr.f32.mxu0 0.0
    %1234 = vmatmul.mubr.f32.gmra.mxu0 %v1109
    %v1235 = vpop.f32.mrf.mxu0
    %v1236 = vadd.f32 %v1118, %v1235
    %v1237 = vpop.f32.mrf.mxu0
    %1238 = vmatprep.mubr.f32.mxu0 0.0
    %1239 = vmatmul.mubr.f32.gmra.mxu0 %v1110
    %v1240 = vpop.f32.mrf.mxu0
    %v1241 = vadd.f32 %v1118, %v1240
    %v1242 = vpop.f32.mrf.mxu0
    %1243 = vmatprep.mubr.f32.mxu0 0.0
    %1244 = vmatmul.mubr.f32.gmra.mxu0 %v1111
    %v1245 = vpop.f32.mrf.mxu0
    %v1246 = vadd.f32 %v1118, %v1245
    %v1247 = vpop.f32.mrf.mxu0
    %1248 = vmatprep.mubr.f32.mxu0 0.0
    %1249 = vmatmul.mubr.f32.gmra.mxu0 %v1112
    %v1250 = vpop.f32.mrf.mxu0
    %v1251 = vadd.f32 %v1118, %v1250
    %v1252 = vpop.f32.mrf.mxu0
    %1253 = vmatprep.mubr.f32.mxu0 0.0
    %1254 = vmatmul.mubr.f32.gmra.mxu0 %v1113
    %v1255 = vpop.f32.mrf.mxu0
    %v1256 = vadd.f32 %v1118, %v1255
    %v1257 = vpop.f32.mrf.mxu0
    %1258 = vmatprep.mubr.f32.mxu0 0.0
    %1259 = vmatmul.mubr.f32.gmra.mxu0 %v1114
    %v1260 = vpop.f32.mrf.mxu0
    %v1261 = vadd.f32 %v1118, %v1260
    %v1262 = vpop.f32.mrf.mxu0
    %1263 = vdwg.mxu0
    %v1264 = vmax.f32 %v1186, 0.0
    %v1265 = vmax.f32 %v1191, 0.0
    %v1266 = vmax.f32 %v1196, 0.0
    %v1267 = vmax.f32 %v1201, 0.0
    %v1268 = vmax.f32 %v1206, 0.0
    %v1269 = vmax.f32 %v1211, 0.0
    %v1270 = vmax.f32 %v1216, 0.0
    %v1271 = vmax.f32 %v1221, 0.0
    %v1272 = vmax.f32 %v1226, 0.0
    %v1273 = vmax.f32 %v1231, 0.0
    %v1274 = vmax.f32 %v1236, 0.0
    %v1275 = vmax.f32 %v1241, 0.0
    %v1276 = vmax.f32 %v1246, 0.0
    %v1277 = vmax.f32 %v1251, 0.0
    %v1278 = vmax.f32 %v1256, 0.0
    %v1279 = vmax.f32 %v1261, 0.0
    %1280 = vmatprep.subr.mxu0 0.0
    %1281 = vmatpush1.msra.mxu0 %v1279
    %1282 = vmatprep.subr.mxu0 0.0
    %1283 = vmatpush1.msra.mxu0 %v1278
    %1284 = vmatprep.subr.mxu0 0.0
    %1285 = vmatpush1.msra.mxu0 %v1277
    %1286 = vmatprep.subr.mxu0 0.0
    %1287 = vmatpush1.msra.mxu0 %v1276
    %1288 = vmatprep.subr.mxu0 0.0
    %1289 = vmatpush1.msra.mxu0 %v1275
    %1290 = vmatprep.subr.mxu0 0.0
    %1291 = vmatpush1.msra.mxu0 %v1274
    %1292 = vmatprep.subr.mxu0 0.0
    %1293 = vmatpush1.msra.mxu0 %v1273
    %1294 = vmatprep.subr.mxu0 0.0
    %1295 = vmatpush1.msra.mxu0 %v1272
    %1296 = vmatprep.subr.mxu0 0.0
    %1297 = vmatpush1.msra.mxu0 %v1271
    %1298 = vmatprep.subr.mxu0 0.0
    %1299 = vmatpush1.msra.mxu0 %v1270
    %1300 = vmatprep.subr.mxu0 0.0
    %1301 = vmatpush1.msra.mxu0 %v1269
    %1302 = vmatprep.subr.mxu0 0.0
    %1303 = vmatpush1.msra.mxu0 %v1268
    %1304 = vmatprep.subr.mxu0 0.0
    %1305 = vmatpush1.msra.mxu0 %v1267
    %1306 = vmatprep.subr.mxu0 0.0
    %1307 = vmatpush1.msra.mxu0 %v1266
    %1308 = vmatprep.subr.mxu0 0.0
    %1309 = vmatpush1.msra.mxu0 %v1265
    %1310 = vmatprep.subr.mxu0 0.0
    %1311 = vmatpush1.msra.mxu0 %v1264
    %1312 = vmatprep.subr.mxu0 0.0
    %1313 = vmatpush2.msra.mxu0 0.0
    %1314 = vmatprep.subr.mxu0 0.0
    %1315 = vmatpush2.msra.mxu0 0.0
    %1316 = vmatprep.subr.mxu0 0.0
    %1317 = vmatpush2.msra.mxu0 0.0
    %1318 = vmatprep.subr.mxu0 0.0
    %1319 = vmatpush2.msra.mxu0 0.0
    %1320 = vmatprep.subr.mxu0 0.0
    %1321 = vmatpush2.msra.mxu0 0.0
    %1322 = vmatprep.subr.mxu0 0.0
    %1323 = vmatpush2.msra.mxu0 0.0
    %1324 = vmatprep.subr.mxu0 0.0
    %1325 = vmatpush2.msra.mxu0 0.0
    %1326 = vmatprep.subr.mxu0 0.0
    %1327 = vmatpush2.msra.mxu0 0.0
    %1328 = vmatprep.subr.mxu0 0.0
    %1329 = vmatpush2.msra.mxu0 0.0
    %1330 = vmatprep.subr.mxu0 0.0
    %1331 = vmatpush2.msra.mxu0 0.0
    %1332 = vmatprep.subr.mxu0 0.0
    %1333 = vmatpush2.msra.mxu0 0.0
    %1334 = vmatprep.subr.mxu0 0.0
    %1335 = vmatpush2.msra.mxu0 0.0
    %1336 = vmatprep.subr.mxu0 0.0
    %1337 = vmatpush2.msra.mxu0 0.0
    %1338 = vmatprep.subr.mxu0 0.0
    %1339 = vmatpush2.msra.mxu0 0.0
    %1340 = vmatprep.subr.mxu0 0.0
    %1341 = vmatpush2.msra.mxu0 0.0
    %1342 = vmatprep.subr.mxu0 0.0
    %1343 = vmatpush2.msra.mxu0 0.0
    %1344 = vmatprep.mubr.f32.mxu0 0.0
    %1345 = vmatmul.mubr.f32.gmra.mxu0 %v103
    %v1346 = vpop.f32.mrf.mxu0
    %v1347 = vadd.f32 0.0, %v1346
    %v1348 = vpop.f32.mrf.mxu0
    %1349 = vdwg.mxu0
    %1350 = vst [vmem:[#allocation2 + $0x10] sm:$0xff] %v1347
    %1351 = vmatprep.subr.mxu0 0.0
    %1352 = vmatpush1.msra.mxu0 %v1279
    %1353 = vmatprep.subr.mxu0 0.0
    %1354 = vmatpush1.msra.mxu0 %v1278
    %1355 = vmatprep.subr.mxu0 0.0
    %1356 = vmatpush1.msra.mxu0 %v1277
    %1357 = vmatprep.subr.mxu0 0.0
    %1358 = vmatpush1.msra.mxu0 %v1276
    %1359 = vmatprep.subr.mxu0 0.0
    %1360 = vmatpush1.msra.mxu0 %v1275
    %1361 = vmatprep.subr.mxu0 0.0
    %1362 = vmatpush1.msra.mxu0 %v1274
    %1363 = vmatprep.subr.mxu0 0.0
    %1364 = vmatpush1.msra.mxu0 %v1273
    %1365 = vmatprep.subr.mxu0 0.0
    %1366 = vmatpush1.msra.mxu0 %v1272
    %1367 = vmatprep.subr.mxu0 0.0
    %1368 = vmatpush1.msra.mxu0 %v1271
    %1369 = vmatprep.subr.mxu0 0.0
    %1370 = vmatpush1.msra.mxu0 %v1270
    %1371 = vmatprep.subr.mxu0 0.0
    %1372 = vmatpush1.msra.mxu0 %v1269
    %1373 = vmatprep.subr.mxu0 0.0
    %1374 = vmatpush1.msra.mxu0 %v1268
    %1375 = vmatprep.subr.mxu0 0.0
    %1376 = vmatpush1.msra.mxu0 %v1267
    %1377 = vmatprep.subr.mxu0 0.0
    %1378 = vmatpush1.msra.mxu0 %v1266
    %1379 = vmatprep.subr.mxu0 0.0
    %1380 = vmatpush1.msra.mxu0 %v1265
    %1381 = vmatprep.subr.mxu0 0.0
    %1382 = vmatpush1.msra.mxu0 %v1264
    %1383 = vmatprep.subr.mxu0 0.0
    %1384 = vmatpush2.msra.mxu0 0.0
    %1385 = vmatprep.subr.mxu0 0.0
    %1386 = vmatpush2.msra.mxu0 0.0
    %1387 = vmatprep.subr.mxu0 0.0
    %1388 = vmatpush2.msra.mxu0 0.0
    %1389 = vmatprep.subr.mxu0 0.0
    %1390 = vmatpush2.msra.mxu0 0.0
    %1391 = vmatprep.subr.mxu0 0.0
    %1392 = vmatpush2.msra.mxu0 0.0
    %1393 = vmatprep.subr.mxu0 0.0
    %1394 = vmatpush2.msra.mxu0 0.0
    %1395 = vmatprep.subr.mxu0 0.0
    %1396 = vmatpush2.msra.mxu0 0.0
    %1397 = vmatprep.subr.mxu0 0.0
    %1398 = vmatpush2.msra.mxu0 0.0
    %1399 = vmatprep.subr.mxu0 0.0
    %1400 = vmatpush2.msra.mxu0 0.0
    %1401 = vmatprep.subr.mxu0 0.0
    %1402 = vmatpush2.msra.mxu0 0.0
    %1403 = vmatprep.subr.mxu0 0.0
    %1404 = vmatpush2.msra.mxu0 0.0
    %1405 = vmatprep.subr.mxu0 0.0
    %1406 = vmatpush2.msra.mxu0 0.0
    %1407 = vmatprep.subr.mxu0 0.0
    %1408 = vmatpush2.msra.mxu0 0.0
    %1409 = vmatprep.subr.mxu0 0.0
    %1410 = vmatpush2.msra.mxu0 0.0
    %1411 = vmatprep.subr.mxu0 0.0
    %1412 = vmatpush2.msra.mxu0 0.0
    %1413 = vmatprep.subr.mxu0 0.0
    %1414 = vmatpush2.msra.mxu0 0.0
    %1415 = vmatprep.mubr.f32.mxu0 0.0
    %1416 = vmatmul.mubr.f32.gmra.mxu0 %v87
    %v1417 = vpop.f32.mrf.mxu0
    %v1418 = vadd.f32 0.0, %v1417
    %v1419 = vpop.f32.mrf.mxu0
    %1420 = vmatprep.mubr.f32.mxu0 0.0
    %1421 = vmatmul.mubr.f32.gmra.mxu0 %v88
    %v1422 = vpop.f32.mrf.mxu0
    %v1423 = vadd.f32 0.0, %v1422
    %v1424 = vpop.f32.mrf.mxu0
    %1425 = vmatprep.mubr.f32.mxu0 0.0
    %1426 = vmatmul.mubr.f32.gmra.mxu0 %v89
    %v1427 = vpop.f32.mrf.mxu0
    %v1428 = vadd.f32 0.0, %v1427
    %v1429 = vpop.f32.mrf.mxu0
    %1430 = vmatprep.mubr.f32.mxu0 0.0
    %1431 = vmatmul.mubr.f32.gmra.mxu0 %v90
    %v1432 = vpop.f32.mrf.mxu0
    %v1433 = vadd.f32 0.0, %v1432
    %v1434 = vpop.f32.mrf.mxu0
    %1435 = vmatprep.mubr.f32.mxu0 0.0
    %1436 = vmatmul.mubr.f32.gmra.mxu0 %v91
    %v1437 = vpop.f32.mrf.mxu0
    %v1438 = vadd.f32 0.0, %v1437
    %v1439 = vpop.f32.mrf.mxu0
    %1440 = vmatprep.mubr.f32.mxu0 0.0
    %1441 = vmatmul.mubr.f32.gmra.mxu0 %v92
    %v1442 = vpop.f32.mrf.mxu0
    %v1443 = vadd.f32 0.0, %v1442
    %v1444 = vpop.f32.mrf.mxu0
    %1445 = vmatprep.mubr.f32.mxu0 0.0
    %1446 = vmatmul.mubr.f32.gmra.mxu0 %v93
    %v1447 = vpop.f32.mrf.mxu0
    %v1448 = vadd.f32 0.0, %v1447
    %v1449 = vpop.f32.mrf.mxu0
    %1450 = vmatprep.mubr.f32.mxu0 0.0
    %1451 = vmatmul.mubr.f32.gmra.mxu0 %v94
    %v1452 = vpop.f32.mrf.mxu0
    %v1453 = vadd.f32 0.0, %v1452
    %v1454 = vpop.f32.mrf.mxu0
    %1455 = vmatprep.mubr.f32.mxu0 0.0
    %1456 = vmatmul.mubr.f32.gmra.mxu0 %v95
    %v1457 = vpop.f32.mrf.mxu0
    %v1458 = vadd.f32 0.0, %v1457
    %v1459 = vpop.f32.mrf.mxu0
    %1460 = vmatprep.mubr.f32.mxu0 0.0
    %1461 = vmatmul.mubr.f32.gmra.mxu0 %v96
    %v1462 = vpop.f32.mrf.mxu0
    %v1463 = vadd.f32 0.0, %v1462
    %v1464 = vpop.f32.mrf.mxu0
    %1465 = vmatprep.mubr.f32.mxu0 0.0
    %1466 = vmatmul.mubr.f32.gmra.mxu0 %v97
    %v1467 = vpop.f32.mrf.mxu0
    %v1468 = vadd.f32 0.0, %v1467
    %v1469 = vpop.f32.mrf.mxu0
    %1470 = vmatprep.mubr.f32.mxu0 0.0
    %1471 = vmatmul.mubr.f32.gmra.mxu0 %v98
    %v1472 = vpop.f32.mrf.mxu0
    %v1473 = vadd.f32 0.0, %v1472
    %v1474 = vpop.f32.mrf.mxu0
    %1475 = vmatprep.mubr.f32.mxu0 0.0
    %1476 = vmatmul.mubr.f32.gmra.mxu0 %v99
    %v1477 = vpop.f32.mrf.mxu0
    %v1478 = vadd.f32 0.0, %v1477
    %v1479 = vpop.f32.mrf.mxu0
    %1480 = vmatprep.mubr.f32.mxu0 0.0
    %1481 = vmatmul.mubr.f32.gmra.mxu0 %v100
    %v1482 = vpop.f32.mrf.mxu0
    %v1483 = vadd.f32 0.0, %v1482
    %v1484 = vpop.f32.mrf.mxu0
    %1485 = vmatprep.mubr.f32.mxu0 0.0
    %1486 = vmatmul.mubr.f32.gmra.mxu0 %v101
    %v1487 = vpop.f32.mrf.mxu0
    %v1488 = vadd.f32 0.0, %v1487
    %v1489 = vpop.f32.mrf.mxu0
    %1490 = vmatprep.mubr.f32.mxu0 0.0
    %1491 = vmatmul.mubr.f32.gmra.mxu0 %v102
    %v1492 = vpop.f32.mrf.mxu0
    %v1493 = vadd.f32 0.0, %v1492
    %v1494 = vpop.f32.mrf.mxu0
    %1495 = vdwg.mxu0
    %v1496 = vld [vmem:[#allocation9 + $0x100] sm:$0xff]
    %v1497 = vld [vmem:[#allocation9 + $0x108] sm:$0xff]
    %v1498 = vld [vmem:[#allocation9 + $0x110] sm:$0xff]
    %v1499 = vld [vmem:[#allocation9 + $0x118] sm:$0xff]
    %v1500 = vld [vmem:[#allocation9 + $0x120] sm:$0xff]
    %v1501 = vld [vmem:[#allocation9 + $0x128] sm:$0xff]
    %v1502 = vld [vmem:[#allocation9 + $0x130] sm:$0xff]
    %v1503 = vld [vmem:[#allocation9 + $0x138] sm:$0xff]
    %v1504 = vld [vmem:[#allocation9 + $0x140] sm:$0xff]
    %v1505 = vld [vmem:[#allocation9 + $0x148] sm:$0xff]
    %v1506 = vld [vmem:[#allocation9 + $0x150] sm:$0xff]
    %v1507 = vld [vmem:[#allocation9 + $0x158] sm:$0xff]
    %v1508 = vld [vmem:[#allocation9 + $0x160] sm:$0xff]
    %v1509 = vld [vmem:[#allocation9 + $0x168] sm:$0xff]
    %v1510 = vld [vmem:[#allocation9 + $0x170] sm:$0xff]
    %v1511 = vld [vmem:[#allocation9 + $0x178] sm:$0xff]
    %v1512 = vld [vmem:[#allocation9 + $0x300] sm:$0xff]
    %v1513 = vld [vmem:[#allocation9 + $0x308] sm:$0xff]
    %v1514 = vld [vmem:[#allocation9 + $0x310] sm:$0xff]
    %v1515 = vld [vmem:[#allocation9 + $0x318] sm:$0xff]
    %v1516 = vld [vmem:[#allocation9 + $0x320] sm:$0xff]
    %v1517 = vld [vmem:[#allocation9 + $0x328] sm:$0xff]
    %v1518 = vld [vmem:[#allocation9 + $0x330] sm:$0xff]
    %v1519 = vld [vmem:[#allocation9 + $0x338] sm:$0xff]
    %v1520 = vld [vmem:[#allocation9 + $0x340] sm:$0xff]
    %v1521 = vld [vmem:[#allocation9 + $0x348] sm:$0xff]
    %v1522 = vld [vmem:[#allocation9 + $0x350] sm:$0xff]
    %v1523 = vld [vmem:[#allocation9 + $0x358] sm:$0xff]
    %v1524 = vld [vmem:[#allocation9 + $0x360] sm:$0xff]
    %v1525 = vld [vmem:[#allocation9 + $0x368] sm:$0xff]
    %v1526 = vld [vmem:[#allocation9 + $0x370] sm:$0xff]
    %v1527 = vld [vmem:[#allocation9 + $0x378] sm:$0xff]
    %v1528 = vld [vmem:[#allocation11 + $0x4] sm:$0x1]
    %v1529 = vld [vmem:[#allocation11 + $0x5] sm:$0x1]
    %v1530 = vlaneseq
    %v1531 = vshrl.u32 %v1530, 7
    %v1532 = vsub.s32 0, %v1531
    %v1533 = vrot.slane %v1528, %v1532
    %1534 = vmatprep.subr.mxu0 0.0
    %1535 = vmatpush1.msra.mxu0 %v1511
    %1536 = vmatprep.subr.mxu0 0.0
    %1537 = vmatpush1.msra.mxu0 %v1510
    %1538 = vmatprep.subr.mxu0 0.0
    %1539 = vmatpush1.msra.mxu0 %v1509
    %1540 = vmatprep.subr.mxu0 0.0
    %1541 = vmatpush1.msra.mxu0 %v1508
    %1542 = vmatprep.subr.mxu0 0.0
    %1543 = vmatpush1.msra.mxu0 %v1507
    %1544 = vmatprep.subr.mxu0 0.0
    %1545 = vmatpush1.msra.mxu0 %v1506
    %1546 = vmatprep.subr.mxu0 0.0
    %1547 = vmatpush1.msra.mxu0 %v1505
    %1548 = vmatprep.subr.mxu0 0.0
    %1549 = vmatpush1.msra.mxu0 %v1504
    %1550 = vmatprep.subr.mxu0 0.0
    %1551 = vmatpush1.msra.mxu0 %v1503
    %1552 = vmatprep.subr.mxu0 0.0
    %1553 = vmatpush1.msra.mxu0 %v1502
    %1554 = vmatprep.subr.mxu0 0.0
    %1555 = vmatpush1.msra.mxu0 %v1501
    %1556 = vmatprep.subr.mxu0 0.0
    %1557 = vmatpush1.msra.mxu0 %v1500
    %1558 = vmatprep.subr.mxu0 0.0
    %1559 = vmatpush1.msra.mxu0 %v1499
    %1560 = vmatprep.subr.mxu0 0.0
    %1561 = vmatpush1.msra.mxu0 %v1498
    %1562 = vmatprep.subr.mxu0 0.0
    %1563 = vmatpush1.msra.mxu0 %v1497
    %1564 = vmatprep.subr.mxu0 0.0
    %1565 = vmatpush1.msra.mxu0 %v1496
    %1566 = vmatprep.subr.mxu0 0.0
    %1567 = vmatpush2.msra.mxu0 0.0
    %1568 = vmatprep.subr.mxu0 0.0
    %1569 = vmatpush2.msra.mxu0 0.0
    %1570 = vmatprep.subr.mxu0 0.0
    %1571 = vmatpush2.msra.mxu0 0.0
    %1572 = vmatprep.subr.mxu0 0.0
    %1573 = vmatpush2.msra.mxu0 0.0
    %1574 = vmatprep.subr.mxu0 0.0
    %1575 = vmatpush2.msra.mxu0 0.0
    %1576 = vmatprep.subr.mxu0 0.0
    %1577 = vmatpush2.msra.mxu0 0.0
    %1578 = vmatprep.subr.mxu0 0.0
    %1579 = vmatpush2.msra.mxu0 0.0
    %1580 = vmatprep.subr.mxu0 0.0
    %1581 = vmatpush2.msra.mxu0 0.0
    %1582 = vmatprep.subr.mxu0 0.0
    %1583 = vmatpush2.msra.mxu0 0.0
    %1584 = vmatprep.subr.mxu0 0.0
    %1585 = vmatpush2.msra.mxu0 0.0
    %1586 = vmatprep.subr.mxu0 0.0
    %1587 = vmatpush2.msra.mxu0 0.0
    %1588 = vmatprep.subr.mxu0 0.0
    %1589 = vmatpush2.msra.mxu0 0.0
    %1590 = vmatprep.subr.mxu0 0.0
    %1591 = vmatpush2.msra.mxu0 0.0
    %1592 = vmatprep.subr.mxu0 0.0
    %1593 = vmatpush2.msra.mxu0 0.0
    %1594 = vmatprep.subr.mxu0 0.0
    %1595 = vmatpush2.msra.mxu0 0.0
    %1596 = vmatprep.subr.mxu0 0.0
    %1597 = vmatpush2.msra.mxu0 0.0
    %1598 = vmatprep.mubr.f32.mxu0 0.0
    %1599 = vmatmul.mubr.f32.gmra.mxu0 %v1418
    %v1600 = vpop.f32.mrf.mxu0
    %v1601 = vadd.f32 %v1533, %v1600
    %v1602 = vpop.f32.mrf.mxu0
    %1603 = vmatprep.mubr.f32.mxu0 0.0
    %1604 = vmatmul.mubr.f32.gmra.mxu0 %v1423
    %v1605 = vpop.f32.mrf.mxu0
    %v1606 = vadd.f32 %v1533, %v1605
    %v1607 = vpop.f32.mrf.mxu0
    %1608 = vmatprep.mubr.f32.mxu0 0.0
    %1609 = vmatmul.mubr.f32.gmra.mxu0 %v1428
    %v1610 = vpop.f32.mrf.mxu0
    %v1611 = vadd.f32 %v1533, %v1610
    %v1612 = vpop.f32.mrf.mxu0
    %1613 = vmatprep.mubr.f32.mxu0 0.0
    %1614 = vmatmul.mubr.f32.gmra.mxu0 %v1433
    %v1615 = vpop.f32.mrf.mxu0
    %v1616 = vadd.f32 %v1533, %v1615
    %v1617 = vpop.f32.mrf.mxu0
    %1618 = vmatprep.mubr.f32.mxu0 0.0
    %1619 = vmatmul.mubr.f32.gmra.mxu0 %v1438
    %v1620 = vpop.f32.mrf.mxu0
    %v1621 = vadd.f32 %v1533, %v1620
    %v1622 = vpop.f32.mrf.mxu0
    %1623 = vmatprep.mubr.f32.mxu0 0.0
    %1624 = vmatmul.mubr.f32.gmra.mxu0 %v1443
    %v1625 = vpop.f32.mrf.mxu0
    %v1626 = vadd.f32 %v1533, %v1625
    %v1627 = vpop.f32.mrf.mxu0
    %1628 = vmatprep.mubr.f32.mxu0 0.0
    %1629 = vmatmul.mubr.f32.gmra.mxu0 %v1448
    %v1630 = vpop.f32.mrf.mxu0
    %v1631 = vadd.f32 %v1533, %v1630
    %v1632 = vpop.f32.mrf.mxu0
    %1633 = vmatprep.mubr.f32.mxu0 0.0
    %1634 = vmatmul.mubr.f32.gmra.mxu0 %v1453
    %v1635 = vpop.f32.mrf.mxu0
    %v1636 = vadd.f32 %v1533, %v1635
    %v1637 = vpop.f32.mrf.mxu0
    %1638 = vmatprep.mubr.f32.mxu0 0.0
    %1639 = vmatmul.mubr.f32.gmra.mxu0 %v1458
    %v1640 = vpop.f32.mrf.mxu0
    %v1641 = vadd.f32 %v1533, %v1640
    %v1642 = vpop.f32.mrf.mxu0
    %1643 = vmatprep.mubr.f32.mxu0 0.0
    %1644 = vmatmul.mubr.f32.gmra.mxu0 %v1463
    %v1645 = vpop.f32.mrf.mxu0
    %v1646 = vadd.f32 %v1533, %v1645
    %v1647 = vpop.f32.mrf.mxu0
    %1648 = vmatprep.mubr.f32.mxu0 0.0
    %1649 = vmatmul.mubr.f32.gmra.mxu0 %v1468
    %v1650 = vpop.f32.mrf.mxu0
    %v1651 = vadd.f32 %v1533, %v1650
    %v1652 = vpop.f32.mrf.mxu0
    %1653 = vmatprep.mubr.f32.mxu0 0.0
    %1654 = vmatmul.mubr.f32.gmra.mxu0 %v1473
    %v1655 = vpop.f32.mrf.mxu0
    %v1656 = vadd.f32 %v1533, %v1655
    %v1657 = vpop.f32.mrf.mxu0
    %1658 = vmatprep.mubr.f32.mxu0 0.0
    %1659 = vmatmul.mubr.f32.gmra.mxu0 %v1478
    %v1660 = vpop.f32.mrf.mxu0
    %v1661 = vadd.f32 %v1533, %v1660
    %v1662 = vpop.f32.mrf.mxu0
    %1663 = vmatprep.mubr.f32.mxu0 0.0
    %1664 = vmatmul.mubr.f32.gmra.mxu0 %v1483
    %v1665 = vpop.f32.mrf.mxu0
    %v1666 = vadd.f32 %v1533, %v1665
    %v1667 = vpop.f32.mrf.mxu0
    %1668 = vmatprep.mubr.f32.mxu0 0.0
    %1669 = vmatmul.mubr.f32.gmra.mxu0 %v1488
    %v1670 = vpop.f32.mrf.mxu0
    %v1671 = vadd.f32 %v1533, %v1670
    %v1672 = vpop.f32.mrf.mxu0
    %1673 = vmatprep.mubr.f32.mxu0 0.0
    %1674 = vmatmul.mubr.f32.gmra.mxu0 %v1493
    %v1675 = vpop.f32.mrf.mxu0
    %v1676 = vadd.f32 %v1533, %v1675
    %v1677 = vpop.f32.mrf.mxu0
    %1678 = vdwg.mxu0
    %v1679 = vmax.f32 %v1601, 0.0
    %v1680 = vmax.f32 %v1606, 0.0
    %v1681 = vmax.f32 %v1611, 0.0
    %v1682 = vmax.f32 %v1616, 0.0
    %v1683 = vmax.f32 %v1621, 0.0
    %v1684 = vmax.f32 %v1626, 0.0
    %v1685 = vmax.f32 %v1631, 0.0
    %v1686 = vmax.f32 %v1636, 0.0
    %v1687 = vmax.f32 %v1641, 0.0
    %v1688 = vmax.f32 %v1646, 0.0
    %v1689 = vmax.f32 %v1651, 0.0
    %v1690 = vmax.f32 %v1656, 0.0
    %v1691 = vmax.f32 %v1661, 0.0
    %v1692 = vmax.f32 %v1666, 0.0
    %v1693 = vmax.f32 %v1671, 0.0
    %v1694 = vmax.f32 %v1676, 0.0
    %v1695 = vlaneseq
    %v1696 = vshrl.u32 %v1695, 7
    %v1697 = vsub.s32 0, %v1696
    %v1698 = vrot.slane %v1529, %v1697
    %1699 = vmatprep.subr.mxu0 0.0
    %1700 = vmatpush1.msra.mxu0 %v1527
    %1701 = vmatprep.subr.mxu0 0.0
    %1702 = vmatpush1.msra.mxu0 %v1526
    %1703 = vmatprep.subr.mxu0 0.0
    %1704 = vmatpush1.msra.mxu0 %v1525
    %1705 = vmatprep.subr.mxu0 0.0
    %1706 = vmatpush1.msra.mxu0 %v1524
    %1707 = vmatprep.subr.mxu0 0.0
    %1708 = vmatpush1.msra.mxu0 %v1523
    %1709 = vmatprep.subr.mxu0 0.0
    %1710 = vmatpush1.msra.mxu0 %v1522
    %1711 = vmatprep.subr.mxu0 0.0
    %1712 = vmatpush1.msra.mxu0 %v1521
    %1713 = vmatprep.subr.mxu0 0.0
    %1714 = vmatpush1.msra.mxu0 %v1520
    %1715 = vmatprep.subr.mxu0 0.0
    %1716 = vmatpush1.msra.mxu0 %v1519
    %1717 = vmatprep.subr.mxu0 0.0
    %1718 = vmatpush1.msra.mxu0 %v1518
    %1719 = vmatprep.subr.mxu0 0.0
    %1720 = vmatpush1.msra.mxu0 %v1517
    %1721 = vmatprep.subr.mxu0 0.0
    %1722 = vmatpush1.msra.mxu0 %v1516
    %1723 = vmatprep.subr.mxu0 0.0
    %1724 = vmatpush1.msra.mxu0 %v1515
    %1725 = vmatprep.subr.mxu0 0.0
    %1726 = vmatpush1.msra.mxu0 %v1514
    %1727 = vmatprep.subr.mxu0 0.0
    %1728 = vmatpush1.msra.mxu0 %v1513
    %1729 = vmatprep.subr.mxu0 0.0
    %1730 = vmatpush1.msra.mxu0 %v1512
    %1731 = vmatprep.subr.mxu0 0.0
    %1732 = vmatpush2.msra.mxu0 0.0
    %1733 = vmatprep.subr.mxu0 0.0
    %1734 = vmatpush2.msra.mxu0 0.0
    %1735 = vmatprep.subr.mxu0 0.0
    %1736 = vmatpush2.msra.mxu0 0.0
    %1737 = vmatprep.subr.mxu0 0.0
    %1738 = vmatpush2.msra.mxu0 0.0
    %1739 = vmatprep.subr.mxu0 0.0
    %1740 = vmatpush2.msra.mxu0 0.0
    %1741 = vmatprep.subr.mxu0 0.0
    %1742 = vmatpush2.msra.mxu0 0.0
    %1743 = vmatprep.subr.mxu0 0.0
    %1744 = vmatpush2.msra.mxu0 0.0
    %1745 = vmatprep.subr.mxu0 0.0
    %1746 = vmatpush2.msra.mxu0 0.0
    %1747 = vmatprep.subr.mxu0 0.0
    %1748 = vmatpush2.msra.mxu0 0.0
    %1749 = vmatprep.subr.mxu0 0.0
    %1750 = vmatpush2.msra.mxu0 0.0
    %1751 = vmatprep.subr.mxu0 0.0
    %1752 = vmatpush2.msra.mxu0 0.0
    %1753 = vmatprep.subr.mxu0 0.0
    %1754 = vmatpush2.msra.mxu0 0.0
    %1755 = vmatprep.subr.mxu0 0.0
    %1756 = vmatpush2.msra.mxu0 0.0
    %1757 = vmatprep.subr.mxu0 0.0
    %1758 = vmatpush2.msra.mxu0 0.0
    %1759 = vmatprep.subr.mxu0 0.0
    %1760 = vmatpush2.msra.mxu0 0.0
    %1761 = vmatprep.subr.mxu0 0.0
    %1762 = vmatpush2.msra.mxu0 0.0
    %1763 = vmatprep.mubr.f32.mxu0 0.0
    %1764 = vmatmul.mubr.f32.gmra.mxu0 %v1679
    %v1765 = vpop.f32.mrf.mxu0
    %v1766 = vadd.f32 %v1698, %v1765
    %v1767 = vpop.f32.mrf.mxu0
    %1768 = vmatprep.mubr.f32.mxu0 0.0
    %1769 = vmatmul.mubr.f32.gmra.mxu0 %v1680
    %v1770 = vpop.f32.mrf.mxu0
    %v1771 = vadd.f32 %v1698, %v1770
    %v1772 = vpop.f32.mrf.mxu0
    %1773 = vmatprep.mubr.f32.mxu0 0.0
    %1774 = vmatmul.mubr.f32.gmra.mxu0 %v1681
    %v1775 = vpop.f32.mrf.mxu0
    %v1776 = vadd.f32 %v1698, %v1775
    %v1777 = vpop.f32.mrf.mxu0
    %1778 = vmatprep.mubr.f32.mxu0 0.0
    %1779 = vmatmul.mubr.f32.gmra.mxu0 %v1682
    %v1780 = vpop.f32.mrf.mxu0
    %v1781 = vadd.f32 %v1698, %v1780
    %v1782 = vpop.f32.mrf.mxu0
    %1783 = vmatprep.mubr.f32.mxu0 0.0
    %1784 = vmatmul.mubr.f32.gmra.mxu0 %v1683
    %v1785 = vpop.f32.mrf.mxu0
    %v1786 = vadd.f32 %v1698, %v1785
    %v1787 = vpop.f32.mrf.mxu0
    %1788 = vmatprep.mubr.f32.mxu0 0.0
    %1789 = vmatmul.mubr.f32.gmra.mxu0 %v1684
    %v1790 = vpop.f32.mrf.mxu0
    %v1791 = vadd.f32 %v1698, %v1790
    %v1792 = vpop.f32.mrf.mxu0
    %1793 = vmatprep.mubr.f32.mxu0 0.0
    %1794 = vmatmul.mubr.f32.gmra.mxu0 %v1685
    %v1795 = vpop.f32.mrf.mxu0
    %v1796 = vadd.f32 %v1698, %v1795
    %v1797 = vpop.f32.mrf.mxu0
    %1798 = vmatprep.mubr.f32.mxu0 0.0
    %1799 = vmatmul.mubr.f32.gmra.mxu0 %v1686
    %v1800 = vpop.f32.mrf.mxu0
    %v1801 = vadd.f32 %v1698, %v1800
    %v1802 = vpop.f32.mrf.mxu0
    %1803 = vmatprep.mubr.f32.mxu0 0.0
    %1804 = vmatmul.mubr.f32.gmra.mxu0 %v1687
    %v1805 = vpop.f32.mrf.mxu0
    %v1806 = vadd.f32 %v1698, %v1805
    %v1807 = vpop.f32.mrf.mxu0
    %1808 = vmatprep.mubr.f32.mxu0 0.0
    %1809 = vmatmul.mubr.f32.gmra.mxu0 %v1688
    %v1810 = vpop.f32.mrf.mxu0
    %v1811 = vadd.f32 %v1698, %v1810
    %v1812 = vpop.f32.mrf.mxu0
    %1813 = vmatprep.mubr.f32.mxu0 0.0
    %1814 = vmatmul.mubr.f32.gmra.mxu0 %v1689
    %v1815 = vpop.f32.mrf.mxu0
    %v1816 = vadd.f32 %v1698, %v1815
    %v1817 = vpop.f32.mrf.mxu0
    %1818 = vmatprep.mubr.f32.mxu0 0.0
    %1819 = vmatmul.mubr.f32.gmra.mxu0 %v1690
    %v1820 = vpop.f32.mrf.mxu0
    %v1821 = vadd.f32 %v1698, %v1820
    %v1822 = vpop.f32.mrf.mxu0
    %1823 = vmatprep.mubr.f32.mxu0 0.0
    %1824 = vmatmul.mubr.f32.gmra.mxu0 %v1691
    %v1825 = vpop.f32.mrf.mxu0
    %v1826 = vadd.f32 %v1698, %v1825
    %v1827 = vpop.f32.mrf.mxu0
    %1828 = vmatprep.mubr.f32.mxu0 0.0
    %1829 = vmatmul.mubr.f32.gmra.mxu0 %v1692
    %v1830 = vpop.f32.mrf.mxu0
    %v1831 = vadd.f32 %v1698, %v1830
    %v1832 = vpop.f32.mrf.mxu0
    %1833 = vmatprep.mubr.f32.mxu0 0.0
    %1834 = vmatmul.mubr.f32.gmra.mxu0 %v1693
    %v1835 = vpop.f32.mrf.mxu0
    %v1836 = vadd.f32 %v1698, %v1835
    %v1837 = vpop.f32.mrf.mxu0
    %1838 = vmatprep.mubr.f32.mxu0 0.0
    %1839 = vmatmul.mubr.f32.gmra.mxu0 %v1694
    %v1840 = vpop.f32.mrf.mxu0
    %v1841 = vadd.f32 %v1698, %v1840
    %v1842 = vpop.f32.mrf.mxu0
    %1843 = vdwg.mxu0
    %v1844 = vmax.f32 %v1766, 0.0
    %v1845 = vmax.f32 %v1771, 0.0
    %v1846 = vmax.f32 %v1776, 0.0
    %v1847 = vmax.f32 %v1781, 0.0
    %v1848 = vmax.f32 %v1786, 0.0
    %v1849 = vmax.f32 %v1791, 0.0
    %v1850 = vmax.f32 %v1796, 0.0
    %v1851 = vmax.f32 %v1801, 0.0
    %v1852 = vmax.f32 %v1806, 0.0
    %v1853 = vmax.f32 %v1811, 0.0
    %v1854 = vmax.f32 %v1816, 0.0
    %v1855 = vmax.f32 %v1821, 0.0
    %v1856 = vmax.f32 %v1826, 0.0
    %v1857 = vmax.f32 %v1831, 0.0
    %v1858 = vmax.f32 %v1836, 0.0
    %v1859 = vmax.f32 %v1841, 0.0
    %1860 = vmatprep.subr.mxu0 0.0
    %1861 = vmatpush1.msra.mxu0 %v1859
    %1862 = vmatprep.subr.mxu0 0.0
    %1863 = vmatpush1.msra.mxu0 %v1858
    %1864 = vmatprep.subr.mxu0 0.0
    %1865 = vmatpush1.msra.mxu0 %v1857
    %1866 = vmatprep.subr.mxu0 0.0
    %1867 = vmatpush1.msra.mxu0 %v1856
    %1868 = vmatprep.subr.mxu0 0.0
    %1869 = vmatpush1.msra.mxu0 %v1855
    %1870 = vmatprep.subr.mxu0 0.0
    %1871 = vmatpush1.msra.mxu0 %v1854
    %1872 = vmatprep.subr.mxu0 0.0
    %1873 = vmatpush1.msra.mxu0 %v1853
    %1874 = vmatprep.subr.mxu0 0.0
    %1875 = vmatpush1.msra.mxu0 %v1852
    %1876 = vmatprep.subr.mxu0 0.0
    %1877 = vmatpush1.msra.mxu0 %v1851
    %1878 = vmatprep.subr.mxu0 0.0
    %1879 = vmatpush1.msra.mxu0 %v1850
    %1880 = vmatprep.subr.mxu0 0.0
    %1881 = vmatpush1.msra.mxu0 %v1849
    %1882 = vmatprep.subr.mxu0 0.0
    %1883 = vmatpush1.msra.mxu0 %v1848
    %1884 = vmatprep.subr.mxu0 0.0
    %1885 = vmatpush1.msra.mxu0 %v1847
    %1886 = vmatprep.subr.mxu0 0.0
    %1887 = vmatpush1.msra.mxu0 %v1846
    %1888 = vmatprep.subr.mxu0 0.0
    %1889 = vmatpush1.msra.mxu0 %v1845
    %1890 = vmatprep.subr.mxu0 0.0
    %1891 = vmatpush1.msra.mxu0 %v1844
    %1892 = vmatprep.subr.mxu0 0.0
    %1893 = vmatpush2.msra.mxu0 0.0
    %1894 = vmatprep.subr.mxu0 0.0
    %1895 = vmatpush2.msra.mxu0 0.0
    %1896 = vmatprep.subr.mxu0 0.0
    %1897 = vmatpush2.msra.mxu0 0.0
    %1898 = vmatprep.subr.mxu0 0.0
    %1899 = vmatpush2.msra.mxu0 0.0
    %1900 = vmatprep.subr.mxu0 0.0
    %1901 = vmatpush2.msra.mxu0 0.0
    %1902 = vmatprep.subr.mxu0 0.0
    %1903 = vmatpush2.msra.mxu0 0.0
    %1904 = vmatprep.subr.mxu0 0.0
    %1905 = vmatpush2.msra.mxu0 0.0
    %1906 = vmatprep.subr.mxu0 0.0
    %1907 = vmatpush2.msra.mxu0 0.0
    %1908 = vmatprep.subr.mxu0 0.0
    %1909 = vmatpush2.msra.mxu0 0.0
    %1910 = vmatprep.subr.mxu0 0.0
    %1911 = vmatpush2.msra.mxu0 0.0
    %1912 = vmatprep.subr.mxu0 0.0
    %1913 = vmatpush2.msra.mxu0 0.0
    %1914 = vmatprep.subr.mxu0 0.0
    %1915 = vmatpush2.msra.mxu0 0.0
    %1916 = vmatprep.subr.mxu0 0.0
    %1917 = vmatpush2.msra.mxu0 0.0
    %1918 = vmatprep.subr.mxu0 0.0
    %1919 = vmatpush2.msra.mxu0 0.0
    %1920 = vmatprep.subr.mxu0 0.0
    %1921 = vmatpush2.msra.mxu0 0.0
    %1922 = vmatprep.subr.mxu0 0.0
    %1923 = vmatpush2.msra.mxu0 0.0
    %1924 = vmatprep.mubr.f32.mxu0 0.0
    %1925 = vmatmul.mubr.f32.gmra.mxu0 %v103
    %v1926 = vpop.f32.mrf.mxu0
    %v1927 = vadd.f32 0.0, %v1926
    %v1928 = vpop.f32.mrf.mxu0
    %1929 = vdwg.mxu0
    %1930 = vst [vmem:[#allocation2 + $0x18] sm:$0xff] %v1927
    %1931 = vmatprep.subr.mxu0 0.0
    %1932 = vmatpush1.msra.mxu0 %v1859
    %1933 = vmatprep.subr.mxu0 0.0
    %1934 = vmatpush1.msra.mxu0 %v1858
    %1935 = vmatprep.subr.mxu0 0.0
    %1936 = vmatpush1.msra.mxu0 %v1857
    %1937 = vmatprep.subr.mxu0 0.0
    %1938 = vmatpush1.msra.mxu0 %v1856
    %1939 = vmatprep.subr.mxu0 0.0
    %1940 = vmatpush1.msra.mxu0 %v1855
    %1941 = vmatprep.subr.mxu0 0.0
    %1942 = vmatpush1.msra.mxu0 %v1854
    %1943 = vmatprep.subr.mxu0 0.0
    %1944 = vmatpush1.msra.mxu0 %v1853
    %1945 = vmatprep.subr.mxu0 0.0
    %1946 = vmatpush1.msra.mxu0 %v1852
    %1947 = vmatprep.subr.mxu0 0.0
    %1948 = vmatpush1.msra.mxu0 %v1851
    %1949 = vmatprep.subr.mxu0 0.0
    %1950 = vmatpush1.msra.mxu0 %v1850
    %1951 = vmatprep.subr.mxu0 0.0
    %1952 = vmatpush1.msra.mxu0 %v1849
    %1953 = vmatprep.subr.mxu0 0.0
    %1954 = vmatpush1.msra.mxu0 %v1848
    %1955 = vmatprep.subr.mxu0 0.0
    %1956 = vmatpush1.msra.mxu0 %v1847
    %1957 = vmatprep.subr.mxu0 0.0
    %1958 = vmatpush1.msra.mxu0 %v1846
    %1959 = vmatprep.subr.mxu0 0.0
    %1960 = vmatpush1.msra.mxu0 %v1845
    %1961 = vmatprep.subr.mxu0 0.0
    %1962 = vmatpush1.msra.mxu0 %v1844
    %1963 = vmatprep.subr.mxu0 0.0
    %1964 = vmatpush2.msra.mxu0 0.0
    %1965 = vmatprep.subr.mxu0 0.0
    %1966 = vmatpush2.msra.mxu0 0.0
    %1967 = vmatprep.subr.mxu0 0.0
    %1968 = vmatpush2.msra.mxu0 0.0
    %1969 = vmatprep.subr.mxu0 0.0
    %1970 = vmatpush2.msra.mxu0 0.0
    %1971 = vmatprep.subr.mxu0 0.0
    %1972 = vmatpush2.msra.mxu0 0.0
    %1973 = vmatprep.subr.mxu0 0.0
    %1974 = vmatpush2.msra.mxu0 0.0
    %1975 = vmatprep.subr.mxu0 0.0
    %1976 = vmatpush2.msra.mxu0 0.0
    %1977 = vmatprep.subr.mxu0 0.0
    %1978 = vmatpush2.msra.mxu0 0.0
    %1979 = vmatprep.subr.mxu0 0.0
    %1980 = vmatpush2.msra.mxu0 0.0
    %1981 = vmatprep.subr.mxu0 0.0
    %1982 = vmatpush2.msra.mxu0 0.0
    %1983 = vmatprep.subr.mxu0 0.0
    %1984 = vmatpush2.msra.mxu0 0.0
    %1985 = vmatprep.subr.mxu0 0.0
    %1986 = vmatpush2.msra.mxu0 0.0
    %1987 = vmatprep.subr.mxu0 0.0
    %1988 = vmatpush2.msra.mxu0 0.0
    %1989 = vmatprep.subr.mxu0 0.0
    %1990 = vmatpush2.msra.mxu0 0.0
    %1991 = vmatprep.subr.mxu0 0.0
    %1992 = vmatpush2.msra.mxu0 0.0
    %1993 = vmatprep.subr.mxu0 0.0
    %1994 = vmatpush2.msra.mxu0 0.0
    %1995 = vmatprep.mubr.f32.mxu0 0.0
    %1996 = vmatmul.mubr.f32.gmra.mxu0 %v87
    %v1997 = vpop.f32.mrf.mxu0
    %v1998 = vadd.f32 0.0, %v1997
    %v1999 = vpop.f32.mrf.mxu0
    %2000 = vmatprep.mubr.f32.mxu0 0.0
    %2001 = vmatmul.mubr.f32.gmra.mxu0 %v88
    %v2002 = vpop.f32.mrf.mxu0
    %v2003 = vadd.f32 0.0, %v2002
    %v2004 = vpop.f32.mrf.mxu0
    %2005 = vmatprep.mubr.f32.mxu0 0.0
    %2006 = vmatmul.mubr.f32.gmra.mxu0 %v89
    %v2007 = vpop.f32.mrf.mxu0
    %v2008 = vadd.f32 0.0, %v2007
    %v2009 = vpop.f32.mrf.mxu0
    %2010 = vmatprep.mubr.f32.mxu0 0.0
    %2011 = vmatmul.mubr.f32.gmra.mxu0 %v90
    %v2012 = vpop.f32.mrf.mxu0
    %v2013 = vadd.f32 0.0, %v2012
    %v2014 = vpop.f32.mrf.mxu0
    %2015 = vmatprep.mubr.f32.mxu0 0.0
    %2016 = vmatmul.mubr.f32.gmra.mxu0 %v91
    %v2017 = vpop.f32.mrf.mxu0
    %v2018 = vadd.f32 0.0, %v2017
    %v2019 = vpop.f32.mrf.mxu0
    %2020 = vmatprep.mubr.f32.mxu0 0.0
    %2021 = vmatmul.mubr.f32.gmra.mxu0 %v92
    %v2022 = vpop.f32.mrf.mxu0
    %v2023 = vadd.f32 0.0, %v2022
    %v2024 = vpop.f32.mrf.mxu0
    %2025 = vmatprep.mubr.f32.mxu0 0.0
    %2026 = vmatmul.mubr.f32.gmra.mxu0 %v93
    %v2027 = vpop.f32.mrf.mxu0
    %v2028 = vadd.f32 0.0, %v2027
    %v2029 = vpop.f32.mrf.mxu0
    %2030 = vmatprep.mubr.f32.mxu0 0.0
    %2031 = vmatmul.mubr.f32.gmra.mxu0 %v94
    %v2032 = vpop.f32.mrf.mxu0
    %v2033 = vadd.f32 0.0, %v2032
    %v2034 = vpop.f32.mrf.mxu0
    %2035 = vmatprep.mubr.f32.mxu0 0.0
    %2036 = vmatmul.mubr.f32.gmra.mxu0 %v95
    %v2037 = vpop.f32.mrf.mxu0
    %v2038 = vadd.f32 0.0, %v2037
    %v2039 = vpop.f32.mrf.mxu0
    %2040 = vmatprep.mubr.f32.mxu0 0.0
    %2041 = vmatmul.mubr.f32.gmra.mxu0 %v96
    %v2042 = vpop.f32.mrf.mxu0
    %v2043 = vadd.f32 0.0, %v2042
    %v2044 = vpop.f32.mrf.mxu0
    %2045 = vmatprep.mubr.f32.mxu0 0.0
    %2046 = vmatmul.mubr.f32.gmra.mxu0 %v97
    %v2047 = vpop.f32.mrf.mxu0
    %v2048 = vadd.f32 0.0, %v2047
    %v2049 = vpop.f32.mrf.mxu0
    %2050 = vmatprep.mubr.f32.mxu0 0.0
    %2051 = vmatmul.mubr.f32.gmra.mxu0 %v98
    %v2052 = vpop.f32.mrf.mxu0
    %v2053 = vadd.f32 0.0, %v2052
    %v2054 = vpop.f32.mrf.mxu0
    %2055 = vmatprep.mubr.f32.mxu0 0.0
    %2056 = vmatmul.mubr.f32.gmra.mxu0 %v99
    %v2057 = vpop.f32.mrf.mxu0
    %v2058 = vadd.f32 0.0, %v2057
    %v2059 = vpop.f32.mrf.mxu0
    %2060 = vmatprep.mubr.f32.mxu0 0.0
    %2061 = vmatmul.mubr.f32.gmra.mxu0 %v100
    %v2062 = vpop.f32.mrf.mxu0
    %v2063 = vadd.f32 0.0, %v2062
    %v2064 = vpop.f32.mrf.mxu0
    %2065 = vmatprep.mubr.f32.mxu0 0.0
    %2066 = vmatmul.mubr.f32.gmra.mxu0 %v101
    %v2067 = vpop.f32.mrf.mxu0
    %v2068 = vadd.f32 0.0, %v2067
    %v2069 = vpop.f32.mrf.mxu0
    %2070 = vmatprep.mubr.f32.mxu0 0.0
    %2071 = vmatmul.mubr.f32.gmra.mxu0 %v102
    %v2072 = vpop.f32.mrf.mxu0
    %v2073 = vadd.f32 0.0, %v2072
    %v2074 = vpop.f32.mrf.mxu0
    %2075 = vdwg.mxu0
    %v2076 = vld [vmem:[#allocation9 + $0x180] sm:$0xff]
    %v2077 = vld [vmem:[#allocation9 + $0x188] sm:$0xff]
    %v2078 = vld [vmem:[#allocation9 + $0x190] sm:$0xff]
    %v2079 = vld [vmem:[#allocation9 + $0x198] sm:$0xff]
    %v2080 = vld [vmem:[#allocation9 + $0x1a0] sm:$0xff]
    %v2081 = vld [vmem:[#allocation9 + $0x1a8] sm:$0xff]
    %v2082 = vld [vmem:[#allocation9 + $0x1b0] sm:$0xff]
    %v2083 = vld [vmem:[#allocation9 + $0x1b8] sm:$0xff]
    %v2084 = vld [vmem:[#allocation9 + $0x1c0] sm:$0xff]
    %v2085 = vld [vmem:[#allocation9 + $0x1c8] sm:$0xff]
    %v2086 = vld [vmem:[#allocation9 + $0x1d0] sm:$0xff]
    %v2087 = vld [vmem:[#allocation9 + $0x1d8] sm:$0xff]
    %v2088 = vld [vmem:[#allocation9 + $0x1e0] sm:$0xff]
    %v2089 = vld [vmem:[#allocation9 + $0x1e8] sm:$0xff]
    %v2090 = vld [vmem:[#allocation9 + $0x1f0] sm:$0xff]
    %v2091 = vld [vmem:[#allocation9 + $0x1f8] sm:$0xff]
    %v2092 = vld [vmem:[#allocation9 + $0x380] sm:$0xff]
    %v2093 = vld [vmem:[#allocation9 + $0x388] sm:$0xff]
    %v2094 = vld [vmem:[#allocation9 + $0x390] sm:$0xff]
    %v2095 = vld [vmem:[#allocation9 + $0x398] sm:$0xff]
    %v2096 = vld [vmem:[#allocation9 + $0x3a0] sm:$0xff]
    %v2097 = vld [vmem:[#allocation9 + $0x3a8] sm:$0xff]
    %v2098 = vld [vmem:[#allocation9 + $0x3b0] sm:$0xff]
    %v2099 = vld [vmem:[#allocation9 + $0x3b8] sm:$0xff]
    %v2100 = vld [vmem:[#allocation9 + $0x3c0] sm:$0xff]
    %v2101 = vld [vmem:[#allocation9 + $0x3c8] sm:$0xff]
    %v2102 = vld [vmem:[#allocation9 + $0x3d0] sm:$0xff]
    %v2103 = vld [vmem:[#allocation9 + $0x3d8] sm:$0xff]
    %v2104 = vld [vmem:[#allocation9 + $0x3e0] sm:$0xff]
    %v2105 = vld [vmem:[#allocation9 + $0x3e8] sm:$0xff]
    %v2106 = vld [vmem:[#allocation9 + $0x3f0] sm:$0xff]
    %v2107 = vld [vmem:[#allocation9 + $0x3f8] sm:$0xff]
    %v2108 = vld [vmem:[#allocation11 + $0x6] sm:$0x1]
    %v2109 = vld [vmem:[#allocation11 + $0x7] sm:$0x1]
    %v2110 = vlaneseq
    %v2111 = vshrl.u32 %v2110, 7
    %v2112 = vsub.s32 0, %v2111
    %v2113 = vrot.slane %v2108, %v2112
    %2114 = vmatprep.subr.mxu0 0.0
    %2115 = vmatpush1.msra.mxu0 %v2091
    %2116 = vmatprep.subr.mxu0 0.0
    %2117 = vmatpush1.msra.mxu0 %v2090
    %2118 = vmatprep.subr.mxu0 0.0
    %2119 = vmatpush1.msra.mxu0 %v2089
    %2120 = vmatprep.subr.mxu0 0.0
    %2121 = vmatpush1.msra.mxu0 %v2088
    %2122 = vmatprep.subr.mxu0 0.0
    %2123 = vmatpush1.msra.mxu0 %v2087
    %2124 = vmatprep.subr.mxu0 0.0
    %2125 = vmatpush1.msra.mxu0 %v2086
    %2126 = vmatprep.subr.mxu0 0.0
    %2127 = vmatpush1.msra.mxu0 %v2085
    %2128 = vmatprep.subr.mxu0 0.0
    %2129 = vmatpush1.msra.mxu0 %v2084
    %2130 = vmatprep.subr.mxu0 0.0
    %2131 = vmatpush1.msra.mxu0 %v2083
    %2132 = vmatprep.subr.mxu0 0.0
    %2133 = vmatpush1.msra.mxu0 %v2082
    %2134 = vmatprep.subr.mxu0 0.0
    %2135 = vmatpush1.msra.mxu0 %v2081
    %2136 = vmatprep.subr.mxu0 0.0
    %2137 = vmatpush1.msra.mxu0 %v2080
    %2138 = vmatprep.subr.mxu0 0.0
    %2139 = vmatpush1.msra.mxu0 %v2079
    %2140 = vmatprep.subr.mxu0 0.0
    %2141 = vmatpush1.msra.mxu0 %v2078
    %2142 = vmatprep.subr.mxu0 0.0
    %2143 = vmatpush1.msra.mxu0 %v2077
    %2144 = vmatprep.subr.mxu0 0.0
    %2145 = vmatpush1.msra.mxu0 %v2076
    %2146 = vmatprep.subr.mxu0 0.0
    %2147 = vmatpush2.msra.mxu0 0.0
    %2148 = vmatprep.subr.mxu0 0.0
    %2149 = vmatpush2.msra.mxu0 0.0
    %2150 = vmatprep.subr.mxu0 0.0
    %2151 = vmatpush2.msra.mxu0 0.0
    %2152 = vmatprep.subr.mxu0 0.0
    %2153 = vmatpush2.msra.mxu0 0.0
    %2154 = vmatprep.subr.mxu0 0.0
    %2155 = vmatpush2.msra.mxu0 0.0
    %2156 = vmatprep.subr.mxu0 0.0
    %2157 = vmatpush2.msra.mxu0 0.0
    %2158 = vmatprep.subr.mxu0 0.0
    %2159 = vmatpush2.msra.mxu0 0.0
    %2160 = vmatprep.subr.mxu0 0.0
    %2161 = vmatpush2.msra.mxu0 0.0
    %2162 = vmatprep.subr.mxu0 0.0
    %2163 = vmatpush2.msra.mxu0 0.0
    %2164 = vmatprep.subr.mxu0 0.0
    %2165 = vmatpush2.msra.mxu0 0.0
    %2166 = vmatprep.subr.mxu0 0.0
    %2167 = vmatpush2.msra.mxu0 0.0
    %2168 = vmatprep.subr.mxu0 0.0
    %2169 = vmatpush2.msra.mxu0 0.0
    %2170 = vmatprep.subr.mxu0 0.0
    %2171 = vmatpush2.msra.mxu0 0.0
    %2172 = vmatprep.subr.mxu0 0.0
    %2173 = vmatpush2.msra.mxu0 0.0
    %2174 = vmatprep.subr.mxu0 0.0
    %2175 = vmatpush2.msra.mxu0 0.0
    %2176 = vmatprep.subr.mxu0 0.0
    %2177 = vmatpush2.msra.mxu0 0.0
    %2178 = vmatprep.mubr.f32.mxu0 0.0
    %2179 = vmatmul.mubr.f32.gmra.mxu0 %v1998
    %v2180 = vpop.f32.mrf.mxu0
    %v2181 = vadd.f32 %v2113, %v2180
    %v2182 = vpop.f32.mrf.mxu0
    %2183 = vmatprep.mubr.f32.mxu0 0.0
    %2184 = vmatmul.mubr.f32.gmra.mxu0 %v2003
    %v2185 = vpop.f32.mrf.mxu0
    %v2186 = vadd.f32 %v2113, %v2185
    %v2187 = vpop.f32.mrf.mxu0
    %2188 = vmatprep.mubr.f32.mxu0 0.0
    %2189 = vmatmul.mubr.f32.gmra.mxu0 %v2008
    %v2190 = vpop.f32.mrf.mxu0
    %v2191 = vadd.f32 %v2113, %v2190
    %v2192 = vpop.f32.mrf.mxu0
    %2193 = vmatprep.mubr.f32.mxu0 0.0
    %2194 = vmatmul.mubr.f32.gmra.mxu0 %v2013
    %v2195 = vpop.f32.mrf.mxu0
    %v2196 = vadd.f32 %v2113, %v2195
    %v2197 = vpop.f32.mrf.mxu0
    %2198 = vmatprep.mubr.f32.mxu0 0.0
    %2199 = vmatmul.mubr.f32.gmra.mxu0 %v2018
    %v2200 = vpop.f32.mrf.mxu0
    %v2201 = vadd.f32 %v2113, %v2200
    %v2202 = vpop.f32.mrf.mxu0
    %2203 = vmatprep.mubr.f32.mxu0 0.0
    %2204 = vmatmul.mubr.f32.gmra.mxu0 %v2023
    %v2205 = vpop.f32.mrf.mxu0
    %v2206 = vadd.f32 %v2113, %v2205
    %v2207 = vpop.f32.mrf.mxu0
    %2208 = vmatprep.mubr.f32.mxu0 0.0
    %2209 = vmatmul.mubr.f32.gmra.mxu0 %v2028
    %v2210 = vpop.f32.mrf.mxu0
    %v2211 = vadd.f32 %v2113, %v2210
    %v2212 = vpop.f32.mrf.mxu0
    %2213 = vmatprep.mubr.f32.mxu0 0.0
    %2214 = vmatmul.mubr.f32.gmra.mxu0 %v2033
    %v2215 = vpop.f32.mrf.mxu0
    %v2216 = vadd.f32 %v2113, %v2215
    %v2217 = vpop.f32.mrf.mxu0
    %2218 = vmatprep.mubr.f32.mxu0 0.0
    %2219 = vmatmul.mubr.f32.gmra.mxu0 %v2038
    %v2220 = vpop.f32.mrf.mxu0
    %v2221 = vadd.f32 %v2113, %v2220
    %v2222 = vpop.f32.mrf.mxu0
    %2223 = vmatprep.mubr.f32.mxu0 0.0
    %2224 = vmatmul.mubr.f32.gmra.mxu0 %v2043
    %v2225 = vpop.f32.mrf.mxu0
    %v2226 = vadd.f32 %v2113, %v2225
    %v2227 = vpop.f32.mrf.mxu0
    %2228 = vmatprep.mubr.f32.mxu0 0.0
    %2229 = vmatmul.mubr.f32.gmra.mxu0 %v2048
    %v2230 = vpop.f32.mrf.mxu0
    %v2231 = vadd.f32 %v2113, %v2230
    %v2232 = vpop.f32.mrf.mxu0
    %2233 = vmatprep.mubr.f32.mxu0 0.0
    %2234 = vmatmul.mubr.f32.gmra.mxu0 %v2053
    %v2235 = vpop.f32.mrf.mxu0
    %v2236 = vadd.f32 %v2113, %v2235
    %v2237 = vpop.f32.mrf.mxu0
    %2238 = vmatprep.mubr.f32.mxu0 0.0
    %2239 = vmatmul.mubr.f32.gmra.mxu0 %v2058
    %v2240 = vpop.f32.mrf.mxu0
    %v2241 = vadd.f32 %v2113, %v2240
    %v2242 = vpop.f32.mrf.mxu0
    %2243 = vmatprep.mubr.f32.mxu0 0.0
    %2244 = vmatmul.mubr.f32.gmra.mxu0 %v2063
    %v2245 = vpop.f32.mrf.mxu0
    %v2246 = vadd.f32 %v2113, %v2245
    %v2247 = vpop.f32.mrf.mxu0
    %2248 = vmatprep.mubr.f32.mxu0 0.0
    %2249 = vmatmul.mubr.f32.gmra.mxu0 %v2068
    %v2250 = vpop.f32.mrf.mxu0
    %v2251 = vadd.f32 %v2113, %v2250
    %v2252 = vpop.f32.mrf.mxu0
    %2253 = vmatprep.mubr.f32.mxu0 0.0
    %2254 = vmatmul.mubr.f32.gmra.mxu0 %v2073
    %v2255 = vpop.f32.mrf.mxu0
    %v2256 = vadd.f32 %v2113, %v2255
    %v2257 = vpop.f32.mrf.mxu0
    %2258 = vdwg.mxu0
    %v2259 = vmax.f32 %v2181, 0.0
    %v2260 = vmax.f32 %v2186, 0.0
    %v2261 = vmax.f32 %v2191, 0.0
    %v2262 = vmax.f32 %v2196, 0.0
    %v2263 = vmax.f32 %v2201, 0.0
    %v2264 = vmax.f32 %v2206, 0.0
    %v2265 = vmax.f32 %v2211, 0.0
    %v2266 = vmax.f32 %v2216, 0.0
    %v2267 = vmax.f32 %v2221, 0.0
    %v2268 = vmax.f32 %v2226, 0.0
    %v2269 = vmax.f32 %v2231, 0.0
    %v2270 = vmax.f32 %v2236, 0.0
    %v2271 = vmax.f32 %v2241, 0.0
    %v2272 = vmax.f32 %v2246, 0.0
    %v2273 = vmax.f32 %v2251, 0.0
    %v2274 = vmax.f32 %v2256, 0.0
    %v2275 = vlaneseq
    %v2276 = vshrl.u32 %v2275, 7
    %v2277 = vsub.s32 0, %v2276
    %v2278 = vrot.slane %v2109, %v2277
    %2279 = vmatprep.subr.mxu0 0.0
    %2280 = vmatpush1.msra.mxu0 %v2107
    %2281 = vmatprep.subr.mxu0 0.0
    %2282 = vmatpush1.msra.mxu0 %v2106
    %2283 = vmatprep.subr.mxu0 0.0
    %2284 = vmatpush1.msra.mxu0 %v2105
    %2285 = vmatprep.subr.mxu0 0.0
    %2286 = vmatpush1.msra.mxu0 %v2104
    %2287 = vmatprep.subr.mxu0 0.0
    %2288 = vmatpush1.msra.mxu0 %v2103
    %2289 = vmatprep.subr.mxu0 0.0
    %2290 = vmatpush1.msra.mxu0 %v2102
    %2291 = vmatprep.subr.mxu0 0.0
    %2292 = vmatpush1.msra.mxu0 %v2101
    %2293 = vmatprep.subr.mxu0 0.0
    %2294 = vmatpush1.msra.mxu0 %v2100
    %2295 = vmatprep.subr.mxu0 0.0
    %2296 = vmatpush1.msra.mxu0 %v2099
    %2297 = vmatprep.subr.mxu0 0.0
    %2298 = vmatpush1.msra.mxu0 %v2098
    %2299 = vmatprep.subr.mxu0 0.0
    %2300 = vmatpush1.msra.mxu0 %v2097
    %2301 = vmatprep.subr.mxu0 0.0
    %2302 = vmatpush1.msra.mxu0 %v2096
    %2303 = vmatprep.subr.mxu0 0.0
    %2304 = vmatpush1.msra.mxu0 %v2095
    %2305 = vmatprep.subr.mxu0 0.0
    %2306 = vmatpush1.msra.mxu0 %v2094
    %2307 = vmatprep.subr.mxu0 0.0
    %2308 = vmatpush1.msra.mxu0 %v2093
    %2309 = vmatprep.subr.mxu0 0.0
    %2310 = vmatpush1.msra.mxu0 %v2092
    %2311 = vmatprep.subr.mxu0 0.0
    %2312 = vmatpush2.msra.mxu0 0.0
    %2313 = vmatprep.subr.mxu0 0.0
    %2314 = vmatpush2.msra.mxu0 0.0
    %2315 = vmatprep.subr.mxu0 0.0
    %2316 = vmatpush2.msra.mxu0 0.0
    %2317 = vmatprep.subr.mxu0 0.0
    %2318 = vmatpush2.msra.mxu0 0.0
    %2319 = vmatprep.subr.mxu0 0.0
    %2320 = vmatpush2.msra.mxu0 0.0
    %2321 = vmatprep.subr.mxu0 0.0
    %2322 = vmatpush2.msra.mxu0 0.0
    %2323 = vmatprep.subr.mxu0 0.0
    %2324 = vmatpush2.msra.mxu0 0.0
    %2325 = vmatprep.subr.mxu0 0.0
    %2326 = vmatpush2.msra.mxu0 0.0
    %2327 = vmatprep.subr.mxu0 0.0
    %2328 = vmatpush2.msra.mxu0 0.0
    %2329 = vmatprep.subr.mxu0 0.0
    %2330 = vmatpush2.msra.mxu0 0.0
    %2331 = vmatprep.subr.mxu0 0.0
    %2332 = vmatpush2.msra.mxu0 0.0
    %2333 = vmatprep.subr.mxu0 0.0
    %2334 = vmatpush2.msra.mxu0 0.0
    %2335 = vmatprep.subr.mxu0 0.0
    %2336 = vmatpush2.msra.mxu0 0.0
    %2337 = vmatprep.subr.mxu0 0.0
    %2338 = vmatpush2.msra.mxu0 0.0
    %2339 = vmatprep.subr.mxu0 0.0
    %2340 = vmatpush2.msra.mxu0 0.0
    %2341 = vmatprep.subr.mxu0 0.0
    %2342 = vmatpush2.msra.mxu0 0.0
    %2343 = vmatprep.mubr.f32.mxu0 0.0
    %2344 = vmatmul.mubr.f32.gmra.mxu0 %v2259
    %v2345 = vpop.f32.mrf.mxu0
    %v2346 = vadd.f32 %v2278, %v2345
    %v2347 = vpop.f32.mrf.mxu0
    %2348 = vmatprep.mubr.f32.mxu0 0.0
    %2349 = vmatmul.mubr.f32.gmra.mxu0 %v2260
    %v2350 = vpop.f32.mrf.mxu0
    %v2351 = vadd.f32 %v2278, %v2350
    %v2352 = vpop.f32.mrf.mxu0
    %2353 = vmatprep.mubr.f32.mxu0 0.0
    %2354 = vmatmul.mubr.f32.gmra.mxu0 %v2261
    %v2355 = vpop.f32.mrf.mxu0
    %v2356 = vadd.f32 %v2278, %v2355
    %v2357 = vpop.f32.mrf.mxu0
    %2358 = vmatprep.mubr.f32.mxu0 0.0
    %2359 = vmatmul.mubr.f32.gmra.mxu0 %v2262
    %v2360 = vpop.f32.mrf.mxu0
    %v2361 = vadd.f32 %v2278, %v2360
    %v2362 = vpop.f32.mrf.mxu0
    %2363 = vmatprep.mubr.f32.mxu0 0.0
    %2364 = vmatmul.mubr.f32.gmra.mxu0 %v2263
    %v2365 = vpop.f32.mrf.mxu0
    %v2366 = vadd.f32 %v2278, %v2365
    %v2367 = vpop.f32.mrf.mxu0
    %2368 = vmatprep.mubr.f32.mxu0 0.0
    %2369 = vmatmul.mubr.f32.gmra.mxu0 %v2264
    %v2370 = vpop.f32.mrf.mxu0
    %v2371 = vadd.f32 %v2278, %v2370
    %v2372 = vpop.f32.mrf.mxu0
    %2373 = vmatprep.mubr.f32.mxu0 0.0
    %2374 = vmatmul.mubr.f32.gmra.mxu0 %v2265
    %v2375 = vpop.f32.mrf.mxu0
    %v2376 = vadd.f32 %v2278, %v2375
    %v2377 = vpop.f32.mrf.mxu0
    %2378 = vmatprep.mubr.f32.mxu0 0.0
    %2379 = vmatmul.mubr.f32.gmra.mxu0 %v2266
    %v2380 = vpop.f32.mrf.mxu0
    %v2381 = vadd.f32 %v2278, %v2380
    %v2382 = vpop.f32.mrf.mxu0
    %2383 = vmatprep.mubr.f32.mxu0 0.0
    %2384 = vmatmul.mubr.f32.gmra.mxu0 %v2267
    %v2385 = vpop.f32.mrf.mxu0
    %v2386 = vadd.f32 %v2278, %v2385
    %v2387 = vpop.f32.mrf.mxu0
    %2388 = vmatprep.mubr.f32.mxu0 0.0
    %2389 = vmatmul.mubr.f32.gmra.mxu0 %v2268
    %v2390 = vpop.f32.mrf.mxu0
    %v2391 = vadd.f32 %v2278, %v2390
    %v2392 = vpop.f32.mrf.mxu0
    %2393 = vmatprep.mubr.f32.mxu0 0.0
    %2394 = vmatmul.mubr.f32.gmra.mxu0 %v2269
    %v2395 = vpop.f32.mrf.mxu0
    %v2396 = vadd.f32 %v2278, %v2395
    %v2397 = vpop.f32.mrf.mxu0
    %2398 = vmatprep.mubr.f32.mxu0 0.0
    %2399 = vmatmul.mubr.f32.gmra.mxu0 %v2270
    %v2400 = vpop.f32.mrf.mxu0
    %v2401 = vadd.f32 %v2278, %v2400
    %v2402 = vpop.f32.mrf.mxu0
    %2403 = vmatprep.mubr.f32.mxu0 0.0
    %2404 = vmatmul.mubr.f32.gmra.mxu0 %v2271
    %v2405 = vpop.f32.mrf.mxu0
    %v2406 = vadd.f32 %v2278, %v2405
    %v2407 = vpop.f32.mrf.mxu0
    %2408 = vmatprep.mubr.f32.mxu0 0.0
    %2409 = vmatmul.mubr.f32.gmra.mxu0 %v2272
    %v2410 = vpop.f32.mrf.mxu0
    %v2411 = vadd.f32 %v2278, %v2410
    %v2412 = vpop.f32.mrf.mxu0
    %2413 = vmatprep.mubr.f32.mxu0 0.0
    %2414 = vmatmul.mubr.f32.gmra.mxu0 %v2273
    %v2415 = vpop.f32.mrf.mxu0
    %v2416 = vadd.f32 %v2278, %v2415
    %v2417 = vpop.f32.mrf.mxu0
    %2418 = vmatprep.mubr.f32.mxu0 0.0
    %2419 = vmatmul.mubr.f32.gmra.mxu0 %v2274
    %v2420 = vpop.f32.mrf.mxu0
    %v2421 = vadd.f32 %v2278, %v2420
    %v2422 = vpop.f32.mrf.mxu0
    %2423 = vdwg.mxu0
    %v2424 = vmax.f32 %v2346, 0.0
    %v2425 = vmax.f32 %v2351, 0.0
    %v2426 = vmax.f32 %v2356, 0.0
    %v2427 = vmax.f32 %v2361, 0.0
    %v2428 = vmax.f32 %v2366, 0.0
    %v2429 = vmax.f32 %v2371, 0.0
    %v2430 = vmax.f32 %v2376, 0.0
    %v2431 = vmax.f32 %v2381, 0.0
    %v2432 = vmax.f32 %v2386, 0.0
    %v2433 = vmax.f32 %v2391, 0.0
    %v2434 = vmax.f32 %v2396, 0.0
    %v2435 = vmax.f32 %v2401, 0.0
    %v2436 = vmax.f32 %v2406, 0.0
    %v2437 = vmax.f32 %v2411, 0.0
    %v2438 = vmax.f32 %v2416, 0.0
    %v2439 = vmax.f32 %v2421, 0.0
    %2440 = vmatprep.subr.mxu0 0.0
    %2441 = vmatpush1.msra.mxu0 %v2439
    %2442 = vmatprep.subr.mxu0 0.0
    %2443 = vmatpush1.msra.mxu0 %v2438
    %2444 = vmatprep.subr.mxu0 0.0
    %2445 = vmatpush1.msra.mxu0 %v2437
    %2446 = vmatprep.subr.mxu0 0.0
    %2447 = vmatpush1.msra.mxu0 %v2436
    %2448 = vmatprep.subr.mxu0 0.0
    %2449 = vmatpush1.msra.mxu0 %v2435
    %2450 = vmatprep.subr.mxu0 0.0
    %2451 = vmatpush1.msra.mxu0 %v2434
    %2452 = vmatprep.subr.mxu0 0.0
    %2453 = vmatpush1.msra.mxu0 %v2433
    %2454 = vmatprep.subr.mxu0 0.0
    %2455 = vmatpush1.msra.mxu0 %v2432
    %2456 = vmatprep.subr.mxu0 0.0
    %2457 = vmatpush1.msra.mxu0 %v2431
    %2458 = vmatprep.subr.mxu0 0.0
    %2459 = vmatpush1.msra.mxu0 %v2430
    %2460 = vmatprep.subr.mxu0 0.0
    %2461 = vmatpush1.msra.mxu0 %v2429
    %2462 = vmatprep.subr.mxu0 0.0
    %2463 = vmatpush1.msra.mxu0 %v2428
    %2464 = vmatprep.subr.mxu0 0.0
    %2465 = vmatpush1.msra.mxu0 %v2427
    %2466 = vmatprep.subr.mxu0 0.0
    %2467 = vmatpush1.msra.mxu0 %v2426
    %2468 = vmatprep.subr.mxu0 0.0
    %2469 = vmatpush1.msra.mxu0 %v2425
    %2470 = vmatprep.subr.mxu0 0.0
    %2471 = vmatpush1.msra.mxu0 %v2424
    %2472 = vmatprep.subr.mxu0 0.0
    %2473 = vmatpush2.msra.mxu0 0.0
    %2474 = vmatprep.subr.mxu0 0.0
    %2475 = vmatpush2.msra.mxu0 0.0
    %2476 = vmatprep.subr.mxu0 0.0
    %2477 = vmatpush2.msra.mxu0 0.0
    %2478 = vmatprep.subr.mxu0 0.0
    %2479 = vmatpush2.msra.mxu0 0.0
    %2480 = vmatprep.subr.mxu0 0.0
    %2481 = vmatpush2.msra.mxu0 0.0
    %2482 = vmatprep.subr.mxu0 0.0
    %2483 = vmatpush2.msra.mxu0 0.0
    %2484 = vmatprep.subr.mxu0 0.0
    %2485 = vmatpush2.msra.mxu0 0.0
    %2486 = vmatprep.subr.mxu0 0.0
    %2487 = vmatpush2.msra.mxu0 0.0
    %2488 = vmatprep.subr.mxu0 0.0
    %2489 = vmatpush2.msra.mxu0 0.0
    %2490 = vmatprep.subr.mxu0 0.0
    %2491 = vmatpush2.msra.mxu0 0.0
    %2492 = vmatprep.subr.mxu0 0.0
    %2493 = vmatpush2.msra.mxu0 0.0
    %2494 = vmatprep.subr.mxu0 0.0
    %2495 = vmatpush2.msra.mxu0 0.0
    %2496 = vmatprep.subr.mxu0 0.0
    %2497 = vmatpush2.msra.mxu0 0.0
    %2498 = vmatprep.subr.mxu0 0.0
    %2499 = vmatpush2.msra.mxu0 0.0
    %2500 = vmatprep.subr.mxu0 0.0
    %2501 = vmatpush2.msra.mxu0 0.0
    %2502 = vmatprep.subr.mxu0 0.0
    %2503 = vmatpush2.msra.mxu0 0.0
    %2504 = vmatprep.mubr.f32.mxu0 0.0
    %2505 = vmatmul.mubr.f32.gmra.mxu0 %v103
    %v2506 = vpop.f32.mrf.mxu0
    %v2507 = vadd.f32 0.0, %v2506
    %v2508 = vpop.f32.mrf.mxu0
    %2509 = vdwg.mxu0
    %2510 = vst [vmem:[#allocation2 + $0x20] sm:$0xff] %v2507
    %v2511 = vld [vmem:[#allocation9 + $0x400] sm:$0xff]
    %v2512 = vld [vmem:[#allocation9 + $0x408] sm:$0xff]
    %v2513 = vld [vmem:[#allocation9 + $0x410] sm:$0xff]
    %v2514 = vld [vmem:[#allocation9 + $0x418] sm:$0xff]
    %v2515 = vld [vmem:[#allocation9 + $0x420] sm:$0xff]
    %v2516 = vld [vmem:[#allocation9 + $0x428] sm:$0xff]
    %v2517 = vld [vmem:[#allocation9 + $0x430] sm:$0xff]
    %v2518 = vld [vmem:[#allocation9 + $0x438] sm:$0xff]
    %v2519 = vld [vmem:[#allocation9 + $0x440] sm:$0xff]
    %v2520 = vld [vmem:[#allocation9 + $0x448] sm:$0xff]
    %v2521 = vld [vmem:[#allocation9 + $0x450] sm:$0xff]
    %v2522 = vld [vmem:[#allocation9 + $0x458] sm:$0xff]
    %v2523 = vld [vmem:[#allocation9 + $0x460] sm:$0xff]
    %v2524 = vld [vmem:[#allocation9 + $0x468] sm:$0xff]
    %v2525 = vld [vmem:[#allocation9 + $0x470] sm:$0xff]
    %v2526 = vld [vmem:[#allocation9 + $0x478] sm:$0xff]
    %v2527 = vld [vmem:[#allocation9 + $0x480] sm:$0xff]
    %v2528 = vld [vmem:[#allocation9 + $0x488] sm:$0xff]
    %v2529 = vld [vmem:[#allocation9 + $0x490] sm:$0xff]
    %v2530 = vld [vmem:[#allocation9 + $0x498] sm:$0xff]
    %v2531 = vld [vmem:[#allocation9 + $0x4a0] sm:$0xff]
    %v2532 = vld [vmem:[#allocation9 + $0x4a8] sm:$0xff]
    %v2533 = vld [vmem:[#allocation9 + $0x4b0] sm:$0xff]
    %v2534 = vld [vmem:[#allocation9 + $0x4b8] sm:$0xff]
    %v2535 = vld [vmem:[#allocation9 + $0x4c0] sm:$0xff]
    %v2536 = vld [vmem:[#allocation9 + $0x4c8] sm:$0xff]
    %v2537 = vld [vmem:[#allocation9 + $0x4d0] sm:$0xff]
    %v2538 = vld [vmem:[#allocation9 + $0x4d8] sm:$0xff]
    %v2539 = vld [vmem:[#allocation9 + $0x4e0] sm:$0xff]
    %v2540 = vld [vmem:[#allocation9 + $0x4e8] sm:$0xff]
    %v2541 = vld [vmem:[#allocation9 + $0x4f0] sm:$0xff]
    %v2542 = vld [vmem:[#allocation9 + $0x4f8] sm:$0xff]
    %v2543 = vld [vmem:[#allocation9 + $0x500] sm:$0xff]
    %v2544 = vld [vmem:[#allocation9 + $0x508] sm:$0xff]
    %v2545 = vld [vmem:[#allocation9 + $0x510] sm:$0xff]
    %v2546 = vld [vmem:[#allocation9 + $0x518] sm:$0xff]
    %v2547 = vld [vmem:[#allocation9 + $0x520] sm:$0xff]
    %v2548 = vld [vmem:[#allocation9 + $0x528] sm:$0xff]
    %v2549 = vld [vmem:[#allocation9 + $0x530] sm:$0xff]
    %v2550 = vld [vmem:[#allocation9 + $0x538] sm:$0xff]
    %v2551 = vld [vmem:[#allocation9 + $0x540] sm:$0xff]
    %v2552 = vld [vmem:[#allocation9 + $0x548] sm:$0xff]
    %v2553 = vld [vmem:[#allocation9 + $0x550] sm:$0xff]
    %v2554 = vld [vmem:[#allocation9 + $0x558] sm:$0xff]
    %v2555 = vld [vmem:[#allocation9 + $0x560] sm:$0xff]
    %v2556 = vld [vmem:[#allocation9 + $0x568] sm:$0xff]
    %v2557 = vld [vmem:[#allocation9 + $0x570] sm:$0xff]
    %v2558 = vld [vmem:[#allocation9 + $0x578] sm:$0xff]
    %v2559 = vld [vmem:[#allocation9 + $0x580] sm:$0xff]
    %v2560 = vld [vmem:[#allocation9 + $0x588] sm:$0xff]
    %v2561 = vld [vmem:[#allocation9 + $0x590] sm:$0xff]
    %v2562 = vld [vmem:[#allocation9 + $0x598] sm:$0xff]
    %v2563 = vld [vmem:[#allocation9 + $0x5a0] sm:$0xff]
    %v2564 = vld [vmem:[#allocation9 + $0x5a8] sm:$0xff]
    %v2565 = vld [vmem:[#allocation9 + $0x5b0] sm:$0xff]
    %v2566 = vld [vmem:[#allocation9 + $0x5b8] sm:$0xff]
    %v2567 = vld [vmem:[#allocation9 + $0x5c0] sm:$0xff]
    %v2568 = vld [vmem:[#allocation9 + $0x5c8] sm:$0xff]
    %v2569 = vld [vmem:[#allocation9 + $0x5d0] sm:$0xff]
    %v2570 = vld [vmem:[#allocation9 + $0x5d8] sm:$0xff]
    %v2571 = vld [vmem:[#allocation9 + $0x5e0] sm:$0xff]
    %v2572 = vld [vmem:[#allocation9 + $0x5e8] sm:$0xff]
    %v2573 = vld [vmem:[#allocation9 + $0x5f0] sm:$0xff]
    %v2574 = vld [vmem:[#allocation9 + $0x5f8] sm:$0xff]
    %v2575 = vld [vmem:[#allocation9 + $0x600] sm:$0xff]
    %v2576 = vld [vmem:[#allocation9 + $0x608] sm:$0xff]
    %v2577 = vld [vmem:[#allocation9 + $0x610] sm:$0xff]
    %v2578 = vld [vmem:[#allocation9 + $0x618] sm:$0xff]
    %v2579 = vld [vmem:[#allocation9 + $0x620] sm:$0xff]
    %v2580 = vld [vmem:[#allocation9 + $0x628] sm:$0xff]
    %v2581 = vld [vmem:[#allocation9 + $0x630] sm:$0xff]
    %v2582 = vld [vmem:[#allocation9 + $0x638] sm:$0xff]
    %v2583 = vld [vmem:[#allocation9 + $0x640] sm:$0xff]
    %v2584 = vld [vmem:[#allocation9 + $0x648] sm:$0xff]
    %v2585 = vld [vmem:[#allocation9 + $0x650] sm:$0xff]
    %v2586 = vld [vmem:[#allocation9 + $0x658] sm:$0xff]
    %v2587 = vld [vmem:[#allocation9 + $0x660] sm:$0xff]
    %v2588 = vld [vmem:[#allocation9 + $0x668] sm:$0xff]
    %v2589 = vld [vmem:[#allocation9 + $0x670] sm:$0xff]
    %v2590 = vld [vmem:[#allocation9 + $0x678] sm:$0xff]
    %v2591 = vld [vmem:[#allocation11 + $0x8] sm:$0x1]
    %v2592 = vld [vmem:[#allocation2] sm:$0xff]
    %v2593 = vld [vmem:[#allocation2 + $0x8] sm:$0xff]
    %v2594 = vld [vmem:[#allocation2 + $0x10] sm:$0xff]
    %v2595 = vld [vmem:[#allocation2 + $0x18] sm:$0xff]
    %v2596 = vld [vmem:[#allocation2 + $0x20] sm:$0xff]
    %v2597 = vlaneseq
    %v2598 = vshrl.u32 %v2597, 7
    %v2599 = vsub.s32 0, %v2598
    %v2600 = vrot.slane %v2591, %v2599
    %2601 = vmatprep.subr.mxu0 0.0
    %2602 = vmatpush1.msra.mxu0 %v2526
    %2603 = vmatprep.subr.mxu0 0.0
    %2604 = vmatpush1.msra.mxu0 %v2525
    %2605 = vmatprep.subr.mxu0 0.0
    %2606 = vmatpush1.msra.mxu0 %v2524
    %2607 = vmatprep.subr.mxu0 0.0
    %2608 = vmatpush1.msra.mxu0 %v2523
    %2609 = vmatprep.subr.mxu0 0.0
    %2610 = vmatpush1.msra.mxu0 %v2522
    %2611 = vmatprep.subr.mxu0 0.0
    %2612 = vmatpush1.msra.mxu0 %v2521
    %2613 = vmatprep.subr.mxu0 0.0
    %2614 = vmatpush1.msra.mxu0 %v2520
    %2615 = vmatprep.subr.mxu0 0.0
    %2616 = vmatpush1.msra.mxu0 %v2519
    %2617 = vmatprep.subr.mxu0 0.0
    %2618 = vmatpush1.msra.mxu0 %v2518
    %2619 = vmatprep.subr.mxu0 0.0
    %2620 = vmatpush1.msra.mxu0 %v2517
    %2621 = vmatprep.subr.mxu0 0.0
    %2622 = vmatpush1.msra.mxu0 %v2516
    %2623 = vmatprep.subr.mxu0 0.0
    %2624 = vmatpush1.msra.mxu0 %v2515
    %2625 = vmatprep.subr.mxu0 0.0
    %2626 = vmatpush1.msra.mxu0 %v2514
    %2627 = vmatprep.subr.mxu0 0.0
    %2628 = vmatpush1.msra.mxu0 %v2513
    %2629 = vmatprep.subr.mxu0 0.0
    %2630 = vmatpush1.msra.mxu0 %v2512
    %2631 = vmatprep.subr.mxu0 0.0
    %2632 = vmatpush1.msra.mxu0 %v2511
    %2633 = vmatprep.subr.mxu0 0.0
    %2634 = vmatpush2.msra.mxu0 %v2542
    %2635 = vmatprep.subr.mxu0 0.0
    %2636 = vmatpush2.msra.mxu0 %v2541
    %2637 = vmatprep.subr.mxu0 0.0
    %2638 = vmatpush2.msra.mxu0 %v2540
    %2639 = vmatprep.subr.mxu0 0.0
    %2640 = vmatpush2.msra.mxu0 %v2539
    %2641 = vmatprep.subr.mxu0 0.0
    %2642 = vmatpush2.msra.mxu0 %v2538
    %2643 = vmatprep.subr.mxu0 0.0
    %2644 = vmatpush2.msra.mxu0 %v2537
    %2645 = vmatprep.subr.mxu0 0.0
    %2646 = vmatpush2.msra.mxu0 %v2536
    %2647 = vmatprep.subr.mxu0 0.0
    %2648 = vmatpush2.msra.mxu0 %v2535
    %2649 = vmatprep.subr.mxu0 0.0
    %2650 = vmatpush2.msra.mxu0 %v2534
    %2651 = vmatprep.subr.mxu0 0.0
    %2652 = vmatpush2.msra.mxu0 %v2533
    %2653 = vmatprep.subr.mxu0 0.0
    %2654 = vmatpush2.msra.mxu0 %v2532
    %2655 = vmatprep.subr.mxu0 0.0
    %2656 = vmatpush2.msra.mxu0 %v2531
    %2657 = vmatprep.subr.mxu0 0.0
    %2658 = vmatpush2.msra.mxu0 %v2530
    %2659 = vmatprep.subr.mxu0 0.0
    %2660 = vmatpush2.msra.mxu0 %v2529
    %2661 = vmatprep.subr.mxu0 0.0
    %2662 = vmatpush2.msra.mxu0 %v2528
    %2663 = vmatprep.subr.mxu0 0.0
    %2664 = vmatpush2.msra.mxu0 %v2527
    %2665 = vmatprep.mubr.f32.mxu0 %v2593
    %2666 = vmatmul.mubr.f32.gmra.mxu0 %v2592
    %v2667 = vpop.f32.mrf.mxu0
    %v2668 = vadd.f32 %v2600, %v2667
    %v2669 = vpop.f32.mrf.mxu0
    %2670 = vdwg.mxu0
    %2671 = vmatprep.subr.mxu0 0.0
    %2672 = vmatpush1.msra.mxu0 %v2558
    %2673 = vmatprep.subr.mxu0 0.0
    %2674 = vmatpush1.msra.mxu0 %v2557
    %2675 = vmatprep.subr.mxu0 0.0
    %2676 = vmatpush1.msra.mxu0 %v2556
    %2677 = vmatprep.subr.mxu0 0.0
    %2678 = vmatpush1.msra.mxu0 %v2555
    %2679 = vmatprep.subr.mxu0 0.0
    %2680 = vmatpush1.msra.mxu0 %v2554
    %2681 = vmatprep.subr.mxu0 0.0
    %2682 = vmatpush1.msra.mxu0 %v2553
    %2683 = vmatprep.subr.mxu0 0.0
    %2684 = vmatpush1.msra.mxu0 %v2552
    %2685 = vmatprep.subr.mxu0 0.0
    %2686 = vmatpush1.msra.mxu0 %v2551
    %2687 = vmatprep.subr.mxu0 0.0
    %2688 = vmatpush1.msra.mxu0 %v2550
    %2689 = vmatprep.subr.mxu0 0.0
    %2690 = vmatpush1.msra.mxu0 %v2549
    %2691 = vmatprep.subr.mxu0 0.0
    %2692 = vmatpush1.msra.mxu0 %v2548
    %2693 = vmatprep.subr.mxu0 0.0
    %2694 = vmatpush1.msra.mxu0 %v2547
    %2695 = vmatprep.subr.mxu0 0.0
    %2696 = vmatpush1.msra.mxu0 %v2546
    %2697 = vmatprep.subr.mxu0 0.0
    %2698 = vmatpush1.msra.mxu0 %v2545
    %2699 = vmatprep.subr.mxu0 0.0
    %2700 = vmatpush1.msra.mxu0 %v2544
    %2701 = vmatprep.subr.mxu0 0.0
    %2702 = vmatpush1.msra.mxu0 %v2543
    %2703 = vmatprep.subr.mxu0 0.0
    %2704 = vmatpush2.msra.mxu0 %v2574
    %2705 = vmatprep.subr.mxu0 0.0
    %2706 = vmatpush2.msra.mxu0 %v2573
    %2707 = vmatprep.subr.mxu0 0.0
    %2708 = vmatpush2.msra.mxu0 %v2572
    %2709 = vmatprep.subr.mxu0 0.0
    %2710 = vmatpush2.msra.mxu0 %v2571
    %2711 = vmatprep.subr.mxu0 0.0
    %2712 = vmatpush2.msra.mxu0 %v2570
    %2713 = vmatprep.subr.mxu0 0.0
    %2714 = vmatpush2.msra.mxu0 %v2569
    %2715 = vmatprep.subr.mxu0 0.0
    %2716 = vmatpush2.msra.mxu0 %v2568
    %2717 = vmatprep.subr.mxu0 0.0
    %2718 = vmatpush2.msra.mxu0 %v2567
    %2719 = vmatprep.subr.mxu0 0.0
    %2720 = vmatpush2.msra.mxu0 %v2566
    %2721 = vmatprep.subr.mxu0 0.0
    %2722 = vmatpush2.msra.mxu0 %v2565
    %2723 = vmatprep.subr.mxu0 0.0
    %2724 = vmatpush2.msra.mxu0 %v2564
    %2725 = vmatprep.subr.mxu0 0.0
    %2726 = vmatpush2.msra.mxu0 %v2563
    %2727 = vmatprep.subr.mxu0 0.0
    %2728 = vmatpush2.msra.mxu0 %v2562
    %2729 = vmatprep.subr.mxu0 0.0
    %2730 = vmatpush2.msra.mxu0 %v2561
    %2731 = vmatprep.subr.mxu0 0.0
    %2732 = vmatpush2.msra.mxu0 %v2560
    %2733 = vmatprep.subr.mxu0 0.0
    %2734 = vmatpush2.msra.mxu0 %v2559
    %2735 = vmatprep.mubr.f32.mxu0 %v2595
    %2736 = vmatmul.mubr.f32.gmra.mxu0 %v2594
    %v2737 = vpop.f32.mrf.mxu0
    %v2738 = vadd.f32 %v2668, %v2737
    %v2739 = vpop.f32.mrf.mxu0
    %2740 = vdwg.mxu0
    %2741 = vmatprep.subr.mxu0 0.0
    %2742 = vmatpush1.msra.mxu0 %v2590
    %2743 = vmatprep.subr.mxu0 0.0
    %2744 = vmatpush1.msra.mxu0 %v2589
    %2745 = vmatprep.subr.mxu0 0.0
    %2746 = vmatpush1.msra.mxu0 %v2588
    %2747 = vmatprep.subr.mxu0 0.0
    %2748 = vmatpush1.msra.mxu0 %v2587
    %2749 = vmatprep.subr.mxu0 0.0
    %2750 = vmatpush1.msra.mxu0 %v2586
    %2751 = vmatprep.subr.mxu0 0.0
    %2752 = vmatpush1.msra.mxu0 %v2585
    %2753 = vmatprep.subr.mxu0 0.0
    %2754 = vmatpush1.msra.mxu0 %v2584
    %2755 = vmatprep.subr.mxu0 0.0
    %2756 = vmatpush1.msra.mxu0 %v2583
    %2757 = vmatprep.subr.mxu0 0.0
    %2758 = vmatpush1.msra.mxu0 %v2582
    %2759 = vmatprep.subr.mxu0 0.0
    %2760 = vmatpush1.msra.mxu0 %v2581
    %2761 = vmatprep.subr.mxu0 0.0
    %2762 = vmatpush1.msra.mxu0 %v2580
    %2763 = vmatprep.subr.mxu0 0.0
    %2764 = vmatpush1.msra.mxu0 %v2579
    %2765 = vmatprep.subr.mxu0 0.0
    %2766 = vmatpush1.msra.mxu0 %v2578
    %2767 = vmatprep.subr.mxu0 0.0
    %2768 = vmatpush1.msra.mxu0 %v2577
    %2769 = vmatprep.subr.mxu0 0.0
    %2770 = vmatpush1.msra.mxu0 %v2576
    %2771 = vmatprep.subr.mxu0 0.0
    %2772 = vmatpush1.msra.mxu0 %v2575
    %2773 = vmatprep.subr.mxu0 0.0
    %2774 = vmatpush2.msra.mxu0 0.0
    %2775 = vmatprep.subr.mxu0 0.0
    %2776 = vmatpush2.msra.mxu0 0.0
    %2777 = vmatprep.subr.mxu0 0.0
    %2778 = vmatpush2.msra.mxu0 0.0
    %2779 = vmatprep.subr.mxu0 0.0
    %2780 = vmatpush2.msra.mxu0 0.0
    %2781 = vmatprep.subr.mxu0 0.0
    %2782 = vmatpush2.msra.mxu0 0.0
    %2783 = vmatprep.subr.mxu0 0.0
    %2784 = vmatpush2.msra.mxu0 0.0
    %2785 = vmatprep.subr.mxu0 0.0
    %2786 = vmatpush2.msra.mxu0 0.0
    %2787 = vmatprep.subr.mxu0 0.0
    %2788 = vmatpush2.msra.mxu0 0.0
    %2789 = vmatprep.subr.mxu0 0.0
    %2790 = vmatpush2.msra.mxu0 0.0
    %2791 = vmatprep.subr.mxu0 0.0
    %2792 = vmatpush2.msra.mxu0 0.0
    %2793 = vmatprep.subr.mxu0 0.0
    %2794 = vmatpush2.msra.mxu0 0.0
    %2795 = vmatprep.subr.mxu0 0.0
    %2796 = vmatpush2.msra.mxu0 0.0
    %2797 = vmatprep.subr.mxu0 0.0
    %2798 = vmatpush2.msra.mxu0 0.0
    %2799 = vmatprep.subr.mxu0 0.0
    %2800 = vmatpush2.msra.mxu0 0.0
    %2801 = vmatprep.subr.mxu0 0.0
    %2802 = vmatpush2.msra.mxu0 0.0
    %2803 = vmatprep.subr.mxu0 0.0
    %2804 = vmatpush2.msra.mxu0 0.0
    %2805 = vmatprep.mubr.f32.mxu0 0.0
    %2806 = vmatmul.mubr.f32.gmra.mxu0 %v2596
    %v2807 = vpop.f32.mrf.mxu0
    %v2808 = vadd.f32 %v2738, %v2807
    %v2809 = vpop.f32.mrf.mxu0
    %2810 = vdwg.mxu0
    %2811 = vst [vmem:[#allocation12] sm:$0xff] %v2808
    // Predicated region
    $region42: #{tpu_custom_call.1} parent=1 // pred_check
      _
    $region43: #{tpu_custom_call.1} parent=1 // pred_check_branch
      %2813 = sbr.rel (0) target = $region45
    $region44: #{tpu_custom_call.1} parent=1 // pred_region
      %s2815 = ssub.s32 128, 128
      %2816 = vsyncadd [#allocation5], %s2815
      %s2818 = sshll.u32 [#allocation12], 4
      %s2819 = int_to_ptr.vmem [resolvable:$true] %s2818
      %2821 = dma.vmem_to_hbm [thread:$0]  %s2819, 128, %s5, [#allocation5]
    $region45: #{tpu_custom_call.1} parent=1 // pred_fallthru
      _
    // Predicated region
    $region46: #{tpu_custom_call.1} parent=1 // pred_check
      _
    $region47: #{tpu_custom_call.1} parent=1 // pred_check_branch
      %2823 = sbr.rel (0) target = $region49
    $region48: #{tpu_custom_call.1} parent=1 // pred_region
      %2824 = dma.done [#allocation5], 128
    $region49: #{tpu_custom_call.1} parent=1 // pred_fallthru
      _
    %2825 = vsyncpa [#allocation4], 1
    %2826 = vsyncpa [#allocation7], 1
    %2827 = vsyncpa [#allocation10], 1
    %2828 = vsyncpa [#allocation5], 1

</llo_original>
